<compile_context>
chip_gen: v5e
topology: v5e:2x2
jax: 0.10.0
libtpu: 0.0.40
codegen_flags: <defaults>
</compile_context>

<pallas_src>
import functools
import math

import jax
import jax.numpy as jnp
from jax import lax
from jax.experimental import pallas as pl
from jax.experimental.pallas import tpu as pltpu


# ----------------------------- VMEM / tiling helpers -----------------------------

@functools.lru_cache(maxsize=1)
def _vmem_limit_bytes():
    """Generation-gated scoped-VMEM limit: generous on 128-MiB parts, tight on v7x."""
    try:
        cap = pltpu.get_tpu_info().vmem_capacity_bytes
    except Exception:
        return 48 * 1024 * 1024
    if cap >= 100 * 1024 * 1024:        # v5e / v6e: 128 MiB physical
        return 96 * 1024 * 1024
    return 48 * 1024 * 1024             # v7x: 64 MiB physical


def _pick_tile(dim, max_tile, align):
    """Largest tile <= max_tile that is a multiple of `align` AND divides `dim` exactly.
    Falls back to the full dimension (always a legal block)."""
    if dim <= max_tile:
        return dim
    t = (max_tile // align) * align
    while t >= align:
        if dim % t == 0:
            return t
        t -= align
    # TODO(synk): a non-divisible huge dim falls back to the full extent; for such shapes
    # pad in the wrapper instead of relying on this (guarded by the tm budget below).
    return dim


def _bound_tm(M, max_tm, tk, tn, x_bytes, out_bytes, extra_row_bytes, budget):
    """Cap tm so the double-buffered working set stays inside the scoped-VMEM budget."""
    fixed = 2 * tk * tn * 2                                   # double-buffered bf16 weight tile
    avail = max(budget - fixed, 16 * (2 * tk * x_bytes + 8 * tn))
    per_row = 2 * tk * x_bytes + tn * (4 + out_bytes) + extra_row_bytes
    cap = max(16, (avail // per_row) // 16 * 16)
    return _pick_tile(M, min(max_tm, cap), 16)


# ----------------------------- Fused linear kernel -----------------------------
# y = act(LN?(x) @ w + b) + residual?   with f32 VMEM accumulation.

def _linear_kernel(*refs, act, fuse_ln, has_residual, eps):
    idx = 0
    x_ref = refs[idx]; idx += 1
    w_ref = refs[idx]; idx += 1
    b_ref = refs[idx]; idx += 1
    if fuse_ln:
        g_ref = refs[idx]; idx += 1
        lb_ref = refs[idx]; idx += 1
    if has_residual:
        res_ref = refs[idx]; idx += 1
    o_ref = refs[idx]
    acc_ref = refs[idx + 1]

    @pl.when(pl.program_id(2) == 0)
    def _():
        acc_ref[...] = jnp.zeros_like(acc_ref)

    if fuse_ln:
        # tk == K for LN-fused calls, so the whole feature dim is resident.
        x = x_ref[...].astype(jnp.float32)
        mean = jnp.mean(x, axis=-1, keepdims=True)
        var = jnp.mean((x - mean) ** 2, axis=-1, keepdims=True)
        x = (x - mean) * lax.rsqrt(var + eps)
        x = x * g_ref[...].astype(jnp.float32) + lb_ref[...].astype(jnp.float32)
        xm = x.astype(jnp.bfloat16)
    else:
        xm = x_ref[...]

    acc_ref[...] += jnp.dot(xm, w_ref[...], preferred_element_type=jnp.float32)

    @pl.when(pl.program_id(2) == pl.num_programs(2) - 1)
    def _():
        y = acc_ref[...] + b_ref[...].astype(jnp.float32)
        if act == "gelu":
            # TODO(synk): real CLIP uses QuickGELU (x*sigmoid(1.702x)); tanh-GELU used here.
            y = jax.nn.gelu(y, approximate=True)
        if has_residual:
            y = y + res_ref[...].astype(jnp.float32)
        o_ref[...] = y.astype(o_ref.dtype)


def linear(x, w, b, act=None, out_dtype=jnp.float32,
           ln_g=None, ln_b=None, residual=None, eps=1e-5,
           max_tm=512, max_tn=256, max_tk=512):
    """x: (M, K), w: (K, N), b: (N,) -> (M, N).
    Optional fused pre-LayerNorm on x (ln_g/ln_b, requires full-K tiles) and fused
    residual add in the epilogue. bf16 MXU operands, f32 VMEM accumulator."""
    M, K = x.shape
    N = w.shape[1]
    fuse_ln = ln_g is not None
    has_residual = residual is not None

    w = w.astype(jnp.bfloat16)
    b = b.astype(jnp.float32).reshape(1, N)
    if fuse_ln:
        x = x.astype(jnp.float32)       # normalize in f32 inside the kernel
        x_bytes = 4
    else:
        x = x.astype(jnp.bfloat16)
        x_bytes = 2
    out_bytes = jnp.dtype(out_dtype).itemsize

    # N/K tiles multiples of 128 (prefer 256 on the v6e/v7x 256x256 MXU).
    tn = _pick_tile(N, max_tn, 128)
    tk = K if fuse_ln else _pick_tile(K, max_tk, 128)
    extra_row = tn * 4 if has_residual else 0
    tm = _bound_tm(M, max_tm, tk, tn, x_bytes, out_bytes, extra_row,
                   budget=_vmem_limit_bytes() // 2)
    grid = (M // tm, N // tn, K // tk)

    in_specs = [
        pl.BlockSpec((tm, tk), lambda i, j, k: (i, k)),
        pl.BlockSpec((tk, tn), lambda i, j, k: (k, j)),
        pl.BlockSpec((1, tn), lambda i, j, k: (0, j)),
    ]
    args = [x, w, b]
    if fuse_ln:
        in_specs += [pl.BlockSpec((1, tk), lambda i, j, k: (0, k)),
                     pl.BlockSpec((1, tk), lambda i, j, k: (0, k))]
        args += [ln_g.astype(jnp.float32).reshape(1, K),
                 ln_b.astype(jnp.float32).reshape(1, K)]
    if has_residual:
        in_specs += [pl.BlockSpec((tm, tn), lambda i, j, k: (i, j))]
        args += [residual.astype(jnp.float32)]

    cost = pl.CostEstimate(
        flops=2 * M * N * K + (10 * M * K if fuse_ln else 0),
        transcendentals=(M * N if act == "gelu" else 0) + (M if fuse_ln else 0),
        bytes_accessed=(M * K * x_bytes + K * N * 2 + N * 4
                        + (2 * K * 4 if fuse_ln else 0)
                        + (M * N * 4 if has_residual else 0)
                        + M * N * out_bytes),
    )

    return pl.pallas_call(
        functools.partial(_linear_kernel, act=act, fuse_ln=fuse_ln,
                          has_residual=has_residual, eps=eps),
        out_shape=jax.ShapeDtypeStruct((M, N), out_dtype),
        grid_spec=pltpu.PrefetchScalarGridSpec(
            num_scalar_prefetch=0,
            grid=grid,
            in_specs=in_specs,
            out_specs=pl.BlockSpec((tm, tn), lambda i, j, k: (i, j)),
            scratch_shapes=[pltpu.VMEM((tm, tn), jnp.float32)],
        ),
        compiler_params=pltpu.CompilerParams(
            dimension_semantics=("parallel", "parallel", "arbitrary"),
            vmem_limit_bytes=_vmem_limit_bytes(),
        ),
        cost_estimate=cost,
    )(*args)


# ----------------------------- Attention kernel (fused-QKV layout) -----------------------------

def _attn_kernel(*refs, scale, head_dim, d_model, has_bias, split_qkv):
    if split_qkv:
        if has_bias:
            bias_ref, q_ref, k_ref, v_ref, o_ref = refs
        else:
            q_ref, k_ref, v_ref, o_ref = refs
        q = q_ref[0]                       # (S, hg*Dh) bf16
        k = k_ref[0]
        v = v_ref[0]
    else:
        if has_bias:
            bias_ref, qkv_ref, o_ref = refs
        else:
            qkv_ref, o_ref = refs
        qkv = qkv_ref[0]                   # (S, 3*D) bf16
        q = qkv[:, :d_model]
        k = qkv[:, d_model:2 * d_model]
        v = qkv[:, 2 * d_model:]

    S = q.shape[0]
    hg = q.shape[1] // head_dim            # heads handled this grid step
    q = q.reshape(S, hg, head_dim)
    k = k.reshape(S, hg, head_dim)
    v = v.reshape(S, hg, head_dim)

    # Contraction on the trailing dim (no explicit K transpose in HBM), f32 scores.
    s = jnp.einsum("qhd,khd->hqk", q, k,
                   preferred_element_type=jnp.float32) * scale
    if has_bias:
        s = s + bias_ref[0]                # (1, S) key-padding bias -> broadcast (hg, S, S)
    s = s - jnp.max(s, axis=-1, keepdims=True)
    p = jnp.exp(s)
    p = p * pl.reciprocal(jnp.sum(p, axis=-1, keepdims=True), approx=True)
    o = jnp.einsum("hqk,khd->qhd", p.astype(v.dtype), v,
                   preferred_element_type=jnp.float32)
    # Lane-dense (S, hg*Dh) store straight into the (B, S, D) output layout.
    o_ref[0] = o.reshape(S, hg * head_dim).astype(o_ref.dtype)


def attention(qkv, n_heads, scale, bias=None, out_dtype=jnp.bfloat16):
    """qkv: (B, S, 3*D) fused projection (column order: [q | k | v], each head-major).
    Optional bias: (B, 1, S) additive key-padding bias, broadcast over heads/queries
    inside the kernel. Output: (B, S, D) — directly consumable by the output projection
    (no transpose). Grid is (B, head_groups); a head group is the smallest number of
    heads whose width is a multiple of 128 lanes (falls back to all heads / full block
    for tiny unaligned models)."""
    B, S, threeD = qkv.shape
    D = threeD // 3
    Dh = D // n_heads
    has_bias = bias is not None

    hg = None
    for cand in range(1, n_heads + 1):
        if n_heads % cand == 0 and (cand * Dh) % 128 == 0:
            hg = cand
            break
    split = hg is not None

    if split:
        hw = hg * Dh
        G = D // hw                                     # head groups
        grid = (B, G)
        in_specs = [
            pl.BlockSpec((1, S, hw), lambda b, g: (b, 0, g)),            # Q slice
            pl.BlockSpec((1, S, hw), lambda b, g: (b, 0, G + g)),        # K slice
            pl.BlockSpec((1, S, hw), lambda b, g: (b, 0, 2 * G + g)),    # V slice
        ]
        args = [qkv, qkv, qkv]
        out_specs = pl.BlockSpec((1, S, hw), lambda b, g: (b, 0, g))
        if has_bias:
            in_specs = [pl.BlockSpec((1, 1, S), lambda b, g: (b, 0, 0))] + in_specs
            args = [bias.astype(jnp.float32)] + args
        sem = ("parallel", "parallel")
    else:
        grid = (B,)
        in_specs = [pl.BlockSpec((1, S, threeD), lambda b: (b, 0, 0))]
        args = [qkv]
        out_specs = pl.BlockSpec((1, S, D), lambda b: (b, 0, 0))
        if has_bias:
            in_specs = [pl.BlockSpec((1, 1, S), lambda b: (b, 0, 0))] + in_specs
            args = [bias.astype(jnp.float32)] + args
        sem = ("parallel",)

    cost = pl.CostEstimate(
        flops=4 * B * n_heads * S * S * Dh,
        transcendentals=B * n_heads * S * S,
        bytes_accessed=(4 * B * S * D * 2 + (B * S * 4 if has_bias else 0)),
    )
    return pl.pallas_call(
        functools.partial(_attn_kernel, scale=scale, head_dim=Dh, d_model=D,
                          has_bias=has_bias, split_qkv=split),
        out_shape=jax.ShapeDtypeStruct((B, S, D), out_dtype),
        grid=grid,
        in_specs=in_specs,
        out_specs=out_specs,
        compiler_params=pltpu.CompilerParams(
            dimension_semantics=sem,
            vmem_limit_bytes=_vmem_limit_bytes(),
        ),
        cost_estimate=cost,
    )(*args)


# ----------------------------- Model glue (JAX) -----------------------------

def mha(x, p, n_heads, attn_bias):
    B, S, D = x.shape
    Dh = D // n_heads
    xf = x.reshape(B * S, D)                                        # f32 residual stream
    # LN1 fused into the QKV projection; fused QKV stays in (B, S, 3D) layout.
    qkv = linear(xf, p["w_qkv"], p["b_qkv"], out_dtype=jnp.bfloat16,
                 ln_g=p["ln1_g"], ln_b=p["ln1_b"]).reshape(B, S, 3 * D)
    o = attention(qkv, n_heads, scale=1.0 / math.sqrt(Dh), bias=attn_bias)  # (B,S,D) bf16
    # Output projection with the residual add fused into its epilogue.
    out = linear(o.reshape(B * S, D), p["w_o"], p["b_o"], residual=xf)
    return out.reshape(B, S, D)


def transformer_block(x, p, n_heads, attn_bias):
    B, S, D = x.shape
    x = mha(x, p, n_heads, attn_bias)                               # x + attn(LN1(x))
    xf = x.reshape(B * S, D)
    # LN2 fused into the MLP up-projection; residual fused into the down-projection.
    h = linear(xf, p["w1"], p["b1"], act="gelu", out_dtype=jnp.bfloat16,
               ln_g=p["ln2_g"], ln_b=p["ln2_b"])
    x = linear(h, p["w2"], p["b2"], residual=xf)
    return x.reshape(B, S, D)


def image_encoder(image, p, cfg):
    B, C, H, W = image.shape
    ps = cfg["patch_size"]
    nH, nW = H // ps, W // ps
    n_patches = nH * nW
    hidden = cfg["img_hidden_dim"]
    n_heads = cfg["img_n_heads"]

    # Patch extraction == Conv2d(C, hidden, kernel=ps, stride=ps) on NCHW input.
    patches = image.reshape(B, C, nH, ps, nW, ps)
    patches = patches.transpose(0, 2, 4, 1, 3, 5).reshape(B * n_patches, C * ps * ps)
    x = linear(patches, p["patch_w"], p["patch_b"]).reshape(B, n_patches, hidden)

    cls = jnp.broadcast_to(p["cls"].astype(jnp.float32), (B, 1, hidden))
    x = jnp.concatenate([cls, x], axis=1) + p["pos"]                # (B, S, hidden)

    for lp in p["layers"]:
        x = transformer_block(x, lp, n_heads, attn_bias=None)       # no mask materialized

    # Pool first (LN is per-row, so pooling before the final LN is equivalent),
    # then fuse the final LN into the projection matmul.
    cls_feat = x[:, 0, :]
    return linear(cls_feat, p["proj_w"], p["proj_b"],
                  ln_g=p["lnf_g"], ln_b=p["lnf_b"])                 # (B, embed_dim) f32


def text_encoder(token_ids, attn_mask, p, cfg):
    B, S = token_ids.shape
    hidden = cfg["text_hidden_dim"]
    n_heads = cfg["text_n_heads"]

    # Token-embedding gather stays in XLA (tiny); everything else runs in Pallas.
    x = jnp.take(p["tok_emb"], token_ids, axis=0) + p["pos"][:, :S, :]

    # Tiny (B, 1, S) additive key-padding bias, broadcast to (H, S, S) inside the kernel.
    attn_bias = jnp.where(attn_mask[:, None, :] > 0, 0.0, -1e9).astype(jnp.float32)

    for lp in p["layers"]:
        x = transformer_block(x, lp, n_heads, attn_bias)

    # TODO(synk): CLIP pools the EOT/argmax token; reference pooling unknown, first token used.
    pooled = x[:, 0, :]
    return linear(pooled, p["proj_w"], p["proj_b"],
                  ln_g=p["lnf_g"], ln_b=p["lnf_b"])                 # (B, embed_dim) f32


def clip_forward(params, cfg, image, token_ids, attn_mask):
    img_embed = image_encoder(image, params["img"], cfg)
    text_embed = text_encoder(token_ids, attn_mask, params["text"], cfg)
    return img_embed, text_embed


# ----------------------------- Deterministic parameter init -----------------------------

class KeyGen:
    def __init__(self, key):
        self.key = key

    def __call__(self):
        self.key, sub = jax.random.split(self.key)
        return sub


def _norm(kg, shape, scale=0.02, dtype=jnp.bfloat16):
    return (scale * jax.random.normal(kg(), shape, dtype=jnp.float32)).astype(dtype)


def _init_layer(kg, hidden, mlp):
    return {
        "ln1_g": jnp.ones((hidden,), jnp.float32), "ln1_b": jnp.zeros((hidden,), jnp.float32),
        "w_qkv": _norm(kg, (hidden, 3 * hidden)), "b_qkv": jnp.zeros((3 * hidden,), jnp.float32),
        "w_o": _norm(kg, (hidden, hidden)), "b_o": jnp.zeros((hidden,), jnp.float32),
        "ln2_g": jnp.ones((hidden,), jnp.float32), "ln2_b": jnp.zeros((hidden,), jnp.float32),
        "w1": _norm(kg, (hidden, mlp)), "b1": jnp.zeros((mlp,), jnp.float32),
        "w2": _norm(kg, (mlp, hidden)), "b2": jnp.zeros((hidden,), jnp.float32),
    }


def init_params(key, cfg):
    kg = KeyGen(key)
    ps = cfg["patch_size"]
    n_patches = (cfg["img_size"] // ps) ** 2
    ih, im = cfg["img_hidden_dim"], cfg["img_mlp_dim"]
    th, tm = cfg["text_hidden_dim"], cfg["text_mlp_dim"]
    e = cfg["embed_dim"]

    img = {
        "patch_w": _norm(kg, (3 * ps * ps, ih)), "patch_b": jnp.zeros((ih,), jnp.float32),
        "cls": _norm(kg, (1, 1, ih), dtype=jnp.float32),
        "pos": _norm(kg, (1, n_patches + 1, ih), dtype=jnp.float32),
        "layers": [_init_layer(kg, ih, im) for _ in range(cfg["img_n_layers"])],
        "lnf_g": jnp.ones((ih,), jnp.float32), "lnf_b": jnp.zeros((ih,), jnp.float32),
        "proj_w": _norm(kg, (ih, e)), "proj_b": jnp.zeros((e,), jnp.float32),
    }
    text = {
        "tok_emb": _norm(kg, (cfg["vocab_size"], th), dtype=jnp.float32),
        "pos": _norm(kg, (1, cfg["max_len"], th), dtype=jnp.float32),
        "layers": [_init_layer(kg, th, tm) for _ in range(cfg["text_n_layers"])],
        "lnf_g": jnp.ones((th,), jnp.float32), "lnf_b": jnp.zeros((th,), jnp.float32),
        "proj_w": _norm(kg, (th, e)), "proj_b": jnp.zeros((e,), jnp.float32),
    }
    return {"img": img, "text": text}


# ----------------------------- Main -----------------------------

if __name__ == "__main__":
    cfg = dict(
        img_size=16, patch_size=8,
        img_n_layers=2, img_n_heads=2, img_hidden_dim=32, img_mlp_dim=64,
        vocab_size=64, max_len=8,
        text_n_layers=2, text_n_heads=2, text_hidden_dim=32, text_mlp_dim=64,
        embed_dim=16, batch_size=2,
    )

    root = jax.random.PRNGKey(0)
    k_param, k_img, k_tok = jax.random.split(root, 3)

    params = init_params(k_param, cfg)

    B = cfg["batch_size"]
    image = jax.random.normal(k_img, (B, 3, cfg["img_size"], cfg["img_size"]), dtype=jnp.float32)
    token_ids = jax.random.randint(k_tok, (B, cfg["max_len"]), 0, cfg["vocab_size"], dtype=jnp.int32)
    attn_mask = jnp.array([[1, 1, 1, 1, 1, 1, 1, 1],
                           [1, 1, 1, 1, 1, 1, 0, 0]], dtype=jnp.int32)

    img_embed, text_embed = jax.jit(
        functools.partial(clip_forward, params, cfg)
    )(image, token_ids, attn_mask)
    jax.block_until_ready((img_embed, text_embed))

    assert img_embed.shape == (B, cfg["embed_dim"])
    assert text_embed.shape == (B, cfg["embed_dim"])
    assert jnp.all(jnp.isfinite(img_embed)) and jnp.all(jnp.isfinite(text_embed))
    print("KERNEL_OK")
</pallas_src>

<mosaic_0001>
module attributes {stable_mosaic.version = 11 : i64} {
  func.func @_linear_kernel(%arg0: i32, %arg1: i32, %arg2: i32, %arg3: memref<10x32xf32, #tpu.memory_space<vmem>>, %arg4: memref<32x96xbf16, #tpu.memory_space<vmem>>, %arg5: memref<1x96xf32, #tpu.memory_space<vmem>>, %arg6: memref<1x32xf32, #tpu.memory_space<vmem>>, %arg7: memref<1x32xf32, #tpu.memory_space<vmem>>, %arg8: memref<10x96xbf16, #tpu.memory_space<vmem>>, %arg9: memref<10x96xf32, #tpu.memory_space<vmem>>) attributes {dimension_semantics = [#tpu.dimension_semantics<parallel>, #tpu.dimension_semantics<parallel>, #tpu.dimension_semantics<arbitrary>], iteration_bounds = array<i64: 1, 1, 1>, scalar_prefetch = 0 : i64, scratch_operands = 1 : i64, tpu.core_type = #tpu.core_type<tc>, window_params = [{transform_indices = @transform_0, window_bounds = array<i64: 10, 32>}, {transform_indices = @transform_1, window_bounds = array<i64: 32, 96>}, {transform_indices = @transform_2, window_bounds = array<i64: 1, 96>}, {transform_indices = @transform_3, window_bounds = array<i64: 1, 32>}, {transform_indices = @transform_4, window_bounds = array<i64: 1, 32>}, {transform_indices = @transform_5, window_bounds = array<i64: 10, 96>}]} {
    %c0_i32 = arith.constant 0 : i32
    %0 = arith.cmpi eq, %arg2, %c0_i32 : i32
    %1 = arith.extui %0 : i1 to i32
    %c0_i32_0 = arith.constant 0 : i32
    %2 = arith.cmpi ne, %1, %c0_i32_0 : i32
    scf.if %2 {
      %cst_19 = arith.constant 0.000000e+00 : f32
      %37 = vector.broadcast %cst_19 : f32 to vector<10x96xf32>
      %c0_20 = arith.constant 0 : index
      %c0_21 = arith.constant 0 : index
      %38 = vector.load %arg9[%c0_20, %c0_21] : memref<10x96xf32, #tpu.memory_space<vmem>>, vector<10x96xf32>
      tpu.vector_store %arg9[%c0_20, %c0_21], %37 {strides = array<i32>} : memref<10x96xf32, #tpu.memory_space<vmem>>, vector<10x96xf32>,
    } else {
    }
    %c0 = arith.constant 0 : index
    %c0_1 = arith.constant 0 : index
    %3 = vector.load %arg3[%c0, %c0_1] : memref<10x32xf32, #tpu.memory_space<vmem>>, vector<10x32xf32>
    %cst = arith.constant dense<0.000000e+00> : vector<10xf32>
    %4 = vector.multi_reduction <add>, %3, %cst [1] : vector<10x32xf32> to vector<10xf32>
    %5 = vector.shape_cast %4 : vector<10xf32> to vector<10x1xf32>
    %cst_2 = arith.constant 3.200000e+01 : f32
    %6 = vector.broadcast %cst_2 : f32 to vector<10x1xf32>
    %7 = arith.divf %5, %6 : vector<10x1xf32>
    %8 = vector.broadcast %7 : vector<10x1xf32> to vector<10x32xf32>
    %9 = arith.subf %3, %8 : vector<10x32xf32>
    %10 = arith.mulf %9, %9 : vector<10x32xf32>
    %cst_3 = arith.constant dense<0.000000e+00> : vector<10xf32>
    %11 = vector.multi_reduction <add>, %10, %cst_3 [1] : vector<10x32xf32> to vector<10xf32>
    %12 = vector.shape_cast %11 : vector<10xf32> to vector<10x1xf32>
    %cst_4 = arith.constant 3.200000e+01 : f32
    %13 = vector.broadcast %cst_4 : f32 to vector<10x1xf32>
    %14 = arith.divf %12, %13 : vector<10x1xf32>
    %15 = vector.broadcast %7 : vector<10x1xf32> to vector<10x32xf32>
    %16 = arith.subf %3, %15 : vector<10x32xf32>
    %cst_5 = arith.constant 9.99999974E-6 : f32
    %17 = vector.broadcast %cst_5 : f32 to vector<10x1xf32>
    %18 = arith.addf %14, %17 : vector<10x1xf32>
    %19 = math.rsqrt %18 : vector<10x1xf32>
    %20 = vector.broadcast %19 : vector<10x1xf32> to vector<10x32xf32>
    %21 = arith.mulf %16, %20 : vector<10x32xf32>
    %c0_6 = arith.constant 0 : index
    %c0_7 = arith.constant 0 : index
    %22 = vector.load %arg6[%c0_6, %c0_7] : memref<1x32xf32, #tpu.memory_space<vmem>>, vector<1x32xf32>
    %23 = vector.broadcast %22 : vector<1x32xf32> to vector<10x32xf32>
    %24 = arith.mulf %21, %23 : vector<10x32xf32>
    %c0_8 = arith.constant 0 : index
    %c0_9 = arith.constant 0 : index
    %25 = vector.load %arg7[%c0_8, %c0_9] : memref<1x32xf32, #tpu.memory_space<vmem>>, vector<1x32xf32>
    %26 = vector.broadcast %25 : vector<1x32xf32> to vector<10x32xf32>
    %27 = arith.addf %24, %26 : vector<10x32xf32>
    %28 = arith.truncf %27 : vector<10x32xf32> to vector<10x32xbf16>
    %c0_10 = arith.constant 0 : index
    %c0_11 = arith.constant 0 : index
    %29 = vector.load %arg9[%c0_10, %c0_11] : memref<10x96xf32, #tpu.memory_space<vmem>>, vector<10x96xf32>
    %c0_12 = arith.constant 0 : index
    %c0_13 = arith.constant 0 : index
    %30 = vector.load %arg4[%c0_12, %c0_13] : memref<32x96xbf16, #tpu.memory_space<vmem>>, vector<32x96xbf16>
    %cst_14 = arith.constant dense<0.000000e+00> : vector<10x96xf32>
    %31 = tpu.matmul %28, %30, %cst_14 {dimension_numbers = #tpu.dot_dimension_numbers<[1], [0], [0], [1], [0, 0, 1, 1], [], []>} : vector<10x32xbf16>, vector<32x96xbf16>, vector<10x96xf32> -> vector<10x96xf32>
    %32 = arith.addf %29, %31 : vector<10x96xf32>
    %c0_15 = arith.constant 0 : index
    %c0_16 = arith.constant 0 : index
    %33 = vector.load %arg9[%c0_15, %c0_16] : memref<10x96xf32, #tpu.memory_space<vmem>>, vector<10x96xf32>
    tpu.vector_store %arg9[%c0_15, %c0_16], %32 {strides = array<i32>} : memref<10x96xf32, #tpu.memory_space<vmem>>, vector<10x96xf32>,
    %c0_i32_17 = arith.constant 0 : i32
    %34 = arith.cmpi eq, %arg2, %c0_i32_17 : i32
    %35 = arith.extui %34 : i1 to i32
    %c0_i32_18 = arith.constant 0 : i32
    %36 = arith.cmpi ne, %35, %c0_i32_18 : i32
    scf.if %36 {
      %c0_19 = arith.constant 0 : index
      %c0_20 = arith.constant 0 : index
      %37 = vector.load %arg9[%c0_19, %c0_20] : memref<10x96xf32, #tpu.memory_space<vmem>>, vector<10x96xf32>
      %c0_21 = arith.constant 0 : index
      %c0_22 = arith.constant 0 : index
      %38 = vector.load %arg5[%c0_21, %c0_22] : memref<1x96xf32, #tpu.memory_space<vmem>>, vector<1x96xf32>
      %39 = vector.broadcast %38 : vector<1x96xf32> to vector<10x96xf32>
      %40 = arith.addf %37, %39 : vector<10x96xf32>
      %41 = arith.truncf %40 : vector<10x96xf32> to vector<10x96xbf16>
      %c0_23 = arith.constant 0 : index
      %c0_24 = arith.constant 0 : index
      %42 = vector.load %arg8[%c0_23, %c0_24] : memref<10x96xbf16, #tpu.memory_space<vmem>>, vector<10x96xbf16>
      tpu.vector_store %arg8[%c0_23, %c0_24], %41 {strides = array<i32>} : memref<10x96xbf16, #tpu.memory_space<vmem>>, vector<10x96xbf16>,
    } else {
    }
    return
  }
  func.func @transform_0(%arg0: i32, %arg1: i32, %arg2: i32) -> (i32, i32) {
    %c0_i32 = arith.constant 0 : i32
    return %arg0, %arg2 : i32, i32
  }
  func.func @transform_1(%arg0: i32, %arg1: i32, %arg2: i32) -> (i32, i32) {
    %c0_i32 = arith.constant 0 : i32
    return %arg2, %arg1 : i32, i32
  }
  func.func @transform_2(%arg0: i32, %arg1: i32, %arg2: i32) -> (i32, i32) {
    %c0_i32 = arith.constant 0 : i32
    %c0_i32_0 = arith.constant 0 : i32
    return %c0_i32, %arg1 : i32, i32
  }
  func.func @transform_3(%arg0: i32, %arg1: i32, %arg2: i32) -> (i32, i32) {
    %c0_i32 = arith.constant 0 : i32
    %c0_i32_0 = arith.constant 0 : i32
    return %c0_i32, %arg2 : i32, i32
  }
  func.func @transform_4(%arg0: i32, %arg1: i32, %arg2: i32) -> (i32, i32) {
    %c0_i32 = arith.constant 0 : i32
    %c0_i32_0 = arith.constant 0 : i32
    return %c0_i32, %arg2 : i32, i32
  }
  func.func @transform_5(%arg0: i32, %arg1: i32, %arg2: i32) -> (i32, i32) {
    %c0_i32 = arith.constant 0 : i32
    return %arg0, %arg1 : i32, i32
  }
}

module attributes {stable_mosaic.version = 11 : i64} {
  func.func @_attn_kernel(%arg0: i32, %arg1: memref<1x5x96xbf16, #tpu.memory_space<vmem>>, %arg2: memref<1x5x32xbf16, #tpu.memory_space<vmem>>) attributes {dimension_semantics = [#tpu.dimension_semantics<parallel>], iteration_bounds = array<i64: 2>, scalar_prefetch = 0 : i64, scratch_operands = 0 : i64, tpu.core_type = #tpu.core_type<tc>, window_params = [{transform_indices = @transform_0, window_bounds = array<i64: 1, 5, 96>}, {transform_indices = @transform_1, window_bounds = array<i64: 1, 5, 32>}]} {
    %c0 = arith.constant 0 : index
    %c0_0 = arith.constant 0 : index
    %c0_1 = arith.constant 0 : index
    %0 = vector.load %arg1[%c0, %c0_0, %c0_1] : memref<1x5x96xbf16, #tpu.memory_space<vmem>>, vector<1x5x96xbf16>
    %1 = vector.shape_cast %0 : vector<1x5x96xbf16> to vector<5x96xbf16>
    %2 = vector.extract_strided_slice %1 {offsets = [0, 0], sizes = [5, 32], strides = [1, 1]} : vector<5x96xbf16> to vector<5x32xbf16>
    %3 = vector.extract_strided_slice %1 {offsets = [0, 32], sizes = [5, 32], strides = [1, 1]} : vector<5x96xbf16> to vector<5x32xbf16>
    %4 = vector.extract_strided_slice %1 {offsets = [0, 64], sizes = [5, 32], strides = [1, 1]} : vector<5x96xbf16> to vector<5x32xbf16>
    %5 = vector.shape_cast %2 : vector<5x32xbf16> to vector<5x2x16xbf16>
    %6 = vector.shape_cast %3 : vector<5x32xbf16> to vector<5x2x16xbf16>
    %7 = vector.shape_cast %4 : vector<5x32xbf16> to vector<5x2x16xbf16>
    "tpu.trace_start"() <{level = 10 : i32, message = "qhd,khd->hqk"}> : () -> ()
    %cst = arith.constant dense<0.000000e+00> : vector<2x5x5xf32>
    %8 = tpu.matmul %5, %6, %cst {dimension_numbers = #tpu.dot_dimension_numbers<[2], [2], [0], [0], [0, 1, 0, 0, 1, 0], [1], [1]>} : vector<5x2x16xbf16>, vector<5x2x16xbf16>, vector<2x5x5xf32> -> vector<2x5x5xf32>
    "tpu.trace_stop"() : () -> ()
    %cst_2 = arith.constant 2.500000e-01 : f32
    %9 = vector.broadcast %cst_2 : f32 to vector<2x5x5xf32>
    %10 = arith.mulf %8, %9 : vector<2x5x5xf32>
    %cst_3 = arith.constant dense<0xFF800000> : vector<2x5xf32>
    %11 = vector.multi_reduction <maximumf>, %10, %cst_3 [2] : vector<2x5x5xf32> to vector<2x5xf32>
    %12 = vector.shape_cast %11 : vector<2x5xf32> to vector<2x5x1xf32>
    %13 = vector.broadcast %12 : vector<2x5x1xf32> to vector<2x5x5xf32>
    %14 = arith.subf %10, %13 : vector<2x5x5xf32>
    %15 = math.exp %14 : vector<2x5x5xf32>
    %cst_4 = arith.constant dense<0.000000e+00> : vector<2x5xf32>
    %16 = vector.multi_reduction <add>, %15, %cst_4 [2] : vector<2x5x5xf32> to vector<2x5xf32>
    %17 = vector.shape_cast %16 : vector<2x5xf32> to vector<2x5x1xf32>
    %18 = tpu.reciprocal %17 {approx = true} : vector<2x5x1xf32> -> vector<2x5x1xf32>
    %19 = vector.broadcast %18 : vector<2x5x1xf32> to vector<2x5x5xf32>
    %20 = arith.mulf %15, %19 : vector<2x5x5xf32>
    %21 = arith.truncf %20 : vector<2x5x5xf32> to vector<2x5x5xbf16>
    "tpu.trace_start"() <{level = 10 : i32, message = "hqk,khd->qhd"}> : () -> ()
    %cst_5 = arith.constant dense<0.000000e+00> : vector<2x16x5xf32>
    %22 = tpu.matmul %7, %21, %cst_5 {dimension_numbers = #tpu.dot_dimension_numbers<[0], [2], [2], [1], [0, 1, 0, 2, 1, 1], [1], [0]>} : vector<5x2x16xbf16>, vector<2x5x5xbf16>, vector<2x16x5xf32> -> vector<2x16x5xf32>
    %23 = tpu.transpose %22, [2, 0, 1] : vector<2x16x5xf32> -> vector<5x2x16xf32>
    "tpu.trace_stop"() : () -> ()
    %24 = vector.shape_cast %23 : vector<5x2x16xf32> to vector<5x32xf32>
    %25 = arith.truncf %24 : vector<5x32xf32> to vector<5x32xbf16>
    %c0_6 = arith.constant 0 : index
    %c0_7 = arith.constant 0 : index
    %c0_8 = arith.constant 0 : index
    %26 = vector.load %arg2[%c0_6, %c0_7, %c0_8] : memref<1x5x32xbf16, #tpu.memory_space<vmem>>, vector<1x5x32xbf16>
    %27 = vector.shape_cast %26 : vector<1x5x32xbf16> to vector<5x32xbf16>
    %28 = vector.shape_cast %25 : vector<5x32xbf16> to vector<1x5x32xbf16>
    tpu.vector_store %arg2[%c0_6, %c0_7, %c0_8], %28 {strides = array<i32>} : memref<1x5x32xbf16, #tpu.memory_space<vmem>>, vector<1x5x32xbf16>,
    return
  }
  func.func @transform_0(%arg0: i32) -> (i32, i32, i32) {
    %c0_i32 = arith.constant 0 : i32
    %c0_i32_0 = arith.constant 0 : i32
    %c0_i32_1 = arith.constant 0 : i32
    return %arg0, %c0_i32, %c0_i32_0 : i32, i32, i32
  }
  func.func @transform_1(%arg0: i32) -> (i32, i32, i32) {
    %c0_i32 = arith.constant 0 : i32
    %c0_i32_0 = arith.constant 0 : i32
    %c0_i32_1 = arith.constant 0 : i32
    return %arg0, %c0_i32, %c0_i32_0 : i32, i32, i32
  }
}

module attributes {stable_mosaic.version = 11 : i64} {
  func.func @_linear_kernel(%arg0: i32, %arg1: i32, %arg2: i32, %arg3: memref<8x192xbf16, #tpu.memory_space<vmem>>, %arg4: memref<192x32xbf16, #tpu.memory_space<vmem>>, %arg5: memref<1x32xf32, #tpu.memory_space<vmem>>, %arg6: memref<8x32xf32, #tpu.memory_space<vmem>>, %arg7: memref<8x32xf32, #tpu.memory_space<vmem>>) attributes {dimension_semantics = [#tpu.dimension_semantics<parallel>, #tpu.dimension_semantics<parallel>, #tpu.dimension_semantics<arbitrary>], iteration_bounds = array<i64: 1, 1, 1>, scalar_prefetch = 0 : i64, scratch_operands = 1 : i64, tpu.core_type = #tpu.core_type<tc>, window_params = [{transform_indices = @transform_0, window_bounds = array<i64: 8, 192>}, {transform_indices = @transform_1, window_bounds = array<i64: 192, 32>}, {transform_indices = @transform_2, window_bounds = array<i64: 1, 32>}, {transform_indices = @transform_3, window_bounds = array<i64: 8, 32>}]} {
    %c0_i32 = arith.constant 0 : i32
    %0 = arith.cmpi eq, %arg2, %c0_i32 : i32
    %1 = arith.extui %0 : i1 to i32
    %c0_i32_0 = arith.constant 0 : i32
    %2 = arith.cmpi ne, %1, %c0_i32_0 : i32
    scf.if %2 {
      %cst_10 = arith.constant 0.000000e+00 : f32
      %12 = vector.broadcast %cst_10 : f32 to vector<8x32xf32>
      %c0_11 = arith.constant 0 : index
      %c0_12 = arith.constant 0 : index
      %13 = vector.load %arg7[%c0_11, %c0_12] : memref<8x32xf32, #tpu.memory_space<vmem>>, vector<8x32xf32>
      tpu.vector_store %arg7[%c0_11, %c0_12], %12 {strides = array<i32>} : memref<8x32xf32, #tpu.memory_space<vmem>>, vector<8x32xf32>,
    } else {
    }
    %c0 = arith.constant 0 : index
    %c0_1 = arith.constant 0 : index
    %3 = vector.load %arg3[%c0, %c0_1] : memref<8x192xbf16, #tpu.memory_space<vmem>>, vector<8x192xbf16>
    %c0_2 = arith.constant 0 : index
    %c0_3 = arith.constant 0 : index
    %4 = vector.load %arg7[%c0_2, %c0_3] : memref<8x32xf32, #tpu.memory_space<vmem>>, vector<8x32xf32>
    %c0_4 = arith.constant 0 : index
    %c0_5 = arith.constant 0 : index
    %5 = vector.load %arg4[%c0_4, %c0_5] : memref<192x32xbf16, #tpu.memory_space<vmem>>, vector<192x32xbf16>
    %cst = arith.constant dense<0.000000e+00> : vector<8x32xf32>
    %6 = tpu.matmul %3, %5, %cst {dimension_numbers = #tpu.dot_dimension_numbers<[1], [0], [0], [1], [0, 0, 1, 1], [], []>} : vector<8x192xbf16>, vector<192x32xbf16>, vector<8x32xf32> -> vector<8x32xf32>
    %7 = arith.addf %4, %6 : vector<8x32xf32>
    %c0_6 = arith.constant 0 : index
    %c0_7 = arith.constant 0 : index
    %8 = vector.load %arg7[%c0_6, %c0_7] : memref<8x32xf32, #tpu.memory_space<vmem>>, vector<8x32xf32>
    tpu.vector_store %arg7[%c0_6, %c0_7], %7 {strides = array<i32>} : memref<8x32xf32, #tpu.memory_space<vmem>>, vector<8x32xf32>,
    %c0_i32_8 = arith.constant 0 : i32
    %9 = arith.cmpi eq, %arg2, %c0_i32_8 : i32
    %10 = arith.extui %9 : i1 to i32
    %c0_i32_9 = arith.constant 0 : i32
    %11 = arith.cmpi ne, %10, %c0_i32_9 : i32
    scf.if %11 {
      %c0_10 = arith.constant 0 : index
      %c0_11 = arith.constant 0 : index
      %12 = vector.load %arg7[%c0_10, %c0_11] : memref<8x32xf32, #tpu.memory_space<vmem>>, vector<8x32xf32>
      %c0_12 = arith.constant 0 : index
      %c0_13 = arith.constant 0 : index
      %13 = vector.load %arg5[%c0_12, %c0_13] : memref<1x32xf32, #tpu.memory_space<vmem>>, vector<1x32xf32>
      %14 = vector.broadcast %13 : vector<1x32xf32> to vector<8x32xf32>
      %15 = arith.addf %12, %14 : vector<8x32xf32>
      %c0_14 = arith.constant 0 : index
      %c0_15 = arith.constant 0 : index
      %16 = vector.load %arg6[%c0_14, %c0_15] : memref<8x32xf32, #tpu.memory_space<vmem>>, vector<8x32xf32>
      tpu.vector_store %arg6[%c0_14, %c0_15], %15 {strides = array<i32>} : memref<8x32xf32, #tpu.memory_space<vmem>>, vector<8x32xf32>,
    } else {
    }
    return
  }
  func.func @transform_0(%arg0: i32, %arg1: i32, %arg2: i32) -> (i32, i32) {
    %c0_i32 = arith.constant 0 : i32
    return %arg0, %arg2 : i32, i32
  }
  func.func @transform_1(%arg0: i32, %arg1: i32, %arg2: i32) -> (i32, i32) {
    %c0_i32 = arith.constant 0 : i32
    return %arg2, %arg1 : i32, i32
  }
  func.func @transform_2(%arg0: i32, %arg1: i32, %arg2: i32) -> (i32, i32) {
    %c0_i32 = arith.constant 0 : i32
    %c0_i32_0 = arith.constant 0 : i32
    return %c0_i32, %arg1 : i32, i32
  }
  func.func @transform_3(%arg0: i32, %arg1: i32, %arg2: i32) -> (i32, i32) {
    %c0_i32 = arith.constant 0 : i32
    return %arg0, %arg1 : i32, i32
  }
}

module attributes {stable_mosaic.version = 11 : i64} {
  func.func @_linear_kernel(%arg0: i32, %arg1: i32, %arg2: i32, %arg3: memref<10x32xbf16, #tpu.memory_space<vmem>>, %arg4: memref<32x32xbf16, #tpu.memory_space<vmem>>, %arg5: memref<1x32xf32, #tpu.memory_space<vmem>>, %arg6: memref<10x32xf32, #tpu.memory_space<vmem>>, %arg7: memref<10x32xf32, #tpu.memory_space<vmem>>, %arg8: memref<10x32xf32, #tpu.memory_space<vmem>>) attributes {dimension_semantics = [#tpu.dimension_semantics<parallel>, #tpu.dimension_semantics<parallel>, #tpu.dimension_semantics<arbitrary>], iteration_bounds = array<i64: 1, 1, 1>, scalar_prefetch = 0 : i64, scratch_operands = 1 : i64, tpu.core_type = #tpu.core_type<tc>, window_params = [{transform_indices = @transform_0, window_bounds = array<i64: 10, 32>}, {transform_indices = @transform_1, window_bounds = array<i64: 32, 32>}, {transform_indices = @transform_2, window_bounds = array<i64: 1, 32>}, {transform_indices = @transform_3, window_bounds = array<i64: 10, 32>}, {transform_indices = @transform_4, window_bounds = array<i64: 10, 32>}]} {
    %c0_i32 = arith.constant 0 : i32
    %0 = arith.cmpi eq, %arg2, %c0_i32 : i32
    %1 = arith.extui %0 : i1 to i32
    %c0_i32_0 = arith.constant 0 : i32
    %2 = arith.cmpi ne, %1, %c0_i32_0 : i32
    scf.if %2 {
      %cst_10 = arith.constant 0.000000e+00 : f32
      %12 = vector.broadcast %cst_10 : f32 to vector<10x32xf32>
      %c0_11 = arith.constant 0 : index
      %c0_12 = arith.constant 0 : index
      %13 = vector.load %arg8[%c0_11, %c0_12] : memref<10x32xf32, #tpu.memory_space<vmem>>, vector<10x32xf32>
      tpu.vector_store %arg8[%c0_11, %c0_12], %12 {strides = array<i32>} : memref<10x32xf32, #tpu.memory_space<vmem>>, vector<10x32xf32>,
    } else {
    }
    %c0 = arith.constant 0 : index
    %c0_1 = arith.constant 0 : index
    %3 = vector.load %arg3[%c0, %c0_1] : memref<10x32xbf16, #tpu.memory_space<vmem>>, vector<10x32xbf16>
    %c0_2 = arith.constant 0 : index
    %c0_3 = arith.constant 0 : index
    %4 = vector.load %arg8[%c0_2, %c0_3] : memref<10x32xf32, #tpu.memory_space<vmem>>, vector<10x32xf32>
    %c0_4 = arith.constant 0 : index
    %c0_5 = arith.constant 0 : index
    %5 = vector.load %arg4[%c0_4, %c0_5] : memref<32x32xbf16, #tpu.memory_space<vmem>>, vector<32x32xbf16>
    %cst = arith.constant dense<0.000000e+00> : vector<10x32xf32>
    %6 = tpu.matmul %3, %5, %cst {dimension_numbers = #tpu.dot_dimension_numbers<[1], [0], [0], [1], [0, 0, 1, 1], [], []>} : vector<10x32xbf16>, vector<32x32xbf16>, vector<10x32xf32> -> vector<10x32xf32>
    %7 = arith.addf %4, %6 : vector<10x32xf32>
    %c0_6 = arith.constant 0 : index
    %c0_7 = arith.constant 0 : index
    %8 = vector.load %arg8[%c0_6, %c0_7] : memref<10x32xf32, #tpu.memory_space<vmem>>, vector<10x32xf32>
    tpu.vector_store %arg8[%c0_6, %c0_7], %7 {strides = array<i32>} : memref<10x32xf32, #tpu.memory_space<vmem>>, vector<10x32xf32>,
    %c0_i32_8 = arith.constant 0 : i32
    %9 = arith.cmpi eq, %arg2, %c0_i32_8 : i32
    %10 = arith.extui %9 : i1 to i32
    %c0_i32_9 = arith.constant 0 : i32
    %11 = arith.cmpi ne, %10, %c0_i32_9 : i32
    scf.if %11 {
      %c0_10 = arith.constant 0 : index
      %c0_11 = arith.constant 0 : index
      %12 = vector.load %arg8[%c0_10, %c0_11] : memref<10x32xf32, #tpu.memory_space<vmem>>, vector<10x32xf32>
      %c0_12 = arith.constant 0 : index
      %c0_13 = arith.constant 0 : index
      %13 = vector.load %arg5[%c0_12, %c0_13] : memref<1x32xf32, #tpu.memory_space<vmem>>, vector<1x32xf32>
      %14 = vector.broadcast %13 : vector<1x32xf32> to vector<10x32xf32>
      %15 = arith.addf %12, %14 : vector<10x32xf32>
      %c0_14 = arith.constant 0 : index
      %c0_15 = arith.constant 0 : index
      %16 = vector.load %arg6[%c0_14, %c0_15] : memref<10x32xf32, #tpu.memory_space<vmem>>, vector<10x32xf32>
      %17 = arith.addf %15, %16 : vector<10x32xf32>
      %c0_16 = arith.constant 0 : index
      %c0_17 = arith.constant 0 : index
      %18 = vector.load %arg7[%c0_16, %c0_17] : memref<10x32xf32, #tpu.memory_space<vmem>>, vector<10x32xf32>
      tpu.vector_store %arg7[%c0_16, %c0_17], %17 {strides = array<i32>} : memref<10x32xf32, #tpu.memory_space<vmem>>, vector<10x32xf32>,
    } else {
    }
    return
  }
  func.func @transform_0(%arg0: i32, %arg1: i32, %arg2: i32) -> (i32, i32) {
    %c0_i32 = arith.constant 0 : i32
    return %arg0, %arg2 : i32, i32
  }
  func.func @transform_1(%arg0: i32, %arg1: i32, %arg2: i32) -> (i32, i32) {
    %c0_i32 = arith.constant 0 : i32
    return %arg2, %arg1 : i32, i32
  }
  func.func @transform_2(%arg0: i32, %arg1: i32, %arg2: i32) -> (i32, i32) {
    %c0_i32 = arith.constant 0 : i32
    %c0_i32_0 = arith.constant 0 : i32
    return %c0_i32, %arg1 : i32, i32
  }
  func.func @transform_3(%arg0: i32, %arg1: i32, %arg2: i32) -> (i32, i32) {
    %c0_i32 = arith.constant 0 : i32
    return %arg0, %arg1 : i32, i32
  }
  func.func @transform_4(%arg0: i32, %arg1: i32, %arg2: i32) -> (i32, i32) {
    %c0_i32 = arith.constant 0 : i32
    return %arg0, %arg1 : i32, i32
  }
}

module attributes {stable_mosaic.version = 11 : i64} {
  func.func @_linear_kernel(%arg0: i32, %arg1: i32, %arg2: i32, %arg3: memref<10x32xf32, #tpu.memory_space<vmem>>, %arg4: memref<32x64xbf16, #tpu.memory_space<vmem>>, %arg5: memref<1x64xf32, #tpu.memory_space<vmem>>, %arg6: memref<1x32xf32, #tpu.memory_space<vmem>>, %arg7: memref<1x32xf32, #tpu.memory_space<vmem>>, %arg8: memref<10x64xbf16, #tpu.memory_space<vmem>>, %arg9: memref<10x64xf32, #tpu.memory_space<vmem>>) attributes {dimension_semantics = [#tpu.dimension_semantics<parallel>, #tpu.dimension_semantics<parallel>, #tpu.dimension_semantics<arbitrary>], iteration_bounds = array<i64: 1, 1, 1>, scalar_prefetch = 0 : i64, scratch_operands = 1 : i64, tpu.core_type = #tpu.core_type<tc>, window_params = [{transform_indices = @transform_0, window_bounds = array<i64: 10, 32>}, {transform_indices = @transform_1, window_bounds = array<i64: 32, 64>}, {transform_indices = @transform_2, window_bounds = array<i64: 1, 64>}, {transform_indices = @transform_3, window_bounds = array<i64: 1, 32>}, {transform_indices = @transform_4, window_bounds = array<i64: 1, 32>}, {transform_indices = @transform_5, window_bounds = array<i64: 10, 64>}]} {
    %c0_i32 = arith.constant 0 : i32
    %0 = arith.cmpi eq, %arg2, %c0_i32 : i32
    %1 = arith.extui %0 : i1 to i32
    %c0_i32_0 = arith.constant 0 : i32
    %2 = arith.cmpi ne, %1, %c0_i32_0 : i32
    scf.if %2 {
      %cst_19 = arith.constant 0.000000e+00 : f32
      %37 = vector.broadcast %cst_19 : f32 to vector<10x64xf32>
      %c0_20 = arith.constant 0 : index
      %c0_21 = arith.constant 0 : index
      %38 = vector.load %arg9[%c0_20, %c0_21] : memref<10x64xf32, #tpu.memory_space<vmem>>, vector<10x64xf32>
      tpu.vector_store %arg9[%c0_20, %c0_21], %37 {strides = array<i32>} : memref<10x64xf32, #tpu.memory_space<vmem>>, vector<10x64xf32>,
    } else {
    }
    %c0 = arith.constant 0 : index
    %c0_1 = arith.constant 0 : index
    %3 = vector.load %arg3[%c0, %c0_1] : memref<10x32xf32, #tpu.memory_space<vmem>>, vector<10x32xf32>
    %cst = arith.constant dense<0.000000e+00> : vector<10xf32>
    %4 = vector.multi_reduction <add>, %3, %cst [1] : vector<10x32xf32> to vector<10xf32>
    %5 = vector.shape_cast %4 : vector<10xf32> to vector<10x1xf32>
    %cst_2 = arith.constant 3.200000e+01 : f32
    %6 = vector.broadcast %cst_2 : f32 to vector<10x1xf32>
    %7 = arith.divf %5, %6 : vector<10x1xf32>
    %8 = vector.broadcast %7 : vector<10x1xf32> to vector<10x32xf32>
    %9 = arith.subf %3, %8 : vector<10x32xf32>
    %10 = arith.mulf %9, %9 : vector<10x32xf32>
    %cst_3 = arith.constant dense<0.000000e+00> : vector<10xf32>
    %11 = vector.multi_reduction <add>, %10, %cst_3 [1] : vector<10x32xf32> to vector<10xf32>
    %12 = vector.shape_cast %11 : vector<10xf32> to vector<10x1xf32>
    %cst_4 = arith.constant 3.200000e+01 : f32
    %13 = vector.broadcast %cst_4 : f32 to vector<10x1xf32>
    %14 = arith.divf %12, %13 : vector<10x1xf32>
    %15 = vector.broadcast %7 : vector<10x1xf32> to vector<10x32xf32>
    %16 = arith.subf %3, %15 : vector<10x32xf32>
    %cst_5 = arith.constant 9.99999974E-6 : f32
    %17 = vector.broadcast %cst_5 : f32 to vector<10x1xf32>
    %18 = arith.addf %14, %17 : vector<10x1xf32>
    %19 = math.rsqrt %18 : vector<10x1xf32>
    %20 = vector.broadcast %19 : vector<10x1xf32> to vector<10x32xf32>
    %21 = arith.mulf %16, %20 : vector<10x32xf32>
    %c0_6 = arith.constant 0 : index
    %c0_7 = arith.constant 0 : index
    %22 = vector.load %arg6[%c0_6, %c0_7] : memref<1x32xf32, #tpu.memory_space<vmem>>, vector<1x32xf32>
    %23 = vector.broadcast %22 : vector<1x32xf32> to vector<10x32xf32>
    %24 = arith.mulf %21, %23 : vector<10x32xf32>
    %c0_8 = arith.constant 0 : index
    %c0_9 = arith.constant 0 : index
    %25 = vector.load %arg7[%c0_8, %c0_9] : memref<1x32xf32, #tpu.memory_space<vmem>>, vector<1x32xf32>
    %26 = vector.broadcast %25 : vector<1x32xf32> to vector<10x32xf32>
    %27 = arith.addf %24, %26 : vector<10x32xf32>
    %28 = arith.truncf %27 : vector<10x32xf32> to vector<10x32xbf16>
    %c0_10 = arith.constant 0 : index
    %c0_11 = arith.constant 0 : index
    %29 = vector.load %arg9[%c0_10, %c0_11] : memref<10x64xf32, #tpu.memory_space<vmem>>, vector<10x64xf32>
    %c0_12 = arith.constant 0 : index
    %c0_13 = arith.constant 0 : index
    %30 = vector.load %arg4[%c0_12, %c0_13] : memref<32x64xbf16, #tpu.memory_space<vmem>>, vector<32x64xbf16>
    %cst_14 = arith.constant dense<0.000000e+00> : vector<10x64xf32>
    %31 = tpu.matmul %28, %30, %cst_14 {dimension_numbers = #tpu.dot_dimension_numbers<[1], [0], [0], [1], [0, 0, 1, 1], [], []>} : vector<10x32xbf16>, vector<32x64xbf16>, vector<10x64xf32> -> vector<10x64xf32>
    %32 = arith.addf %29, %31 : vector<10x64xf32>
    %c0_15 = arith.constant 0 : index
    %c0_16 = arith.constant 0 : index
    %33 = vector.load %arg9[%c0_15, %c0_16] : memref<10x64xf32, #tpu.memory_space<vmem>>, vector<10x64xf32>
    tpu.vector_store %arg9[%c0_15, %c0_16], %32 {strides = array<i32>} : memref<10x64xf32, #tpu.memory_space<vmem>>, vector<10x64xf32>,
    %c0_i32_17 = arith.constant 0 : i32
    %34 = arith.cmpi eq, %arg2, %c0_i32_17 : i32
    %35 = arith.extui %34 : i1 to i32
    %c0_i32_18 = arith.constant 0 : i32
    %36 = arith.cmpi ne, %35, %c0_i32_18 : i32
    scf.if %36 {
      %c0_19 = arith.constant 0 : index
      %c0_20 = arith.constant 0 : index
      %37 = vector.load %arg9[%c0_19, %c0_20] : memref<10x64xf32, #tpu.memory_space<vmem>>, vector<10x64xf32>
      %c0_21 = arith.constant 0 : index
      %c0_22 = arith.constant 0 : index
      %38 = vector.load %arg5[%c0_21, %c0_22] : memref<1x64xf32, #tpu.memory_space<vmem>>, vector<1x64xf32>
      %39 = vector.broadcast %38 : vector<1x64xf32> to vector<10x64xf32>
      %40 = arith.addf %37, %39 : vector<10x64xf32>
      %41 = arith.mulf %40, %40 : vector<10x64xf32>
      %42 = arith.mulf %40, %41 : vector<10x64xf32>
      %cst_23 = arith.constant 4.471500e-02 : f32
      %43 = vector.broadcast %cst_23 : f32 to vector<10x64xf32>
      %44 = arith.mulf %43, %42 : vector<10x64xf32>
      %45 = arith.addf %40, %44 : vector<10x64xf32>
      %cst_24 = arith.constant 0.797884583 : f32
      %46 = vector.broadcast %cst_24 : f32 to vector<10x64xf32>
      %47 = arith.mulf %46, %45 : vector<10x64xf32>
      %48 = math.tanh %47 : vector<10x64xf32>
      %cst_25 = arith.constant 1.000000e+00 : f32
      %49 = vector.broadcast %cst_25 : f32 to vector<10x64xf32>
      %50 = arith.addf %49, %48 : vector<10x64xf32>
      %cst_26 = arith.constant 5.000000e-01 : f32
      %51 = vector.broadcast %cst_26 : f32 to vector<10x64xf32>
      %52 = arith.mulf %51, %50 : vector<10x64xf32>
      %53 = arith.mulf %40, %52 : vector<10x64xf32>
      %54 = arith.truncf %53 : vector<10x64xf32> to vector<10x64xbf16>
      %c0_27 = arith.constant 0 : index
      %c0_28 = arith.constant 0 : index
      %55 = vector.load %arg8[%c0_27, %c0_28] : memref<10x64xbf16, #tpu.memory_space<vmem>>, vector<10x64xbf16>
      tpu.vector_store %arg8[%c0_27, %c0_28], %54 {strides = array<i32>} : memref<10x64xbf16, #tpu.memory_space<vmem>>, vector<10x64xbf16>,
    } else {
    }
    return
  }
  func.func @transform_0(%arg0: i32, %arg1: i32, %arg2: i32) -> (i32, i32) {
    %c0_i32 = arith.constant 0 : i32
    return %arg0, %arg2 : i32, i32
  }
  func.func @transform_1(%arg0: i32, %arg1: i32, %arg2: i32) -> (i32, i32) {
    %c0_i32 = arith.constant 0 : i32
    return %arg2, %arg1 : i32, i32
  }
  func.func @transform_2(%arg0: i32, %arg1: i32, %arg2: i32) -> (i32, i32) {
    %c0_i32 = arith.constant 0 : i32
    %c0_i32_0 = arith.constant 0 : i32
    return %c0_i32, %arg1 : i32, i32
  }
  func.func @transform_3(%arg0: i32, %arg1: i32, %arg2: i32) -> (i32, i32) {
    %c0_i32 = arith.constant 0 : i32
    %c0_i32_0 = arith.constant 0 : i32
    return %c0_i32, %arg2 : i32, i32
  }
  func.func @transform_4(%arg0: i32, %arg1: i32, %arg2: i32) -> (i32, i32) {
    %c0_i32 = arith.constant 0 : i32
    %c0_i32_0 = arith.constant 0 : i32
    return %c0_i32, %arg2 : i32, i32
  }
  func.func @transform_5(%arg0: i32, %arg1: i32, %arg2: i32) -> (i32, i32) {
    %c0_i32 = arith.constant 0 : i32
    return %arg0, %arg1 : i32, i32
  }
}

module attributes {stable_mosaic.version = 11 : i64} {
  func.func @_linear_kernel(%arg0: i32, %arg1: i32, %arg2: i32, %arg3: memref<2x32xf32, #tpu.memory_space<vmem>>, %arg4: memref<32x16xbf16, #tpu.memory_space<vmem>>, %arg5: memref<1x16xf32, #tpu.memory_space<vmem>>, %arg6: memref<1x32xf32, #tpu.memory_space<vmem>>, %arg7: memref<1x32xf32, #tpu.memory_space<vmem>>, %arg8: memref<2x16xf32, #tpu.memory_space<vmem>>, %arg9: memref<2x16xf32, #tpu.memory_space<vmem>>) attributes {dimension_semantics = [#tpu.dimension_semantics<parallel>, #tpu.dimension_semantics<parallel>, #tpu.dimension_semantics<arbitrary>], iteration_bounds = array<i64: 1, 1, 1>, scalar_prefetch = 0 : i64, scratch_operands = 1 : i64, tpu.core_type = #tpu.core_type<tc>, window_params = [{transform_indices = @transform_0, window_bounds = array<i64: 2, 32>}, {transform_indices = @transform_1, window_bounds = array<i64: 32, 16>}, {transform_indices = @transform_2, window_bounds = array<i64: 1, 16>}, {transform_indices = @transform_3, window_bounds = array<i64: 1, 32>}, {transform_indices = @transform_4, window_bounds = array<i64: 1, 32>}, {transform_indices = @transform_5, window_bounds = array<i64: 2, 16>}]} {
    %c0_i32 = arith.constant 0 : i32
    %0 = arith.cmpi eq, %arg2, %c0_i32 : i32
    %1 = arith.extui %0 : i1 to i32
    %c0_i32_0 = arith.constant 0 : i32
    %2 = arith.cmpi ne, %1, %c0_i32_0 : i32
    scf.if %2 {
      %cst_19 = arith.constant 0.000000e+00 : f32
      %37 = vector.broadcast %cst_19 : f32 to vector<2x16xf32>
      %c0_20 = arith.constant 0 : index
      %c0_21 = arith.constant 0 : index
      %38 = vector.load %arg9[%c0_20, %c0_21] : memref<2x16xf32, #tpu.memory_space<vmem>>, vector<2x16xf32>
      tpu.vector_store %arg9[%c0_20, %c0_21], %37 {strides = array<i32>} : memref<2x16xf32, #tpu.memory_space<vmem>>, vector<2x16xf32>,
    } else {
    }
    %c0 = arith.constant 0 : index
    %c0_1 = arith.constant 0 : index
    %3 = vector.load %arg3[%c0, %c0_1] : memref<2x32xf32, #tpu.memory_space<vmem>>, vector<2x32xf32>
    %cst = arith.constant dense<0.000000e+00> : vector<2xf32>
    %4 = vector.multi_reduction <add>, %3, %cst [1] : vector<2x32xf32> to vector<2xf32>
    %5 = vector.shape_cast %4 : vector<2xf32> to vector<2x1xf32>
    %cst_2 = arith.constant 3.200000e+01 : f32
    %6 = vector.broadcast %cst_2 : f32 to vector<2x1xf32>
    %7 = arith.divf %5, %6 : vector<2x1xf32>
    %8 = vector.broadcast %7 : vector<2x1xf32> to vector<2x32xf32>
    %9 = arith.subf %3, %8 : vector<2x32xf32>
    %10 = arith.mulf %9, %9 : vector<2x32xf32>
    %cst_3 = arith.constant dense<0.000000e+00> : vector<2xf32>
    %11 = vector.multi_reduction <add>, %10, %cst_3 [1] : vector<2x32xf32> to vector<2xf32>
    %12 = vector.shape_cast %11 : vector<2xf32> to vector<2x1xf32>
    %cst_4 = arith.constant 3.200000e+01 : f32
    %13 = vector.broadcast %cst_4 : f32 to vector<2x1xf32>
    %14 = arith.divf %12, %13 : vector<2x1xf32>
    %15 = vector.broadcast %7 : vector<2x1xf32> to vector<2x32xf32>
    %16 = arith.subf %3, %15 : vector<2x32xf32>
    %cst_5 = arith.constant 9.99999974E-6 : f32
    %17 = vector.broadcast %cst_5 : f32 to vector<2x1xf32>
    %18 = arith.addf %14, %17 : vector<2x1xf32>
    %19 = math.rsqrt %18 : vector<2x1xf32>
    %20 = vector.broadcast %19 : vector<2x1xf32> to vector<2x32xf32>
    %21 = arith.mulf %16, %20 : vector<2x32xf32>
    %c0_6 = arith.constant 0 : index
    %c0_7 = arith.constant 0 : index
    %22 = vector.load %arg6[%c0_6, %c0_7] : memref<1x32xf32, #tpu.memory_space<vmem>>, vector<1x32xf32>
    %23 = vector.broadcast %22 : vector<1x32xf32> to vector<2x32xf32>
    %24 = arith.mulf %21, %23 : vector<2x32xf32>
    %c0_8 = arith.constant 0 : index
    %c0_9 = arith.constant 0 : index
    %25 = vector.load %arg7[%c0_8, %c0_9] : memref<1x32xf32, #tpu.memory_space<vmem>>, vector<1x32xf32>
    %26 = vector.broadcast %25 : vector<1x32xf32> to vector<2x32xf32>
    %27 = arith.addf %24, %26 : vector<2x32xf32>
    %28 = arith.truncf %27 : vector<2x32xf32> to vector<2x32xbf16>
    %c0_10 = arith.constant 0 : index
    %c0_11 = arith.constant 0 : index
    %29 = vector.load %arg9[%c0_10, %c0_11] : memref<2x16xf32, #tpu.memory_space<vmem>>, vector<2x16xf32>
    %c0_12 = arith.constant 0 : index
    %c0_13 = arith.constant 0 : index
    %30 = vector.load %arg4[%c0_12, %c0_13] : memref<32x16xbf16, #tpu.memory_space<vmem>>, vector<32x16xbf16>
    %cst_14 = arith.constant dense<0.000000e+00> : vector<2x16xf32>
    %31 = tpu.matmul %28, %30, %cst_14 {dimension_numbers = #tpu.dot_dimension_numbers<[1], [0], [0], [1], [0, 0, 1, 1], [], []>} : vector<2x32xbf16>, vector<32x16xbf16>, vector<2x16xf32> -> vector<2x16xf32>
    %32 = arith.addf %29, %31 : vector<2x16xf32>
    %c0_15 = arith.constant 0 : index
    %c0_16 = arith.constant 0 : index
    %33 = vector.load %arg9[%c0_15, %c0_16] : memref<2x16xf32, #tpu.memory_space<vmem>>, vector<2x16xf32>
    tpu.vector_store %arg9[%c0_15, %c0_16], %32 {strides = array<i32>} : memref<2x16xf32, #tpu.memory_space<vmem>>, vector<2x16xf32>,
    %c0_i32_17 = arith.constant 0 : i32
    %34 = arith.cmpi eq, %arg2, %c0_i32_17 : i32
    %35 = arith.extui %34 : i1 to i32
    %c0_i32_18 = arith.constant 0 : i32
    %36 = arith.cmpi ne, %35, %c0_i32_18 : i32
    scf.if %36 {
      %c0_19 = arith.constant 0 : index
      %c0_20 = arith.constant 0 : index
      %37 = vector.load %arg9[%c0_19, %c0_20] : memref<2x16xf32, #tpu.memory_space<vmem>>, vector<2x16xf32>
      %c0_21 = arith.constant 0 : index
      %c0_22 = arith.constant 0 : index
      %38 = vector.load %arg5[%c0_21, %c0_22] : memref<1x16xf32, #tpu.memory_space<vmem>>, vector<1x16xf32>
      %39 = vector.broadcast %38 : vector<1x16xf32> to vector<2x16xf32>
      %40 = arith.addf %37, %39 : vector<2x16xf32>
      %c0_23 = arith.constant 0 : index
      %c0_24 = arith.constant 0 : index
      %41 = vector.load %arg8[%c0_23, %c0_24] : memref<2x16xf32, #tpu.memory_space<vmem>>, vector<2x16xf32>
      tpu.vector_store %arg8[%c0_23, %c0_24], %40 {strides = array<i32>} : memref<2x16xf32, #tpu.memory_space<vmem>>, vector<2x16xf32>,
    } else {
    }
    return
  }
  func.func @transform_0(%arg0: i32, %arg1: i32, %arg2: i32) -> (i32, i32) {
    %c0_i32 = arith.constant 0 : i32
    return %arg0, %arg2 : i32, i32
  }
  func.func @transform_1(%arg0: i32, %arg1: i32, %arg2: i32) -> (i32, i32) {
    %c0_i32 = arith.constant 0 : i32
    return %arg2, %arg1 : i32, i32
  }
  func.func @transform_2(%arg0: i32, %arg1: i32, %arg2: i32) -> (i32, i32) {
    %c0_i32 = arith.constant 0 : i32
    %c0_i32_0 = arith.constant 0 : i32
    return %c0_i32, %arg1 : i32, i32
  }
  func.func @transform_3(%arg0: i32, %arg1: i32, %arg2: i32) -> (i32, i32) {
    %c0_i32 = arith.constant 0 : i32
    %c0_i32_0 = arith.constant 0 : i32
    return %c0_i32, %arg2 : i32, i32
  }
  func.func @transform_4(%arg0: i32, %arg1: i32, %arg2: i32) -> (i32, i32) {
    %c0_i32 = arith.constant 0 : i32
    %c0_i32_0 = arith.constant 0 : i32
    return %c0_i32, %arg2 : i32, i32
  }
  func.func @transform_5(%arg0: i32, %arg1: i32, %arg2: i32) -> (i32, i32) {
    %c0_i32 = arith.constant 0 : i32
    return %arg0, %arg1 : i32, i32
  }
}

module attributes {stable_mosaic.version = 11 : i64} {
  func.func @_linear_kernel(%arg0: i32, %arg1: i32, %arg2: i32, %arg3: memref<10x64xbf16, #tpu.memory_space<vmem>>, %arg4: memref<64x32xbf16, #tpu.memory_space<vmem>>, %arg5: memref<1x32xf32, #tpu.memory_space<vmem>>, %arg6: memref<10x32xf32, #tpu.memory_space<vmem>>, %arg7: memref<10x32xf32, #tpu.memory_space<vmem>>, %arg8: memref<10x32xf32, #tpu.memory_space<vmem>>) attributes {dimension_semantics = [#tpu.dimension_semantics<parallel>, #tpu.dimension_semantics<parallel>, #tpu.dimension_semantics<arbitrary>], iteration_bounds = array<i64: 1, 1, 1>, scalar_prefetch = 0 : i64, scratch_operands = 1 : i64, tpu.core_type = #tpu.core_type<tc>, window_params = [{transform_indices = @transform_0, window_bounds = array<i64: 10, 64>}, {transform_indices = @transform_1, window_bounds = array<i64: 64, 32>}, {transform_indices = @transform_2, window_bounds = array<i64: 1, 32>}, {transform_indices = @transform_3, window_bounds = array<i64: 10, 32>}, {transform_indices = @transform_4, window_bounds = array<i64: 10, 32>}]} {
    %c0_i32 = arith.constant 0 : i32
    %0 = arith.cmpi eq, %arg2, %c0_i32 : i32
    %1 = arith.extui %0 : i1 to i32
    %c0_i32_0 = arith.constant 0 : i32
    %2 = arith.cmpi ne, %1, %c0_i32_0 : i32
    scf.if %2 {
      %cst_10 = arith.constant 0.000000e+00 : f32
      %12 = vector.broadcast %cst_10 : f32 to vector<10x32xf32>
      %c0_11 = arith.constant 0 : index
      %c0_12 = arith.constant 0 : index
      %13 = vector.load %arg8[%c0_11, %c0_12] : memref<10x32xf32, #tpu.memory_space<vmem>>, vector<10x32xf32>
      tpu.vector_store %arg8[%c0_11, %c0_12], %12 {strides = array<i32>} : memref<10x32xf32, #tpu.memory_space<vmem>>, vector<10x32xf32>,
    } else {
    }
    %c0 = arith.constant 0 : index
    %c0_1 = arith.constant 0 : index
    %3 = vector.load %arg3[%c0, %c0_1] : memref<10x64xbf16, #tpu.memory_space<vmem>>, vector<10x64xbf16>
    %c0_2 = arith.constant 0 : index
    %c0_3 = arith.constant 0 : index
    %4 = vector.load %arg8[%c0_2, %c0_3] : memref<10x32xf32, #tpu.memory_space<vmem>>, vector<10x32xf32>
    %c0_4 = arith.constant 0 : index
    %c0_5 = arith.constant 0 : index
    %5 = vector.load %arg4[%c0_4, %c0_5] : memref<64x32xbf16, #tpu.memory_space<vmem>>, vector<64x32xbf16>
    %cst = arith.constant dense<0.000000e+00> : vector<10x32xf32>
    %6 = tpu.matmul %3, %5, %cst {dimension_numbers = #tpu.dot_dimension_numbers<[1], [0], [0], [1], [0, 0, 1, 1], [], []>} : vector<10x64xbf16>, vector<64x32xbf16>, vector<10x32xf32> -> vector<10x32xf32>
    %7 = arith.addf %4, %6 : vector<10x32xf32>
    %c0_6 = arith.constant 0 : index
    %c0_7 = arith.constant 0 : index
    %8 = vector.load %arg8[%c0_6, %c0_7] : memref<10x32xf32, #tpu.memory_space<vmem>>, vector<10x32xf32>
    tpu.vector_store %arg8[%c0_6, %c0_7], %7 {strides = array<i32>} : memref<10x32xf32, #tpu.memory_space<vmem>>, vector<10x32xf32>,
    %c0_i32_8 = arith.constant 0 : i32
    %9 = arith.cmpi eq, %arg2, %c0_i32_8 : i32
    %10 = arith.extui %9 : i1 to i32
    %c0_i32_9 = arith.constant 0 : i32
    %11 = arith.cmpi ne, %10, %c0_i32_9 : i32
    scf.if %11 {
      %c0_10 = arith.constant 0 : index
      %c0_11 = arith.constant 0 : index
      %12 = vector.load %arg8[%c0_10, %c0_11] : memref<10x32xf32, #tpu.memory_space<vmem>>, vector<10x32xf32>
      %c0_12 = arith.constant 0 : index
      %c0_13 = arith.constant 0 : index
      %13 = vector.load %arg5[%c0_12, %c0_13] : memref<1x32xf32, #tpu.memory_space<vmem>>, vector<1x32xf32>
      %14 = vector.broadcast %13 : vector<1x32xf32> to vector<10x32xf32>
      %15 = arith.addf %12, %14 : vector<10x32xf32>
      %c0_14 = arith.constant 0 : index
      %c0_15 = arith.constant 0 : index
      %16 = vector.load %arg6[%c0_14, %c0_15] : memref<10x32xf32, #tpu.memory_space<vmem>>, vector<10x32xf32>
      %17 = arith.addf %15, %16 : vector<10x32xf32>
      %c0_16 = arith.constant 0 : index
      %c0_17 = arith.constant 0 : index
      %18 = vector.load %arg7[%c0_16, %c0_17] : memref<10x32xf32, #tpu.memory_space<vmem>>, vector<10x32xf32>
      tpu.vector_store %arg7[%c0_16, %c0_17], %17 {strides = array<i32>} : memref<10x32xf32, #tpu.memory_space<vmem>>, vector<10x32xf32>,
    } else {
    }
    return
  }
  func.func @transform_0(%arg0: i32, %arg1: i32, %arg2: i32) -> (i32, i32) {
    %c0_i32 = arith.constant 0 : i32
    return %arg0, %arg2 : i32, i32
  }
  func.func @transform_1(%arg0: i32, %arg1: i32, %arg2: i32) -> (i32, i32) {
    %c0_i32 = arith.constant 0 : i32
    return %arg2, %arg1 : i32, i32
  }
  func.func @transform_2(%arg0: i32, %arg1: i32, %arg2: i32) -> (i32, i32) {
    %c0_i32 = arith.constant 0 : i32
    %c0_i32_0 = arith.constant 0 : i32
    return %c0_i32, %arg1 : i32, i32
  }
  func.func @transform_3(%arg0: i32, %arg1: i32, %arg2: i32) -> (i32, i32) {
    %c0_i32 = arith.constant 0 : i32
    return %arg0, %arg1 : i32, i32
  }
  func.func @transform_4(%arg0: i32, %arg1: i32, %arg2: i32) -> (i32, i32) {
    %c0_i32 = arith.constant 0 : i32
    return %arg0, %arg1 : i32, i32
  }
}

module attributes {stable_mosaic.version = 11 : i64} {
  func.func @_linear_kernel(%arg0: i32, %arg1: i32, %arg2: i32, %arg3: memref<16x32xf32, #tpu.memory_space<vmem>>, %arg4: memref<32x96xbf16, #tpu.memory_space<vmem>>, %arg5: memref<1x96xf32, #tpu.memory_space<vmem>>, %arg6: memref<1x32xf32, #tpu.memory_space<vmem>>, %arg7: memref<1x32xf32, #tpu.memory_space<vmem>>, %arg8: memref<16x96xbf16, #tpu.memory_space<vmem>>, %arg9: memref<16x96xf32, #tpu.memory_space<vmem>>) attributes {dimension_semantics = [#tpu.dimension_semantics<parallel>, #tpu.dimension_semantics<parallel>, #tpu.dimension_semantics<arbitrary>], iteration_bounds = array<i64: 1, 1, 1>, scalar_prefetch = 0 : i64, scratch_operands = 1 : i64, tpu.core_type = #tpu.core_type<tc>, window_params = [{transform_indices = @transform_0, window_bounds = array<i64: 16, 32>}, {transform_indices = @transform_1, window_bounds = array<i64: 32, 96>}, {transform_indices = @transform_2, window_bounds = array<i64: 1, 96>}, {transform_indices = @transform_3, window_bounds = array<i64: 1, 32>}, {transform_indices = @transform_4, window_bounds = array<i64: 1, 32>}, {transform_indices = @transform_5, window_bounds = array<i64: 16, 96>}]} {
    %c0_i32 = arith.constant 0 : i32
    %0 = arith.cmpi eq, %arg2, %c0_i32 : i32
    %1 = arith.extui %0 : i1 to i32
    %c0_i32_0 = arith.constant 0 : i32
    %2 = arith.cmpi ne, %1, %c0_i32_0 : i32
    scf.if %2 {
      %cst_19 = arith.constant 0.000000e+00 : f32
      %37 = vector.broadcast %cst_19 : f32 to vector<16x96xf32>
      %c0_20 = arith.constant 0 : index
      %c0_21 = arith.constant 0 : index
      %38 = vector.load %arg9[%c0_20, %c0_21] : memref<16x96xf32, #tpu.memory_space<vmem>>, vector<16x96xf32>
      tpu.vector_store %arg9[%c0_20, %c0_21], %37 {strides = array<i32>} : memref<16x96xf32, #tpu.memory_space<vmem>>, vector<16x96xf32>,
    } else {
    }
    %c0 = arith.constant 0 : index
    %c0_1 = arith.constant 0 : index
    %3 = vector.load %arg3[%c0, %c0_1] : memref<16x32xf32, #tpu.memory_space<vmem>>, vector<16x32xf32>
    %cst = arith.constant dense<0.000000e+00> : vector<16xf32>
    %4 = vector.multi_reduction <add>, %3, %cst [1] : vector<16x32xf32> to vector<16xf32>
    %5 = vector.shape_cast %4 : vector<16xf32> to vector<16x1xf32>
    %cst_2 = arith.constant 3.200000e+01 : f32
    %6 = vector.broadcast %cst_2 : f32 to vector<16x1xf32>
    %7 = arith.divf %5, %6 : vector<16x1xf32>
    %8 = vector.broadcast %7 : vector<16x1xf32> to vector<16x32xf32>
    %9 = arith.subf %3, %8 : vector<16x32xf32>
    %10 = arith.mulf %9, %9 : vector<16x32xf32>
    %cst_3 = arith.constant dense<0.000000e+00> : vector<16xf32>
    %11 = vector.multi_reduction <add>, %10, %cst_3 [1] : vector<16x32xf32> to vector<16xf32>
    %12 = vector.shape_cast %11 : vector<16xf32> to vector<16x1xf32>
    %cst_4 = arith.constant 3.200000e+01 : f32
    %13 = vector.broadcast %cst_4 : f32 to vector<16x1xf32>
    %14 = arith.divf %12, %13 : vector<16x1xf32>
    %15 = vector.broadcast %7 : vector<16x1xf32> to vector<16x32xf32>
    %16 = arith.subf %3, %15 : vector<16x32xf32>
    %cst_5 = arith.constant 9.99999974E-6 : f32
    %17 = vector.broadcast %cst_5 : f32 to vector<16x1xf32>
    %18 = arith.addf %14, %17 : vector<16x1xf32>
    %19 = math.rsqrt %18 : vector<16x1xf32>
    %20 = vector.broadcast %19 : vector<16x1xf32> to vector<16x32xf32>
    %21 = arith.mulf %16, %20 : vector<16x32xf32>
    %c0_6 = arith.constant 0 : index
    %c0_7 = arith.constant 0 : index
    %22 = vector.load %arg6[%c0_6, %c0_7] : memref<1x32xf32, #tpu.memory_space<vmem>>, vector<1x32xf32>
    %23 = vector.broadcast %22 : vector<1x32xf32> to vector<16x32xf32>
    %24 = arith.mulf %21, %23 : vector<16x32xf32>
    %c0_8 = arith.constant 0 : index
    %c0_9 = arith.constant 0 : index
    %25 = vector.load %arg7[%c0_8, %c0_9] : memref<1x32xf32, #tpu.memory_space<vmem>>, vector<1x32xf32>
    %26 = vector.broadcast %25 : vector<1x32xf32> to vector<16x32xf32>
    %27 = arith.addf %24, %26 : vector<16x32xf32>
    %28 = arith.truncf %27 : vector<16x32xf32> to vector<16x32xbf16>
    %c0_10 = arith.constant 0 : index
    %c0_11 = arith.constant 0 : index
    %29 = vector.load %arg9[%c0_10, %c0_11] : memref<16x96xf32, #tpu.memory_space<vmem>>, vector<16x96xf32>
    %c0_12 = arith.constant 0 : index
    %c0_13 = arith.constant 0 : index
    %30 = vector.load %arg4[%c0_12, %c0_13] : memref<32x96xbf16, #tpu.memory_space<vmem>>, vector<32x96xbf16>
    %cst_14 = arith.constant dense<0.000000e+00> : vector<16x96xf32>
    %31 = tpu.matmul %28, %30, %cst_14 {dimension_numbers = #tpu.dot_dimension_numbers<[1], [0], [0], [1], [0, 0, 1, 1], [], []>} : vector<16x32xbf16>, vector<32x96xbf16>, vector<16x96xf32> -> vector<16x96xf32>
    %32 = arith.addf %29, %31 : vector<16x96xf32>
    %c0_15 = arith.constant 0 : index
    %c0_16 = arith.constant 0 : index
    %33 = vector.load %arg9[%c0_15, %c0_16] : memref<16x96xf32, #tpu.memory_space<vmem>>, vector<16x96xf32>
    tpu.vector_store %arg9[%c0_15, %c0_16], %32 {strides = array<i32>} : memref<16x96xf32, #tpu.memory_space<vmem>>, vector<16x96xf32>,
    %c0_i32_17 = arith.constant 0 : i32
    %34 = arith.cmpi eq, %arg2, %c0_i32_17 : i32
    %35 = arith.extui %34 : i1 to i32
    %c0_i32_18 = arith.constant 0 : i32
    %36 = arith.cmpi ne, %35, %c0_i32_18 : i32
    scf.if %36 {
      %c0_19 = arith.constant 0 : index
      %c0_20 = arith.constant 0 : index
      %37 = vector.load %arg9[%c0_19, %c0_20] : memref<16x96xf32, #tpu.memory_space<vmem>>, vector<16x96xf32>
      %c0_21 = arith.constant 0 : index
      %c0_22 = arith.constant 0 : index
      %38 = vector.load %arg5[%c0_21, %c0_22] : memref<1x96xf32, #tpu.memory_space<vmem>>, vector<1x96xf32>
      %39 = vector.broadcast %38 : vector<1x96xf32> to vector<16x96xf32>
      %40 = arith.addf %37, %39 : vector<16x96xf32>
      %41 = arith.truncf %40 : vector<16x96xf32> to vector<16x96xbf16>
      %c0_23 = arith.constant 0 : index
      %c0_24 = arith.constant 0 : index
      %42 = vector.load %arg8[%c0_23, %c0_24] : memref<16x96xbf16, #tpu.memory_space<vmem>>, vector<16x96xbf16>
      tpu.vector_store %arg8[%c0_23, %c0_24], %41 {strides = array<i32>} : memref<16x96xbf16, #tpu.memory_space<vmem>>, vector<16x96xbf16>,
    } else {
    }
    return
  }
  func.func @transform_0(%arg0: i32, %arg1: i32, %arg2: i32) -> (i32, i32) {
    %c0_i32 = arith.constant 0 : i32
    return %arg0, %arg2 : i32, i32
  }
  func.func @transform_1(%arg0: i32, %arg1: i32, %arg2: i32) -> (i32, i32) {
    %c0_i32 = arith.constant 0 : i32
    return %arg2, %arg1 : i32, i32
  }
  func.func @transform_2(%arg0: i32, %arg1: i32, %arg2: i32) -> (i32, i32) {
    %c0_i32 = arith.constant 0 : i32
    %c0_i32_0 = arith.constant 0 : i32
    return %c0_i32, %arg1 : i32, i32
  }
  func.func @transform_3(%arg0: i32, %arg1: i32, %arg2: i32) -> (i32, i32) {
    %c0_i32 = arith.constant 0 : i32
    %c0_i32_0 = arith.constant 0 : i32
    return %c0_i32, %arg2 : i32, i32
  }
  func.func @transform_4(%arg0: i32, %arg1: i32, %arg2: i32) -> (i32, i32) {
    %c0_i32 = arith.constant 0 : i32
    %c0_i32_0 = arith.constant 0 : i32
    return %c0_i32, %arg2 : i32, i32
  }
  func.func @transform_5(%arg0: i32, %arg1: i32, %arg2: i32) -> (i32, i32) {
    %c0_i32 = arith.constant 0 : i32
    return %arg0, %arg1 : i32, i32
  }
}

module attributes {stable_mosaic.version = 11 : i64} {
  func.func @_attn_kernel(%arg0: i32, %arg1: memref<1x1x8xf32, #tpu.memory_space<vmem>>, %arg2: memref<1x8x96xbf16, #tpu.memory_space<vmem>>, %arg3: memref<1x8x32xbf16, #tpu.memory_space<vmem>>) attributes {dimension_semantics = [#tpu.dimension_semantics<parallel>], iteration_bounds = array<i64: 2>, scalar_prefetch = 0 : i64, scratch_operands = 0 : i64, tpu.core_type = #tpu.core_type<tc>, window_params = [{transform_indices = @transform_0, window_bounds = array<i64: 1, 1, 8>}, {transform_indices = @transform_1, window_bounds = array<i64: 1, 8, 96>}, {transform_indices = @transform_2, window_bounds = array<i64: 1, 8, 32>}]} {
    %c0 = arith.constant 0 : index
    %c0_0 = arith.constant 0 : index
    %c0_1 = arith.constant 0 : index
    %0 = vector.load %arg2[%c0, %c0_0, %c0_1] : memref<1x8x96xbf16, #tpu.memory_space<vmem>>, vector<1x8x96xbf16>
    %1 = vector.shape_cast %0 : vector<1x8x96xbf16> to vector<8x96xbf16>
    %2 = vector.extract_strided_slice %1 {offsets = [0, 0], sizes = [8, 32], strides = [1, 1]} : vector<8x96xbf16> to vector<8x32xbf16>
    %3 = vector.extract_strided_slice %1 {offsets = [0, 32], sizes = [8, 32], strides = [1, 1]} : vector<8x96xbf16> to vector<8x32xbf16>
    %4 = vector.extract_strided_slice %1 {offsets = [0, 64], sizes = [8, 32], strides = [1, 1]} : vector<8x96xbf16> to vector<8x32xbf16>
    %5 = vector.shape_cast %2 : vector<8x32xbf16> to vector<8x2x16xbf16>
    %6 = vector.shape_cast %3 : vector<8x32xbf16> to vector<8x2x16xbf16>
    %7 = vector.shape_cast %4 : vector<8x32xbf16> to vector<8x2x16xbf16>
    "tpu.trace_start"() <{level = 10 : i32, message = "qhd,khd->hqk"}> : () -> ()
    %cst = arith.constant dense<0.000000e+00> : vector<2x8x8xf32>
    %8 = tpu.matmul %5, %6, %cst {dimension_numbers = #tpu.dot_dimension_numbers<[2], [2], [0], [0], [0, 1, 0, 0, 1, 0], [1], [1]>} : vector<8x2x16xbf16>, vector<8x2x16xbf16>, vector<2x8x8xf32> -> vector<2x8x8xf32>
    "tpu.trace_stop"() : () -> ()
    %cst_2 = arith.constant 2.500000e-01 : f32
    %9 = vector.broadcast %cst_2 : f32 to vector<2x8x8xf32>
    %10 = arith.mulf %8, %9 : vector<2x8x8xf32>
    %c0_3 = arith.constant 0 : index
    %c0_4 = arith.constant 0 : index
    %c0_5 = arith.constant 0 : index
    %11 = vector.load %arg1[%c0_3, %c0_4, %c0_5] : memref<1x1x8xf32, #tpu.memory_space<vmem>>, vector<1x1x8xf32>
    %12 = vector.shape_cast %11 : vector<1x1x8xf32> to vector<1x8xf32>
    %13 = vector.shape_cast %12 : vector<1x8xf32> to vector<1x1x8xf32>
    %14 = vector.broadcast %13 : vector<1x1x8xf32> to vector<2x8x8xf32>
    %15 = arith.addf %10, %14 : vector<2x8x8xf32>
    %cst_6 = arith.constant dense<0xFF800000> : vector<2x8xf32>
    %16 = vector.multi_reduction <maximumf>, %15, %cst_6 [2] : vector<2x8x8xf32> to vector<2x8xf32>
    %17 = vector.shape_cast %16 : vector<2x8xf32> to vector<2x8x1xf32>
    %18 = vector.broadcast %17 : vector<2x8x1xf32> to vector<2x8x8xf32>
    %19 = arith.subf %15, %18 : vector<2x8x8xf32>
    %20 = math.exp %19 : vector<2x8x8xf32>
    %cst_7 = arith.constant dense<0.000000e+00> : vector<2x8xf32>
    %21 = vector.multi_reduction <add>, %20, %cst_7 [2] : vector<2x8x8xf32> to vector<2x8xf32>
    %22 = vector.shape_cast %21 : vector<2x8xf32> to vector<2x8x1xf32>
    %23 = tpu.reciprocal %22 {approx = true} : vector<2x8x1xf32> -> vector<2x8x1xf32>
    %24 = vector.broadcast %23 : vector<2x8x1xf32> to vector<2x8x8xf32>
    %25 = arith.mulf %20, %24 : vector<2x8x8xf32>
    %26 = arith.truncf %25 : vector<2x8x8xf32> to vector<2x8x8xbf16>
    "tpu.trace_start"() <{level = 10 : i32, message = "hqk,khd->qhd"}> : () -> ()
    %cst_8 = arith.constant dense<0.000000e+00> : vector<2x16x8xf32>
    %27 = tpu.matmul %7, %26, %cst_8 {dimension_numbers = #tpu.dot_dimension_numbers<[0], [2], [2], [1], [0, 1, 0, 2, 1, 1], [1], [0]>} : vector<8x2x16xbf16>, vector<2x8x8xbf16>, vector<2x16x8xf32> -> vector<2x16x8xf32>
    %28 = tpu.transpose %27, [2, 0, 1] : vector<2x16x8xf32> -> vector<8x2x16xf32>
    "tpu.trace_stop"() : () -> ()
    %29 = vector.shape_cast %28 : vector<8x2x16xf32> to vector<8x32xf32>
    %30 = arith.truncf %29 : vector<8x32xf32> to vector<8x32xbf16>
    %c0_9 = arith.constant 0 : index
    %c0_10 = arith.constant 0 : index
    %c0_11 = arith.constant 0 : index
    %31 = vector.load %arg3[%c0_9, %c0_10, %c0_11] : memref<1x8x32xbf16, #tpu.memory_space<vmem>>, vector<1x8x32xbf16>
    %32 = vector.shape_cast %31 : vector<1x8x32xbf16> to vector<8x32xbf16>
    %33 = vector.shape_cast %30 : vector<8x32xbf16> to vector<1x8x32xbf16>
    tpu.vector_store %arg3[%c0_9, %c0_10, %c0_11], %33 {strides = array<i32>} : memref<1x8x32xbf16, #tpu.memory_space<vmem>>, vector<1x8x32xbf16>,
    return
  }
  func.func @transform_0(%arg0: i32) -> (i32, i32, i32) {
    %c0_i32 = arith.constant 0 : i32
    %c0_i32_0 = arith.constant 0 : i32
    %c0_i32_1 = arith.constant 0 : i32
    return %arg0, %c0_i32, %c0_i32_0 : i32, i32, i32
  }
  func.func @transform_1(%arg0: i32) -> (i32, i32, i32) {
    %c0_i32 = arith.constant 0 : i32
    %c0_i32_0 = arith.constant 0 : i32
    %c0_i32_1 = arith.constant 0 : i32
    return %arg0, %c0_i32, %c0_i32_0 : i32, i32, i32
  }
  func.func @transform_2(%arg0: i32) -> (i32, i32, i32) {
    %c0_i32 = arith.constant 0 : i32
    %c0_i32_0 = arith.constant 0 : i32
    %c0_i32_1 = arith.constant 0 : i32
    return %arg0, %c0_i32, %c0_i32_0 : i32, i32, i32
  }
}

module attributes {stable_mosaic.version = 11 : i64} {
  func.func @_linear_kernel(%arg0: i32, %arg1: i32, %arg2: i32, %arg3: memref<16x32xbf16, #tpu.memory_space<vmem>>, %arg4: memref<32x32xbf16, #tpu.memory_space<vmem>>, %arg5: memref<1x32xf32, #tpu.memory_space<vmem>>, %arg6: memref<16x32xf32, #tpu.memory_space<vmem>>, %arg7: memref<16x32xf32, #tpu.memory_space<vmem>>, %arg8: memref<16x32xf32, #tpu.memory_space<vmem>>) attributes {dimension_semantics = [#tpu.dimension_semantics<parallel>, #tpu.dimension_semantics<parallel>, #tpu.dimension_semantics<arbitrary>], iteration_bounds = array<i64: 1, 1, 1>, scalar_prefetch = 0 : i64, scratch_operands = 1 : i64, tpu.core_type = #tpu.core_type<tc>, window_params = [{transform_indices = @transform_0, window_bounds = array<i64: 16, 32>}, {transform_indices = @transform_1, window_bounds = array<i64: 32, 32>}, {transform_indices = @transform_2, window_bounds = array<i64: 1, 32>}, {transform_indices = @transform_3, window_bounds = array<i64: 16, 32>}, {transform_indices = @transform_4, window_bounds = array<i64: 16, 32>}]} {
    %c0_i32 = arith.constant 0 : i32
    %0 = arith.cmpi eq, %arg2, %c0_i32 : i32
    %1 = arith.extui %0 : i1 to i32
    %c0_i32_0 = arith.constant 0 : i32
    %2 = arith.cmpi ne, %1, %c0_i32_0 : i32
    scf.if %2 {
      %cst_10 = arith.constant 0.000000e+00 : f32
      %12 = vector.broadcast %cst_10 : f32 to vector<16x32xf32>
      %c0_11 = arith.constant 0 : index
      %c0_12 = arith.constant 0 : index
      %13 = vector.load %arg8[%c0_11, %c0_12] : memref<16x32xf32, #tpu.memory_space<vmem>>, vector<16x32xf32>
      tpu.vector_store %arg8[%c0_11, %c0_12], %12 {strides = array<i32>} : memref<16x32xf32, #tpu.memory_space<vmem>>, vector<16x32xf32>,
    } else {
    }
    %c0 = arith.constant 0 : index
    %c0_1 = arith.constant 0 : index
    %3 = vector.load %arg3[%c0, %c0_1] : memref<16x32xbf16, #tpu.memory_space<vmem>>, vector<16x32xbf16>
    %c0_2 = arith.constant 0 : index
    %c0_3 = arith.constant 0 : index
    %4 = vector.load %arg8[%c0_2, %c0_3] : memref<16x32xf32, #tpu.memory_space<vmem>>, vector<16x32xf32>
    %c0_4 = arith.constant 0 : index
    %c0_5 = arith.constant 0 : index
    %5 = vector.load %arg4[%c0_4, %c0_5] : memref<32x32xbf16, #tpu.memory_space<vmem>>, vector<32x32xbf16>
    %cst = arith.constant dense<0.000000e+00> : vector<16x32xf32>
    %6 = tpu.matmul %3, %5, %cst {dimension_numbers = #tpu.dot_dimension_numbers<[1], [0], [0], [1], [0, 0, 1, 1], [], []>} : vector<16x32xbf16>, vector<32x32xbf16>, vector<16x32xf32> -> vector<16x32xf32>
    %7 = arith.addf %4, %6 : vector<16x32xf32>
    %c0_6 = arith.constant 0 : index
    %c0_7 = arith.constant 0 : index
    %8 = vector.load %arg8[%c0_6, %c0_7] : memref<16x32xf32, #tpu.memory_space<vmem>>, vector<16x32xf32>
    tpu.vector_store %arg8[%c0_6, %c0_7], %7 {strides = array<i32>} : memref<16x32xf32, #tpu.memory_space<vmem>>, vector<16x32xf32>,
    %c0_i32_8 = arith.constant 0 : i32
    %9 = arith.cmpi eq, %arg2, %c0_i32_8 : i32
    %10 = arith.extui %9 : i1 to i32
    %c0_i32_9 = arith.constant 0 : i32
    %11 = arith.cmpi ne, %10, %c0_i32_9 : i32
    scf.if %11 {
      %c0_10 = arith.constant 0 : index
      %c0_11 = arith.constant 0 : index
      %12 = vector.load %arg8[%c0_10, %c0_11] : memref<16x32xf32, #tpu.memory_space<vmem>>, vector<16x32xf32>
      %c0_12 = arith.constant 0 : index
      %c0_13 = arith.constant 0 : index
      %13 = vector.load %arg5[%c0_12, %c0_13] : memref<1x32xf32, #tpu.memory_space<vmem>>, vector<1x32xf32>
      %14 = vector.broadcast %13 : vector<1x32xf32> to vector<16x32xf32>
      %15 = arith.addf %12, %14 : vector<16x32xf32>
      %c0_14 = arith.constant 0 : index
      %c0_15 = arith.constant 0 : index
      %16 = vector.load %arg6[%c0_14, %c0_15] : memref<16x32xf32, #tpu.memory_space<vmem>>, vector<16x32xf32>
      %17 = arith.addf %15, %16 : vector<16x32xf32>
      %c0_16 = arith.constant 0 : index
      %c0_17 = arith.constant 0 : index
      %18 = vector.load %arg7[%c0_16, %c0_17] : memref<16x32xf32, #tpu.memory_space<vmem>>, vector<16x32xf32>
      tpu.vector_store %arg7[%c0_16, %c0_17], %17 {strides = array<i32>} : memref<16x32xf32, #tpu.memory_space<vmem>>, vector<16x32xf32>,
    } else {
    }
    return
  }
  func.func @transform_0(%arg0: i32, %arg1: i32, %arg2: i32) -> (i32, i32) {
    %c0_i32 = arith.constant 0 : i32
    return %arg0, %arg2 : i32, i32
  }
  func.func @transform_1(%arg0: i32, %arg1: i32, %arg2: i32) -> (i32, i32) {
    %c0_i32 = arith.constant 0 : i32
    return %arg2, %arg1 : i32, i32
  }
  func.func @transform_2(%arg0: i32, %arg1: i32, %arg2: i32) -> (i32, i32) {
    %c0_i32 = arith.constant 0 : i32
    %c0_i32_0 = arith.constant 0 : i32
    return %c0_i32, %arg1 : i32, i32
  }
  func.func @transform_3(%arg0: i32, %arg1: i32, %arg2: i32) -> (i32, i32) {
    %c0_i32 = arith.constant 0 : i32
    return %arg0, %arg1 : i32, i32
  }
  func.func @transform_4(%arg0: i32, %arg1: i32, %arg2: i32) -> (i32, i32) {
    %c0_i32 = arith.constant 0 : i32
    return %arg0, %arg1 : i32, i32
  }
}

module attributes {stable_mosaic.version = 11 : i64} {
  func.func @_linear_kernel(%arg0: i32, %arg1: i32, %arg2: i32, %arg3: memref<16x32xf32, #tpu.memory_space<vmem>>, %arg4: memref<32x64xbf16, #tpu.memory_space<vmem>>, %arg5: memref<1x64xf32, #tpu.memory_space<vmem>>, %arg6: memref<1x32xf32, #tpu.memory_space<vmem>>, %arg7: memref<1x32xf32, #tpu.memory_space<vmem>>, %arg8: memref<16x64xbf16, #tpu.memory_space<vmem>>, %arg9: memref<16x64xf32, #tpu.memory_space<vmem>>) attributes {dimension_semantics = [#tpu.dimension_semantics<parallel>, #tpu.dimension_semantics<parallel>, #tpu.dimension_semantics<arbitrary>], iteration_bounds = array<i64: 1, 1, 1>, scalar_prefetch = 0 : i64, scratch_operands = 1 : i64, tpu.core_type = #tpu.core_type<tc>, window_params = [{transform_indices = @transform_0, window_bounds = array<i64: 16, 32>}, {transform_indices = @transform_1, window_bounds = array<i64: 32, 64>}, {transform_indices = @transform_2, window_bounds = array<i64: 1, 64>}, {transform_indices = @transform_3, window_bounds = array<i64: 1, 32>}, {transform_indices = @transform_4, window_bounds = array<i64: 1, 32>}, {transform_indices = @transform_5, window_bounds = array<i64: 16, 64>}]} {
    %c0_i32 = arith.constant 0 : i32
    %0 = arith.cmpi eq, %arg2, %c0_i32 : i32
    %1 = arith.extui %0 : i1 to i32
    %c0_i32_0 = arith.constant 0 : i32
    %2 = arith.cmpi ne, %1, %c0_i32_0 : i32
    scf.if %2 {
      %cst_19 = arith.constant 0.000000e+00 : f32
      %37 = vector.broadcast %cst_19 : f32 to vector<16x64xf32>
      %c0_20 = arith.constant 0 : index
      %c0_21 = arith.constant 0 : index
      %38 = vector.load %arg9[%c0_20, %c0_21] : memref<16x64xf32, #tpu.memory_space<vmem>>, vector<16x64xf32>
      tpu.vector_store %arg9[%c0_20, %c0_21], %37 {strides = array<i32>} : memref<16x64xf32, #tpu.memory_space<vmem>>, vector<16x64xf32>,
    } else {
    }
    %c0 = arith.constant 0 : index
    %c0_1 = arith.constant 0 : index
    %3 = vector.load %arg3[%c0, %c0_1] : memref<16x32xf32, #tpu.memory_space<vmem>>, vector<16x32xf32>
    %cst = arith.constant dense<0.000000e+00> : vector<16xf32>
    %4 = vector.multi_reduction <add>, %3, %cst [1] : vector<16x32xf32> to vector<16xf32>
    %5 = vector.shape_cast %4 : vector<16xf32> to vector<16x1xf32>
    %cst_2 = arith.constant 3.200000e+01 : f32
    %6 = vector.broadcast %cst_2 : f32 to vector<16x1xf32>
    %7 = arith.divf %5, %6 : vector<16x1xf32>
    %8 = vector.broadcast %7 : vector<16x1xf32> to vector<16x32xf32>
    %9 = arith.subf %3, %8 : vector<16x32xf32>
    %10 = arith.mulf %9, %9 : vector<16x32xf32>
    %cst_3 = arith.constant dense<0.000000e+00> : vector<16xf32>
    %11 = vector.multi_reduction <add>, %10, %cst_3 [1] : vector<16x32xf32> to vector<16xf32>
    %12 = vector.shape_cast %11 : vector<16xf32> to vector<16x1xf32>
    %cst_4 = arith.constant 3.200000e+01 : f32
    %13 = vector.broadcast %cst_4 : f32 to vector<16x1xf32>
    %14 = arith.divf %12, %13 : vector<16x1xf32>
    %15 = vector.broadcast %7 : vector<16x1xf32> to vector<16x32xf32>
    %16 = arith.subf %3, %15 : vector<16x32xf32>
    %cst_5 = arith.constant 9.99999974E-6 : f32
    %17 = vector.broadcast %cst_5 : f32 to vector<16x1xf32>
    %18 = arith.addf %14, %17 : vector<16x1xf32>
    %19 = math.rsqrt %18 : vector<16x1xf32>
    %20 = vector.broadcast %19 : vector<16x1xf32> to vector<16x32xf32>
    %21 = arith.mulf %16, %20 : vector<16x32xf32>
    %c0_6 = arith.constant 0 : index
    %c0_7 = arith.constant 0 : index
    %22 = vector.load %arg6[%c0_6, %c0_7] : memref<1x32xf32, #tpu.memory_space<vmem>>, vector<1x32xf32>
    %23 = vector.broadcast %22 : vector<1x32xf32> to vector<16x32xf32>
    %24 = arith.mulf %21, %23 : vector<16x32xf32>
    %c0_8 = arith.constant 0 : index
    %c0_9 = arith.constant 0 : index
    %25 = vector.load %arg7[%c0_8, %c0_9] : memref<1x32xf32, #tpu.memory_space<vmem>>, vector<1x32xf32>
    %26 = vector.broadcast %25 : vector<1x32xf32> to vector<16x32xf32>
    %27 = arith.addf %24, %26 : vector<16x32xf32>
    %28 = arith.truncf %27 : vector<16x32xf32> to vector<16x32xbf16>
    %c0_10 = arith.constant 0 : index
    %c0_11 = arith.constant 0 : index
    %29 = vector.load %arg9[%c0_10, %c0_11] : memref<16x64xf32, #tpu.memory_space<vmem>>, vector<16x64xf32>
    %c0_12 = arith.constant 0 : index
    %c0_13 = arith.constant 0 : index
    %30 = vector.load %arg4[%c0_12, %c0_13] : memref<32x64xbf16, #tpu.memory_space<vmem>>, vector<32x64xbf16>
    %cst_14 = arith.constant dense<0.000000e+00> : vector<16x64xf32>
    %31 = tpu.matmul %28, %30, %cst_14 {dimension_numbers = #tpu.dot_dimension_numbers<[1], [0], [0], [1], [0, 0, 1, 1], [], []>} : vector<16x32xbf16>, vector<32x64xbf16>, vector<16x64xf32> -> vector<16x64xf32>
    %32 = arith.addf %29, %31 : vector<16x64xf32>
    %c0_15 = arith.constant 0 : index
    %c0_16 = arith.constant 0 : index
    %33 = vector.load %arg9[%c0_15, %c0_16] : memref<16x64xf32, #tpu.memory_space<vmem>>, vector<16x64xf32>
    tpu.vector_store %arg9[%c0_15, %c0_16], %32 {strides = array<i32>} : memref<16x64xf32, #tpu.memory_space<vmem>>, vector<16x64xf32>,
    %c0_i32_17 = arith.constant 0 : i32
    %34 = arith.cmpi eq, %arg2, %c0_i32_17 : i32
    %35 = arith.extui %34 : i1 to i32
    %c0_i32_18 = arith.constant 0 : i32
    %36 = arith.cmpi ne, %35, %c0_i32_18 : i32
    scf.if %36 {
      %c0_19 = arith.constant 0 : index
      %c0_20 = arith.constant 0 : index
      %37 = vector.load %arg9[%c0_19, %c0_20] : memref<16x64xf32, #tpu.memory_space<vmem>>, vector<16x64xf32>
      %c0_21 = arith.constant 0 : index
      %c0_22 = arith.constant 0 : index
      %38 = vector.load %arg5[%c0_21, %c0_22] : memref<1x64xf32, #tpu.memory_space<vmem>>, vector<1x64xf32>
      %39 = vector.broadcast %38 : vector<1x64xf32> to vector<16x64xf32>
      %40 = arith.addf %37, %39 : vector<16x64xf32>
      %41 = arith.mulf %40, %40 : vector<16x64xf32>
      %42 = arith.mulf %40, %41 : vector<16x64xf32>
      %cst_23 = arith.constant 4.471500e-02 : f32
      %43 = vector.broadcast %cst_23 : f32 to vector<16x64xf32>
      %44 = arith.mulf %43, %42 : vector<16x64xf32>
      %45 = arith.addf %40, %44 : vector<16x64xf32>
      %cst_24 = arith.constant 0.797884583 : f32
      %46 = vector.broadcast %cst_24 : f32 to vector<16x64xf32>
      %47 = arith.mulf %46, %45 : vector<16x64xf32>
      %48 = math.tanh %47 : vector<16x64xf32>
      %cst_25 = arith.constant 1.000000e+00 : f32
      %49 = vector.broadcast %cst_25 : f32 to vector<16x64xf32>
      %50 = arith.addf %49, %48 : vector<16x64xf32>
      %cst_26 = arith.constant 5.000000e-01 : f32
      %51 = vector.broadcast %cst_26 : f32 to vector<16x64xf32>
      %52 = arith.mulf %51, %50 : vector<16x64xf32>
      %53 = arith.mulf %40, %52 : vector<16x64xf32>
      %54 = arith.truncf %53 : vector<16x64xf32> to vector<16x64xbf16>
      %c0_27 = arith.constant 0 : index
      %c0_28 = arith.constant 0 : index
      %55 = vector.load %arg8[%c0_27, %c0_28] : memref<16x64xbf16, #tpu.memory_space<vmem>>, vector<16x64xbf16>
      tpu.vector_store %arg8[%c0_27, %c0_28], %54 {strides = array<i32>} : memref<16x64xbf16, #tpu.memory_space<vmem>>, vector<16x64xbf16>,
    } else {
    }
    return
  }
  func.func @transform_0(%arg0: i32, %arg1: i32, %arg2: i32) -> (i32, i32) {
    %c0_i32 = arith.constant 0 : i32
    return %arg0, %arg2 : i32, i32
  }
  func.func @transform_1(%arg0: i32, %arg1: i32, %arg2: i32) -> (i32, i32) {
    %c0_i32 = arith.constant 0 : i32
    return %arg2, %arg1 : i32, i32
  }
  func.func @transform_2(%arg0: i32, %arg1: i32, %arg2: i32) -> (i32, i32) {
    %c0_i32 = arith.constant 0 : i32
    %c0_i32_0 = arith.constant 0 : i32
    return %c0_i32, %arg1 : i32, i32
  }
  func.func @transform_3(%arg0: i32, %arg1: i32, %arg2: i32) -> (i32, i32) {
    %c0_i32 = arith.constant 0 : i32
    %c0_i32_0 = arith.constant 0 : i32
    return %c0_i32, %arg2 : i32, i32
  }
  func.func @transform_4(%arg0: i32, %arg1: i32, %arg2: i32) -> (i32, i32) {
    %c0_i32 = arith.constant 0 : i32
    %c0_i32_0 = arith.constant 0 : i32
    return %c0_i32, %arg2 : i32, i32
  }
  func.func @transform_5(%arg0: i32, %arg1: i32, %arg2: i32) -> (i32, i32) {
    %c0_i32 = arith.constant 0 : i32
    return %arg0, %arg1 : i32, i32
  }
}

module attributes {stable_mosaic.version = 11 : i64} {
  func.func @_linear_kernel(%arg0: i32, %arg1: i32, %arg2: i32, %arg3: memref<16x64xbf16, #tpu.memory_space<vmem>>, %arg4: memref<64x32xbf16, #tpu.memory_space<vmem>>, %arg5: memref<1x32xf32, #tpu.memory_space<vmem>>, %arg6: memref<16x32xf32, #tpu.memory_space<vmem>>, %arg7: memref<16x32xf32, #tpu.memory_space<vmem>>, %arg8: memref<16x32xf32, #tpu.memory_space<vmem>>) attributes {dimension_semantics = [#tpu.dimension_semantics<parallel>, #tpu.dimension_semantics<parallel>, #tpu.dimension_semantics<arbitrary>], iteration_bounds = array<i64: 1, 1, 1>, scalar_prefetch = 0 : i64, scratch_operands = 1 : i64, tpu.core_type = #tpu.core_type<tc>, window_params = [{transform_indices = @transform_0, window_bounds = array<i64: 16, 64>}, {transform_indices = @transform_1, window_bounds = array<i64: 64, 32>}, {transform_indices = @transform_2, window_bounds = array<i64: 1, 32>}, {transform_indices = @transform_3, window_bounds = array<i64: 16, 32>}, {transform_indices = @transform_4, window_bounds = array<i64: 16, 32>}]} {
    %c0_i32 = arith.constant 0 : i32
    %0 = arith.cmpi eq, %arg2, %c0_i32 : i32
    %1 = arith.extui %0 : i1 to i32
    %c0_i32_0 = arith.constant 0 : i32
    %2 = arith.cmpi ne, %1, %c0_i32_0 : i32
    scf.if %2 {
      %cst_10 = arith.constant 0.000000e+00 : f32
      %12 = vector.broadcast %cst_10 : f32 to vector<16x32xf32>
      %c0_11 = arith.constant 0 : index
      %c0_12 = arith.constant 0 : index
      %13 = vector.load %arg8[%c0_11, %c0_12] : memref<16x32xf32, #tpu.memory_space<vmem>>, vector<16x32xf32>
      tpu.vector_store %arg8[%c0_11, %c0_12], %12 {strides = array<i32>} : memref<16x32xf32, #tpu.memory_space<vmem>>, vector<16x32xf32>,
    } else {
    }
    %c0 = arith.constant 0 : index
    %c0_1 = arith.constant 0 : index
    %3 = vector.load %arg3[%c0, %c0_1] : memref<16x64xbf16, #tpu.memory_space<vmem>>, vector<16x64xbf16>
    %c0_2 = arith.constant 0 : index
    %c0_3 = arith.constant 0 : index
    %4 = vector.load %arg8[%c0_2, %c0_3] : memref<16x32xf32, #tpu.memory_space<vmem>>, vector<16x32xf32>
    %c0_4 = arith.constant 0 : index
    %c0_5 = arith.constant 0 : index
    %5 = vector.load %arg4[%c0_4, %c0_5] : memref<64x32xbf16, #tpu.memory_space<vmem>>, vector<64x32xbf16>
    %cst = arith.constant dense<0.000000e+00> : vector<16x32xf32>
    %6 = tpu.matmul %3, %5, %cst {dimension_numbers = #tpu.dot_dimension_numbers<[1], [0], [0], [1], [0, 0, 1, 1], [], []>} : vector<16x64xbf16>, vector<64x32xbf16>, vector<16x32xf32> -> vector<16x32xf32>
    %7 = arith.addf %4, %6 : vector<16x32xf32>
    %c0_6 = arith.constant 0 : index
    %c0_7 = arith.constant 0 : index
    %8 = vector.load %arg8[%c0_6, %c0_7] : memref<16x32xf32, #tpu.memory_space<vmem>>, vector<16x32xf32>
    tpu.vector_store %arg8[%c0_6, %c0_7], %7 {strides = array<i32>} : memref<16x32xf32, #tpu.memory_space<vmem>>, vector<16x32xf32>,
    %c0_i32_8 = arith.constant 0 : i32
    %9 = arith.cmpi eq, %arg2, %c0_i32_8 : i32
    %10 = arith.extui %9 : i1 to i32
    %c0_i32_9 = arith.constant 0 : i32
    %11 = arith.cmpi ne, %10, %c0_i32_9 : i32
    scf.if %11 {
      %c0_10 = arith.constant 0 : index
      %c0_11 = arith.constant 0 : index
      %12 = vector.load %arg8[%c0_10, %c0_11] : memref<16x32xf32, #tpu.memory_space<vmem>>, vector<16x32xf32>
      %c0_12 = arith.constant 0 : index
      %c0_13 = arith.constant 0 : index
      %13 = vector.load %arg5[%c0_12, %c0_13] : memref<1x32xf32, #tpu.memory_space<vmem>>, vector<1x32xf32>
      %14 = vector.broadcast %13 : vector<1x32xf32> to vector<16x32xf32>
      %15 = arith.addf %12, %14 : vector<16x32xf32>
      %c0_14 = arith.constant 0 : index
      %c0_15 = arith.constant 0 : index
      %16 = vector.load %arg6[%c0_14, %c0_15] : memref<16x32xf32, #tpu.memory_space<vmem>>, vector<16x32xf32>
      %17 = arith.addf %15, %16 : vector<16x32xf32>
      %c0_16 = arith.constant 0 : index
      %c0_17 = arith.constant 0 : index
      %18 = vector.load %arg7[%c0_16, %c0_17] : memref<16x32xf32, #tpu.memory_space<vmem>>, vector<16x32xf32>
      tpu.vector_store %arg7[%c0_16, %c0_17], %17 {strides = array<i32>} : memref<16x32xf32, #tpu.memory_space<vmem>>, vector<16x32xf32>,
    } else {
    }
    return
  }
  func.func @transform_0(%arg0: i32, %arg1: i32, %arg2: i32) -> (i32, i32) {
    %c0_i32 = arith.constant 0 : i32
    return %arg0, %arg2 : i32, i32
  }
  func.func @transform_1(%arg0: i32, %arg1: i32, %arg2: i32) -> (i32, i32) {
    %c0_i32 = arith.constant 0 : i32
    return %arg2, %arg1 : i32, i32
  }
  func.func @transform_2(%arg0: i32, %arg1: i32, %arg2: i32) -> (i32, i32) {
    %c0_i32 = arith.constant 0 : i32
    %c0_i32_0 = arith.constant 0 : i32
    return %c0_i32, %arg1 : i32, i32
  }
  func.func @transform_3(%arg0: i32, %arg1: i32, %arg2: i32) -> (i32, i32) {
    %c0_i32 = arith.constant 0 : i32
    return %arg0, %arg1 : i32, i32
  }
  func.func @transform_4(%arg0: i32, %arg1: i32, %arg2: i32) -> (i32, i32) {
    %c0_i32 = arith.constant 0 : i32
    return %arg0, %arg1 : i32, i32
  }
}

</mosaic_0001>

<llo_original>
// kernel: clip_forward.26
$region0: #{clip_forward.26}
  #allocation0 [shape = 'u32[]', space=smem, size = 0x4, offset = 0x4, fixed_abs, tag = 'smem constant byte address 0x4 - core index']
  #allocation1 [shape = 'u32[72,128]{1,0:T(1,128)}', space=vmem, size = 0x9000, scoped, tag = 'internal scratch']
  #allocation2 [shape = 'f32[10,32]{1,0:T(8,128)}', space=vmem, size = 0x2000, scoped, tag = 'scratch operand']
  %s0 = inlined_call_operand.vmem [shape: bf16[10,32], index: 0, kind: input, shape index: {}]
  %s1 = inlined_call_operand.vmem [shape: bf16[32,32], index: 1, kind: input, shape index: {}]
  %s2 = inlined_call_operand.vmem [shape: f32[1,32], index: 2, kind: input, shape index: {}]
  %s3 = inlined_call_operand.vmem [shape: f32[10,32], index: 3, kind: input, shape index: {}]
  %s4 = inlined_call_operand.vmem [shape: f32[10,32], index: 4, kind: output, shape index: {}]
  %s5 = sld [smem:[#allocation0]]
  $region34: #{clip_forward.26} parent=0
    _
  %s7 = ssub.s32 1, %s5
  %s8 = scalar_select 0, %s7, %s5
  // Predicated region
  $region2: #{clip_forward.26} parent=0 // pred_check
    _
  $region3: #{clip_forward.26} parent=0 // pred_check_branch
    %10 = sbr.rel (0) target = $region5
  $region4: #{clip_forward.26} parent=0 // pred_region
    _
  $region5: #{clip_forward.26} parent=0 // pred_fallthru
    _
  // Predicated region
  $region6: #{clip_forward.26} parent=0 // pred_check
    _
  $region7: #{clip_forward.26} parent=0 // pred_check_branch
    %12 = sbr.rel (0) target = $region9
  $region8: #{clip_forward.26} parent=0 // pred_region
    _
  $region9: #{clip_forward.26} parent=0 // pred_fallthru
    _
  // Predicated region
  $region10: #{clip_forward.26} parent=0 // pred_check
    _
  $region11: #{clip_forward.26} parent=0 // pred_check_branch
    %14 = sbr.rel (0) target = $region13
  $region12: #{clip_forward.26} parent=0 // pred_region
    _
  $region13: #{clip_forward.26} parent=0 // pred_fallthru
    _
  // Predicated region
  $region14: #{clip_forward.26} parent=0 // pred_check
    _
  $region15: #{clip_forward.26} parent=0 // pred_check_branch
    %16 = sbr.rel (0) target = $region17
  $region16: #{clip_forward.26} parent=0 // pred_region
    _
  $region17: #{clip_forward.26} parent=0 // pred_fallthru
    _
  %p18 = scmp.eq.s32.totalorder 0, 0
  // Predicated region
  $region18: #{clip_forward.26} parent=0 // pred_check
    %p19 = pneg %p18
  $region19: #{clip_forward.26} parent=0 // pred_check_branch
    %21 = sbr.rel (%p19) target = $region21
  $region20: #{clip_forward.26} parent=0 // pred_region
    %vm22 = vcmask 261120
    %23 = vst.msk [vmem:[#allocation2] sm:$0xff] %vm22, 0.0
    %vm24 = vcmask 254976
    %25 = vst.msk [vmem:[#allocation2 + $0x8] sm:$0x3] %vm24, 0.0
  $region21: #{clip_forward.26} parent=0 // pred_fallthru
    _
  %v26 = vld [vmem:[%s0] sm:$0xf]
  %v27 = vld [vmem:[%s0 + $0x4] sm:$0x1]
  %v28 = vld [vmem:[#allocation2] sm:$0xff]
  %v29 = vld [vmem:[#allocation2 + $0x8] sm:$0x3]
  %v30 = vld [vmem:[%s1] sm:$0xf]
  %v31 = vld [vmem:[%s1 + $0x4] sm:$0xf]
  %v32 = vld [vmem:[%s1 + $0x8] sm:$0xf]
  %v33 = vld [vmem:[%s1 + $0xc] sm:$0xf]
  %v36 = vunpack.c.l.b16 %v26
  %v37 = vunpack.c.l.b16 %v27
  %v38 = vpack.c.b16 %v37, %v36
  %v43 = vunpack.c.l.b16 %v30
  %v44 = vunpack.c.l.b16 %v31
  %v45 = vunpack.c.l.b16 %v32
  %v46 = vunpack.c.l.b16 %v33
  %v47 = vpack.c.b16 %v44, %v43
  %v48 = vpack.c.b16 %v46, %v45
  %vm51 = vcmask 261120
  %v53 = vsel %vm51, %v38, 0
  %55 = vmatpush.bf16.msra.mxu0 0
  %56 = vmatpush.bf16.msra.mxu0 0
  %57 = vmatpush.bf16.msra.mxu0 0
  %58 = vmatpush.bf16.msra.mxu0 0
  %59 = vmatpush.bf16.msra.mxu0 0
  %60 = vmatpush.bf16.msra.mxu0 0
  %61 = vmatpush.bf16.msra.mxu0 %v48
  %62 = vmatpush.bf16.msra.mxu0 %v47
  %63 = vmatmul.bf16.gmra.mxu0 %v53
  %v64 = vpop.f32.mrf.mxu0
  %v65 = vadd.f32 0.0, %v64
  %v66 = vpop.f32.mrf.mxu0
  %v67 = vadd.f32 0.0, %v66
  %68 = vdwg.mxu0
  %v69 = vadd.f32 %v28, %v65
  %v70 = vadd.f32 %v29, %v67
  %71 = vst.msk [vmem:[#allocation2] sm:$0xff] %vm51, %v69
  %vm72 = vcmask 254976
  %73 = vst.msk [vmem:[#allocation2 + $0x8] sm:$0x3] %vm72, %v70
  // Predicated region
  $region22: #{clip_forward.26} parent=0 // pred_check
    %p74 = pneg %p18
  $region23: #{clip_forward.26} parent=0 // pred_check_branch
    %76 = sbr.rel (%p74) target = $region25
  $region24: #{clip_forward.26} parent=0 // pred_region
    %v77 = vld [vmem:[#allocation2] sm:$0xff]
    %v78 = vld [vmem:[#allocation2 + $0x8] sm:$0x3]
    %v79 = vld [vmem:[%s2] sm:$0x1]
    %v81 = vperm.slane %v79, 0
    %v83 = vadd.f32 %v77, %v81
    %v84 = vadd.f32 %v78, %v81
    %v85 = vld [vmem:[%s3] sm:$0xff]
    %v86 = vld [vmem:[%s3 + $0x8] sm:$0x3]
    %v87 = vadd.f32 %v83, %v85
    %v88 = vadd.f32 %v84, %v86
    %89 = vst.msk [vmem:[%s4] sm:$0xff] %vm51, %v87
    %90 = vst.msk [vmem:[%s4 + $0x8] sm:$0x3] %vm72, %v88
  $region25: #{clip_forward.26} parent=0 // pred_fallthru
    _
  // Predicated region
  $region26: #{clip_forward.26} parent=0 // pred_check
    _
  $region27: #{clip_forward.26} parent=0 // pred_check_branch
    %92 = sbr.rel (0) target = $region29
  $region28: #{clip_forward.26} parent=0 // pred_region
    _
  $region29: #{clip_forward.26} parent=0 // pred_fallthru
    _
  // Predicated region
  $region30: #{clip_forward.26} parent=0 // pred_check
    _
  $region31: #{clip_forward.26} parent=0 // pred_check_branch
    %94 = sbr.rel (0) target = $region33
  $region32: #{clip_forward.26} parent=0 // pred_region
    _
  $region33: #{clip_forward.26} parent=0 // pred_fallthru
    _

// kernel: clip_forward.23
$region0: #{clip_forward.23}
  #allocation0 [shape = 'u32[]', space=smem, size = 0x4, offset = 0x4, fixed_abs, tag = 'smem constant byte address 0x4 - core index']
  #allocation1 [shape = 'u32[72,128]{1,0:T(1,128)}', space=vmem, size = 0x9000, scoped, tag = 'internal scratch']
  #allocation2 [shape = 'f32[8,32]{1,0:T(8,128)}', space=vmem, size = 0x1000, scoped, tag = 'scratch operand']
  %s0 = inlined_call_operand.vmem [shape: bf16[8,192], index: 0, kind: input, shape index: {}]
  %s1 = inlined_call_operand.vmem [shape: bf16[192,32], index: 1, kind: input, shape index: {}]
  %s2 = inlined_call_operand.vmem [shape: f32[1,32], index: 2, kind: input, shape index: {}]
  %s3 = inlined_call_operand.vmem [shape: f32[8,32], index: 3, kind: output, shape index: {}]
  %s4 = sld [smem:[#allocation0]]
  $region30: #{clip_forward.23} parent=0
    _
  %s6 = ssub.s32 1, %s4
  %s7 = scalar_select 0, %s6, %s4
  // Predicated region
  $region2: #{clip_forward.23} parent=0 // pred_check
    _
  $region3: #{clip_forward.23} parent=0 // pred_check_branch
    %9 = sbr.rel (0) target = $region5
  $region4: #{clip_forward.23} parent=0 // pred_region
    _
  $region5: #{clip_forward.23} parent=0 // pred_fallthru
    _
  // Predicated region
  $region6: #{clip_forward.23} parent=0 // pred_check
    _
  $region7: #{clip_forward.23} parent=0 // pred_check_branch
    %11 = sbr.rel (0) target = $region9
  $region8: #{clip_forward.23} parent=0 // pred_region
    _
  $region9: #{clip_forward.23} parent=0 // pred_fallthru
    _
  // Predicated region
  $region10: #{clip_forward.23} parent=0 // pred_check
    _
  $region11: #{clip_forward.23} parent=0 // pred_check_branch
    %13 = sbr.rel (0) target = $region13
  $region12: #{clip_forward.23} parent=0 // pred_region
    _
  $region13: #{clip_forward.23} parent=0 // pred_fallthru
    _
  %p15 = scmp.eq.s32.totalorder 0, 0
  // Predicated region
  $region14: #{clip_forward.23} parent=0 // pred_check
    %p16 = pneg %p15
  $region15: #{clip_forward.23} parent=0 // pred_check_branch
    %18 = sbr.rel (%p16) target = $region17
  $region16: #{clip_forward.23} parent=0 // pred_region
    %vm19 = vcmask 261120
    %20 = vst.msk [vmem:[#allocation2] sm:$0xff] %vm19, 0.0
  $region17: #{clip_forward.23} parent=0 // pred_fallthru
    _
  %v21 = vld [vmem:[%s0] sm:$0xff]
  %v22 = vld [vmem:[#allocation2] sm:$0xff]
  %v23 = vld [vmem:[%s1] sm:$0xf]
  %v24 = vld [vmem:[%s1 + $0x4] sm:$0xf]
  %v25 = vld [vmem:[%s1 + $0x8] sm:$0xf]
  %v26 = vld [vmem:[%s1 + $0xc] sm:$0xf]
  %v27 = vld [vmem:[%s1 + $0x10] sm:$0xf]
  %v28 = vld [vmem:[%s1 + $0x14] sm:$0xf]
  %v29 = vld [vmem:[%s1 + $0x18] sm:$0xf]
  %v30 = vld [vmem:[%s1 + $0x1c] sm:$0xf]
  %v31 = vld [vmem:[%s1 + $0x20] sm:$0xf]
  %v32 = vld [vmem:[%s1 + $0x24] sm:$0xf]
  %v33 = vld [vmem:[%s1 + $0x28] sm:$0xf]
  %v34 = vld [vmem:[%s1 + $0x2c] sm:$0xf]
  %v35 = vld [vmem:[%s1 + $0x30] sm:$0xf]
  %v36 = vld [vmem:[%s1 + $0x34] sm:$0xf]
  %v37 = vld [vmem:[%s1 + $0x38] sm:$0xf]
  %v38 = vld [vmem:[%s1 + $0x3c] sm:$0xf]
  %v39 = vld [vmem:[%s1 + $0x40] sm:$0xf]
  %v40 = vld [vmem:[%s1 + $0x44] sm:$0xf]
  %v41 = vld [vmem:[%s1 + $0x48] sm:$0xf]
  %v42 = vld [vmem:[%s1 + $0x4c] sm:$0xf]
  %v43 = vld [vmem:[%s1 + $0x50] sm:$0xf]
  %v44 = vld [vmem:[%s1 + $0x54] sm:$0xf]
  %v45 = vld [vmem:[%s1 + $0x58] sm:$0xf]
  %v46 = vld [vmem:[%s1 + $0x5c] sm:$0xf]
  %v48 = vunpack.c.l.b16 %v21
  %v49 = vunpack.c.h.b16 %v21
  %v50 = vpack.c.b16 %v48, %v48
  %v51 = vpack.c.b16 %v49, %v49
  %v77 = vunpack.c.l.b16 %v23
  %v78 = vunpack.c.l.b16 %v24
  %v79 = vunpack.c.l.b16 %v25
  %v80 = vunpack.c.l.b16 %v26
  %v81 = vunpack.c.l.b16 %v27
  %v82 = vunpack.c.l.b16 %v28
  %v83 = vunpack.c.l.b16 %v29
  %v84 = vunpack.c.l.b16 %v30
  %v85 = vunpack.c.l.b16 %v31
  %v86 = vunpack.c.l.b16 %v32
  %v87 = vunpack.c.l.b16 %v33
  %v88 = vunpack.c.l.b16 %v34
  %v89 = vunpack.c.l.b16 %v35
  %v90 = vunpack.c.l.b16 %v36
  %v91 = vunpack.c.l.b16 %v37
  %v92 = vunpack.c.l.b16 %v38
  %v93 = vunpack.c.l.b16 %v39
  %v94 = vunpack.c.l.b16 %v40
  %v95 = vunpack.c.l.b16 %v41
  %v96 = vunpack.c.l.b16 %v42
  %v97 = vunpack.c.l.b16 %v43
  %v98 = vunpack.c.l.b16 %v44
  %v99 = vunpack.c.l.b16 %v45
  %v100 = vunpack.c.l.b16 %v46
  %v101 = vpack.c.b16 %v78, %v77
  %v102 = vpack.c.b16 %v80, %v79
  %v103 = vpack.c.b16 %v82, %v81
  %v104 = vpack.c.b16 %v84, %v83
  %v105 = vpack.c.b16 %v86, %v85
  %v106 = vpack.c.b16 %v88, %v87
  %v107 = vpack.c.b16 %v90, %v89
  %v108 = vpack.c.b16 %v92, %v91
  %v109 = vpack.c.b16 %v94, %v93
  %v110 = vpack.c.b16 %v96, %v95
  %v111 = vpack.c.b16 %v98, %v97
  %v112 = vpack.c.b16 %v100, %v99
  %vm125 = vcmask 523264
  %v127 = vsel %vm125, %v51, 0
  %129 = vmatpush.bf16.msra.mxu0 %v108
  %130 = vmatpush.bf16.msra.mxu0 %v107
  %131 = vmatpush.bf16.msra.mxu0 %v106
  %132 = vmatpush.bf16.msra.mxu0 %v105
  %133 = vmatpush.bf16.msra.mxu0 %v104
  %134 = vmatpush.bf16.msra.mxu0 %v103
  %135 = vmatpush.bf16.msra.mxu0 %v102
  %136 = vmatpush.bf16.msra.mxu0 %v101
  %137 = vmatmul.bf16.gmra.mxu0 %v50
  %v138 = vpop.f32.mrf.mxu0
  %v139 = vadd.f32 0.0, %v138
  %v140 = vpop.f32.mrf.mxu0
  %141 = vdwg.mxu0
  %142 = vmatpush.bf16.msra.mxu0 0
  %143 = vmatpush.bf16.msra.mxu0 0
  %144 = vmatpush.bf16.msra.mxu0 0
  %145 = vmatpush.bf16.msra.mxu0 0
  %146 = vmatpush.bf16.msra.mxu0 %v112
  %147 = vmatpush.bf16.msra.mxu0 %v111
  %148 = vmatpush.bf16.msra.mxu0 %v110
  %149 = vmatpush.bf16.msra.mxu0 %v109
  %150 = vmatmul.bf16.gmra.mxu0 %v127
  %v151 = vpop.f32.mrf.mxu0
  %v152 = vadd.f32 %v139, %v151
  %v153 = vpop.f32.mrf.mxu0
  %154 = vdwg.mxu0
  %v155 = vadd.f32 %v22, %v152
  %vm156 = vcmask 261120
  %157 = vst.msk [vmem:[#allocation2] sm:$0xff] %vm156, %v155
  // Predicated region
  $region18: #{clip_forward.23} parent=0 // pred_check
    %p158 = pneg %p15
  $region19: #{clip_forward.23} parent=0 // pred_check_branch
    %160 = sbr.rel (%p158) target = $region21
  $region20: #{clip_forward.23} parent=0 // pred_region
    %v161 = vld [vmem:[#allocation2] sm:$0xff]
    %v162 = vld [vmem:[%s2] sm:$0x1]
    %v164 = vperm.slane %v162, 0
    %v166 = vadd.f32 %v161, %v164
    %167 = vst.msk [vmem:[%s3] sm:$0xff] %vm156, %v166
  $region21: #{clip_forward.23} parent=0 // pred_fallthru
    _
  // Predicated region
  $region22: #{clip_forward.23} parent=0 // pred_check
    _
  $region23: #{clip_forward.23} parent=0 // pred_check_branch
    %169 = sbr.rel (0) target = $region25
  $region24: #{clip_forward.23} parent=0 // pred_region
    _
  $region25: #{clip_forward.23} parent=0 // pred_fallthru
    _
  // Predicated region
  $region26: #{clip_forward.23} parent=0 // pred_check
    _
  $region27: #{clip_forward.23} parent=0 // pred_check_branch
    %171 = sbr.rel (0) target = $region29
  $region28: #{clip_forward.23} parent=0 // pred_region
    _
  $region29: #{clip_forward.23} parent=0 // pred_fallthru
    _

// kernel: clip_forward.25
$region0: #{clip_forward.25}
  #allocation0 [shape = 'u32[]', space=smem, size = 0x4, offset = 0x4, fixed_abs, tag = 'smem constant byte address 0x4 - core index']
  #allocation1 [shape = 'u32[72,128]{1,0:T(1,128)}', space=vmem, size = 0x9000, scoped, tag = 'internal scratch']
  %s0 = inlined_call_operand.vmem [shape: bf16[2,5,96], index: 0, kind: input, shape index: {}]
  %s1 = inlined_call_operand.vmem [shape: bf16[2,5,32], index: 1, kind: output, shape index: {}]
  %s2 = sld [smem:[#allocation0]]
  $region37: #{clip_forward.25} parent=0
    _
  %s4 = ssub.s32 1, %s2
  %s5 = scalar_select 0, %s4, %s2
  loop: start=0, step=1, limit=4
  $region2: #{clip_forward.25} parent=0 // loop_pre_header
    _
  $region3: #{clip_forward.25} parent=0 // loop_header
    %s7 = sphi 0, %s11
    %p8 = scmp.ge.s32.totalorder %s7, 4
    %s17 = sphi 0, %s19
    %s20 = sphi 0, %s17
    %s21 = sphi 0, %s20
    %s37 = sphi 0, %s21
    %s43 = sphi 0, %s45
    %s46 = sphi 0, %s43
    %s47 = sphi 0, %s46
    %s63 = sphi 0, %s47
  $region4: #{clip_forward.25} parent=0 // loop_header_branch
    %10 = sbr.rel (%p8) target = $region8
  $region5: #{clip_forward.25} parent=0 // loop_body
    %s12 = ssub.s32 %s7, 1
    %s13 = ssub.s32 %s7, 2
    %s14 = sadd.s32 %s7, 1
    %s15 = ssub.s32 %s7, %s14
    %p16 = scmp.eq.s32.totalorder %s15, 0
    %s18 = sadd.s32 %s17, 1
    %s19 = scalar_select %p16, %s17, %s18
    %p22 = pneg %p16
    %p23 = scmp.eq.s32.totalorder %s7, 1
    %p24 = por %p22, %p23
    %p25 = scmp.ne.s32.totalorder %s17, %s20
    %p26 = scmp.eq.s32.totalorder %s7, 0
    %p27 = por %p25, %p26
    %p28 = scmp.ne.s32.totalorder %s17, %s20
    %p29 = scmp.eq.s32.totalorder %s12, 1
    %p30 = por %p28, %p29
    %p31 = scmp.ne.s32.totalorder %s20, %s21
    %p32 = scmp.eq.s32.totalorder %s12, 0
    %p33 = por %p31, %p32
    %p34 = scmp.ne.s32.totalorder %s20, %s21
    %p35 = scmp.eq.s32.totalorder %s13, 1
    %p36 = por %p34, %p35
    %p38 = scmp.ne.s32.totalorder %s21, %s37
    %p39 = scmp.eq.s32.totalorder %s13, 0
    %p40 = por %p38, %p39
    %s41 = ssub.s32 %s7, %s14
    %p42 = scmp.eq.s32.totalorder %s41, 0
    %s44 = sadd.s32 %s43, 1
    %s45 = scalar_select %p42, %s43, %s44
    %p48 = pneg %p42
    %p49 = scmp.eq.s32.totalorder %s7, 1
    %p50 = por %p48, %p49
    %p51 = scmp.ne.s32.totalorder %s43, %s46
    %p52 = scmp.eq.s32.totalorder %s7, 0
    %p53 = por %p51, %p52
    %p54 = scmp.ne.s32.totalorder %s43, %s46
    %p55 = scmp.eq.s32.totalorder %s12, 1
    %p56 = por %p54, %p55
    %p57 = scmp.ne.s32.totalorder %s46, %s47
    %p58 = scmp.eq.s32.totalorder %s12, 0
    %p59 = por %p57, %p58
    %p60 = scmp.ne.s32.totalorder %s46, %s47
    %p61 = scmp.eq.s32.totalorder %s13, 1
    %p62 = por %p60, %p61
    %p64 = scmp.ne.s32.totalorder %s47, %s63
    %p65 = scmp.eq.s32.totalorder %s13, 0
    %p66 = por %p64, %p65
    %p67 = scmp.le.s32.totalorder 1, %s7
    %p68 = scmp.lt.s32.totalorder %s7, 3
    %p69 = pnand %p67, %p68
    %p70 = pneg %p69
    // Predicated region
    $region9: #{clip_forward.25} parent=5 // pred_check
      _
    $region10: #{clip_forward.25} parent=5 // pred_check_branch
      %72 = sbr.rel (%p69) target = $region12
    $region11: #{clip_forward.25} parent=5 // pred_region
      %s73 = ssub.s32 %s7, 1
    $region12: #{clip_forward.25} parent=5 // pred_fallthru
      _
    %p74 = scmp.lt.s32.totalorder %s7, 2
    // Predicated region
    $region13: #{clip_forward.25} parent=5 // pred_check
      %p75 = pneg %p74
    $region14: #{clip_forward.25} parent=5 // pred_check_branch
      %77 = sbr.rel (%p75) target = $region16
    $region15: #{clip_forward.25} parent=5 // pred_region
      // Predicated region
      $region17: #{clip_forward.25} parent=15 // pred_check
        %p78 = pneg %p27
      $region18: #{clip_forward.25} parent=15 // pred_check_branch
        %80 = sbr.rel (%p78) target = $region20
      $region19: #{clip_forward.25} parent=15 // pred_region
        %p81 = scmp.lt.s32.totalorder %s7, 1
        %s82 = scalar_select %p81, %s7, 1
        %s83 = smul.addr %s82, 4
        %s84 = scalar_lea.vmem %s0, %s83
      $region20: #{clip_forward.25} parent=15 // pred_fallthru
        _
    $region16: #{clip_forward.25} parent=5 // pred_fallthru
      _
    %p85 = scmp.le.s32.totalorder 1, %s7
    %p86 = scmp.lt.s32.totalorder %s7, 3
    %p87 = pnand %p85, %p86
    %p88 = pneg %p87
    // Predicated region
    $region21: #{clip_forward.25} parent=5 // pred_check
      _
    $region22: #{clip_forward.25} parent=5 // pred_check_branch
      %90 = sbr.rel (%p87) target = $region24
    $region23: #{clip_forward.25} parent=5 // pred_region
      %s91 = ssub.s32 %s7, 1
      %p92 = scmp.lt.s32.totalorder %s12, 1
      %s93 = scalar_select %p92, %s12, 1
      %s94 = smul.addr %s93, 4
      %s95 = scalar_lea.vmem %s0, %s94
      %p96 = pneg %p33
      %p97 = pneg %p30
      %p98 = pneg %p59
      %p99 = pneg %p56
      %p100 = scmp.lt.s32.totalorder %s12, 1
      %s101 = scalar_select %p100, %s12, 1
      %s102 = smul.addr %s101, 4
      %s103 = scalar_lea.vmem %s1, %s102
      %p104 = scmp.lt.s32.totalorder %s12, 1
      %s105 = scalar_select %p104, %s12, 1
      %s106 = smul.addr %s105, 4
      %s107 = scalar_lea.vmem %s0, %s106
      %p108 = scmp.lt.s32.totalorder %s12, 1
      %s109 = scalar_select %p108, %s12, 1
      %s110 = smul.addr %s109, 4
      %s111 = scalar_lea.vmem %s1, %s110
      %v113 = vld [vmem:[%s107] sm:$0x7]
      %115 = vrot.lane.b32.xlu0 %v113, 112
      %v116 = vpop.permute.xlu0 %115
      %v117 = vunpack.c.l.b16 %v113
      %v118 = vunpack.c.l.b16 %v116
      %v119 = vpack.c.b16 %v117, %v117
      %v120 = vpack.c.b16 %v118, %v118
      %121 = vrot.lane.b32.xlu0 %v119, 96
      %v122 = vpop.permute.xlu0 %121
      %123 = vrot.lane.b32.xlu0 %v120, 96
      %v124 = vpop.permute.xlu0 %123
      %127 = vxpose.xlu0.c.b16.start [1/8] %v122, 128
      %128 = vxpose.xlu0.c.b16.cont [2/8] 0, 128
      %129 = vxpose.xlu0.c.b16.cont [3/8] 0, 128
      %130 = vxpose.xlu0.c.b16.cont [4/8] 0, 128
      %131 = vxpose.xlu0.c.b16.cont [5/8] 0, 128
      %132 = vxpose.xlu0.c.b16.cont [6/8] 0, 128
      %133 = vxpose.xlu0.c.b16.cont [7/8] 0, 128
      %134 = vxpose.xlu0.c.b16.end [8/8] 0, 128
      %v135 = vpop.trf.xlu0
      %v136 = vpop.trf.xlu0
      %v137 = vpop.trf.xlu0
      %v138 = vpop.trf.xlu0
      %v139 = vpop.trf.xlu0
      %v140 = vpop.trf.xlu0
      %v141 = vpop.trf.xlu0
      %v142 = vpop.trf.xlu0
      %143 = vxpose.xlu0.c.b16.start [1/8] %v124, 128
      %144 = vxpose.xlu0.c.b16.cont [2/8] 0, 128
      %145 = vxpose.xlu0.c.b16.cont [3/8] 0, 128
      %146 = vxpose.xlu0.c.b16.cont [4/8] 0, 128
      %147 = vxpose.xlu0.c.b16.cont [5/8] 0, 128
      %148 = vxpose.xlu0.c.b16.cont [6/8] 0, 128
      %149 = vxpose.xlu0.c.b16.cont [7/8] 0, 128
      %150 = vxpose.xlu0.c.b16.end [8/8] 0, 128
      %v151 = vpop.trf.xlu0
      %v152 = vpop.trf.xlu0
      %v153 = vpop.trf.xlu0
      %v154 = vpop.trf.xlu0
      %v155 = vpop.trf.xlu0
      %v156 = vpop.trf.xlu0
      %v157 = vpop.trf.xlu0
      %v158 = vpop.trf.xlu0
      %vm159 = vcmask 130048
      %v161 = vsel %vm159, %v113, 0
      %163 = vmatpush.bf16.msra.mxu0 0
      %164 = vmatpush.bf16.msra.mxu0 0
      %165 = vmatpush.bf16.msra.mxu0 0
      %166 = vmatpush.bf16.msra.mxu0 0
      %167 = vmatpush.bf16.msra.mxu0 0
      %168 = vmatpush.bf16.msra.mxu0 0
      %169 = vmatpush.bf16.msra.mxu0 0
      %170 = vmatpush.bf16.msra.mxu0 %v135
      %171 = vmatmul.bf16.gmra.mxu0 %v161
      %v172 = vpop.f32.mrf.mxu0
      %v173 = vadd.f32 0.0, %v172
      %v174 = vpop.f32.mrf.mxu0
      %175 = vdwg.mxu0
      %v177 = vsel %vm159, %v116, 0
      %179 = vmatpush.bf16.msra.mxu0 0
      %180 = vmatpush.bf16.msra.mxu0 0
      %181 = vmatpush.bf16.msra.mxu0 0
      %182 = vmatpush.bf16.msra.mxu0 0
      %183 = vmatpush.bf16.msra.mxu0 0
      %184 = vmatpush.bf16.msra.mxu0 0
      %185 = vmatpush.bf16.msra.mxu0 0
      %186 = vmatpush.bf16.msra.mxu0 %v151
      %187 = vmatmul.bf16.gmra.mxu0 %v177
      %v188 = vpop.f32.mrf.mxu0
      %v189 = vadd.f32 0.0, %v188
      %v190 = vpop.f32.mrf.mxu0
      %191 = vdwg.mxu0
      %v192 = vmul.f32 %v173, 0.25
      %v193 = vmul.f32 %v189, 0.25
      %vm194 = vcmask 36864
      %v195 = vsel %vm194, %v192, -inf
      %196 = vmax.xlane.f32.xlu0 %v195
      %v197 = vpop.xlane.xlu0 %196
      %v198 = vsel %vm194, %v193, -inf
      %199 = vmax.xlane.f32.xlu0 %v198
      %v200 = vpop.xlane.xlu0 %199
      %v201 = vsub.f32 %v192, %v197
      %v202 = vsub.f32 %v193, %v200
      %v203 = vmul.f32 %v201, 1.442695
      %v204 = vpow.pop %v203
      %v205 = vmul.f32 %v202, 1.442695
      %v206 = vpow.pop %v205
      %v207 = vsel %vm194, %v204, 0.0
      %208 = vadd.xlane.f32.xlu0 %v207
      %v209 = vpop.xlane.xlu0 %208
      %v210 = vsel %vm194, %v206, 0.0
      %211 = vadd.xlane.f32.xlu0 %v210
      %v212 = vpop.xlane.xlu0 %211
      %v213 = vrcp.pop %v209
      %v214 = vrcp.pop %v212
      %v215 = vmul.f32 %v204, %v213
      %v216 = vmul.f32 %v206, %v214
      %v217 = vpack.c.bf16 %v215, %v215
      %v218 = vpack.c.bf16 %v216, %v216
      %219 = vrot.lane.b32.xlu0 %v119, 64
      %v220 = vpop.permute.xlu0 %219
      %221 = vrot.lane.b32.xlu0 %v120, 64
      %v222 = vpop.permute.xlu0 %221
      %225 = vxpose.xlu0.c.b16.start [1/8] %v220, 128
      %226 = vxpose.xlu0.c.b16.cont [2/8] 0, 128
      %227 = vxpose.xlu0.c.b16.cont [3/8] 0, 128
      %228 = vxpose.xlu0.c.b16.cont [4/8] 0, 128
      %229 = vxpose.xlu0.c.b16.cont [5/8] 0, 128
      %230 = vxpose.xlu0.c.b16.cont [6/8] 0, 128
      %231 = vxpose.xlu0.c.b16.cont [7/8] 0, 128
      %232 = vxpose.xlu0.c.b16.end [8/8] 0, 128
      %v233 = vpop.trf.xlu0
      %v234 = vpop.trf.xlu0
      %v235 = vpop.trf.xlu0
      %v236 = vpop.trf.xlu0
      %v237 = vpop.trf.xlu0
      %v238 = vpop.trf.xlu0
      %v239 = vpop.trf.xlu0
      %v240 = vpop.trf.xlu0
      %241 = vxpose.xlu0.c.b16.start [1/8] %v222, 128
      %242 = vxpose.xlu0.c.b16.cont [2/8] 0, 128
      %243 = vxpose.xlu0.c.b16.cont [3/8] 0, 128
      %244 = vxpose.xlu0.c.b16.cont [4/8] 0, 128
      %245 = vxpose.xlu0.c.b16.cont [5/8] 0, 128
      %246 = vxpose.xlu0.c.b16.cont [6/8] 0, 128
      %247 = vxpose.xlu0.c.b16.cont [7/8] 0, 128
      %248 = vxpose.xlu0.c.b16.end [8/8] 0, 128
      %v249 = vpop.trf.xlu0
      %v250 = vpop.trf.xlu0
      %v251 = vpop.trf.xlu0
      %v252 = vpop.trf.xlu0
      %v253 = vpop.trf.xlu0
      %v254 = vpop.trf.xlu0
      %v255 = vpop.trf.xlu0
      %v256 = vpop.trf.xlu0
      %vm257 = vcmask 39936
      %v259 = vsel %vm257, %v233, 0
      %v262 = vsel %vm257, %v217, 0
      %264 = vmatpush.bf16.xpose.msra.mxu0 0
      %265 = vmatpush.bf16.xpose.msra.mxu0 0
      %266 = vmatpush.bf16.xpose.msra.mxu0 0
      %267 = vmatpush.bf16.xpose.msra.mxu0 0
      %268 = vmatpush.bf16.xpose.msra.mxu0 0
      %269 = vmatpush.bf16.xpose.msra.mxu0 0
      %270 = vmatpush.bf16.xpose.msra.mxu0 0
      %271 = vmatpush.bf16.xpose.msra.mxu0 %v262
      %272 = vmatmul.bf16.gmra.mxu0 %v259
      %v273 = vpop.f32.mrf.mxu0
      %v274 = vadd.f32 0.0, %v273
      %v275 = vpop.f32.mrf.mxu0
      %v276 = vadd.f32 0.0, %v275
      %277 = vdwg.mxu0
      %v279 = vsel %vm257, %v249, 0
      %v282 = vsel %vm257, %v218, 0
      %284 = vmatpush.bf16.xpose.msra.mxu0 0
      %285 = vmatpush.bf16.xpose.msra.mxu0 0
      %286 = vmatpush.bf16.xpose.msra.mxu0 0
      %287 = vmatpush.bf16.xpose.msra.mxu0 0
      %288 = vmatpush.bf16.xpose.msra.mxu0 0
      %289 = vmatpush.bf16.xpose.msra.mxu0 0
      %290 = vmatpush.bf16.xpose.msra.mxu0 0
      %291 = vmatpush.bf16.xpose.msra.mxu0 %v282
      %292 = vmatmul.bf16.gmra.mxu0 %v279
      %v293 = vpop.f32.mrf.mxu0
      %v294 = vadd.f32 0.0, %v293
      %v295 = vpop.f32.mrf.mxu0
      %v296 = vadd.f32 0.0, %v295
      %297 = vdwg.mxu0
      %298 = vxpose.xlu0.b32.start [1/16] %v274, 128
      %299 = vxpose.xlu0.b32.cont [2/16] %v276, 128
      %300 = vxpose.xlu0.b32.cont [3/16] 0.0, 128
      %301 = vxpose.xlu0.b32.cont [4/16] 0.0, 128
      %302 = vxpose.xlu0.b32.cont [5/16] 0.0, 128
      %303 = vxpose.xlu0.b32.cont [6/16] 0.0, 128
      %304 = vxpose.xlu0.b32.cont [7/16] 0.0, 128
      %305 = vxpose.xlu0.b32.cont [8/16] 0.0, 128
      %306 = vxpose.xlu0.b32.cont [9/16] 0.0, 128
      %307 = vxpose.xlu0.b32.cont [10/16] 0.0, 128
      %308 = vxpose.xlu0.b32.cont [11/16] 0.0, 128
      %309 = vxpose.xlu0.b32.cont [12/16] 0.0, 128
      %310 = vxpose.xlu0.b32.cont [13/16] 0.0, 128
      %311 = vxpose.xlu0.b32.cont [14/16] 0.0, 128
      %312 = vxpose.xlu0.b32.cont [15/16] 0.0, 128
      %313 = vxpose.xlu0.b32.end [16/16] 0.0, 128
      %v314 = vpop.trf.xlu0
      %v315 = vpop.trf.xlu0
      %v316 = vpop.trf.xlu0
      %v317 = vpop.trf.xlu0
      %v318 = vpop.trf.xlu0
      %v319 = vpop.trf.xlu0
      %v320 = vpop.trf.xlu0
      %v321 = vpop.trf.xlu0
      %v322 = vpop.trf.xlu0
      %v323 = vpop.trf.xlu0
      %v324 = vpop.trf.xlu0
      %v325 = vpop.trf.xlu0
      %v326 = vpop.trf.xlu0
      %v327 = vpop.trf.xlu0
      %v328 = vpop.trf.xlu0
      %v329 = vpop.trf.xlu0
      %330 = vxpose.xlu0.b32.start [1/16] %v294, 128
      %331 = vxpose.xlu0.b32.cont [2/16] %v296, 128
      %332 = vxpose.xlu0.b32.cont [3/16] 0.0, 128
      %333 = vxpose.xlu0.b32.cont [4/16] 0.0, 128
      %334 = vxpose.xlu0.b32.cont [5/16] 0.0, 128
      %335 = vxpose.xlu0.b32.cont [6/16] 0.0, 128
      %336 = vxpose.xlu0.b32.cont [7/16] 0.0, 128
      %337 = vxpose.xlu0.b32.cont [8/16] 0.0, 128
      %338 = vxpose.xlu0.b32.cont [9/16] 0.0, 128
      %339 = vxpose.xlu0.b32.cont [10/16] 0.0, 128
      %340 = vxpose.xlu0.b32.cont [11/16] 0.0, 128
      %341 = vxpose.xlu0.b32.cont [12/16] 0.0, 128
      %342 = vxpose.xlu0.b32.cont [13/16] 0.0, 128
      %343 = vxpose.xlu0.b32.cont [14/16] 0.0, 128
      %344 = vxpose.xlu0.b32.cont [15/16] 0.0, 128
      %345 = vxpose.xlu0.b32.end [16/16] 0.0, 128
      %v346 = vpop.trf.xlu0
      %v347 = vpop.trf.xlu0
      %v348 = vpop.trf.xlu0
      %v349 = vpop.trf.xlu0
      %v350 = vpop.trf.xlu0
      %v351 = vpop.trf.xlu0
      %v352 = vpop.trf.xlu0
      %v353 = vpop.trf.xlu0
      %v354 = vpop.trf.xlu0
      %v355 = vpop.trf.xlu0
      %v356 = vpop.trf.xlu0
      %v357 = vpop.trf.xlu0
      %v358 = vpop.trf.xlu0
      %v359 = vpop.trf.xlu0
      %v360 = vpop.trf.xlu0
      %v361 = vpop.trf.xlu0
      %v363 = vunpack.c.l.s4 1983009808
      %v364 = vunpack.c.0.s8 %v363
      %v365 = vperm.slane %v314, %v364
      %v366 = vrot.slane %v314, 4
      %vm367 = vcmask 1047556
      %v368 = vsel %vm367, 0.0, %v366
      %v370 = vunpack.c.l.s4 1983009808
      %v371 = vunpack.c.0.s8 %v370
      %v372 = vperm.slane %v346, %v371
      %v373 = vrot.slane %v346, 4
      %v374 = vsel %vm367, 0.0, %v373
      %v375 = vrot.slane %v372, 4
      %v376 = vsel %vm367, %v375, %v365
      %v377 = vrot.slane %v365, 4
      %v378 = vsel %vm367, %v372, %v377
      %v380 = vunpack.c.l.s4 1934713408
      %v381 = vunpack.c.0.s8 %v380
      %v382 = vperm.slane %v376, %v381
      %v384 = vunpack.c.l.s4 1934713408
      %v385 = vunpack.c.0.s8 %v384
      %v386 = vperm.slane %v378, %v385
      %v387 = vrot.slane %v374, 4
      %v388 = vsel %vm367, %v387, %v368
      %v389 = vrot.slane %v382, 4
      %v390 = vsel %vm367, 0.0, %v389
      %v391 = vrot.slane %v386, 4
      %v392 = vsel %vm367, 0.0, %v391
      %v393 = vsel %vm367, %v391, %v382
      %v395 = vunpack.c.l.s4 1983009808
      %v396 = vunpack.c.0.s8 %v395
      %v397 = vperm.slane %v393, %v396
      %v398 = vrot.slane %v392, 4
      %v399 = vsel %vm367, %v398, %v390
      %v401 = vunpack.c.l.s4 1983009808
      %v402 = vunpack.c.0.s8 %v401
      %v403 = vperm.slane %v399, %v402
      %v404 = vrot.slane %v403, 4
      %v405 = vsel %vm367, %v404, %v397
      %v407 = vunpack.c.l.s4 1934713408
      %v408 = vunpack.c.0.s8 %v407
      %v409 = vperm.slane %v405, %v408
      %v411 = vunpack.c.l.s4 1934713408
      %v412 = vunpack.c.0.s8 %v411
      %v413 = vperm.slane %v388, %v412
      %v415 = vunpack.c.l.s4 1934713408
      %v416 = vunpack.c.0.s8 %v415
      %v417 = vperm.slane %v413, %v416
      %v418 = vrot.slane %v417, 4
      %v419 = vsel %vm367, %v418, %v409
      %v420 = vrot.slane %v409, 4
      %v421 = vsel %vm367, %v417, %v420
      %423 = vrot.lane.b32.xlu0 %v421, 16
      %v424 = vpop.permute.xlu0 %423
      %v426 = vsel %vm159, %v419, %v424
      %v427 = vpack.c.bf16 %v426, %v426
      %vm428 = vcmask 256000
      %vm429 = vsmask.f32 2304
      %vm430 = vmand %vm428, %vm429
      %v431 = vld [vmem:[%s111] sm:$0x7]
      %v432 = vsel %vm430, %v427, %v431
      %433 = vst [vmem:[%s111] sm:$0x7] %v432
      %p434 = scmp.lt.s32.totalorder %s12, 1
      %s435 = scalar_select %p434, %s12, 1
      %s436 = smul.addr %s435, 4
      %s437 = scalar_lea.vmem %s1, %s436
      // Predicated region
      $region25: #{clip_forward.25} parent=23 // pred_check
        %p438 = pneg %p56
      $region26: #{clip_forward.25} parent=23 // pred_check_branch
        %440 = sbr.rel (%p438) target = $region28
      $region27: #{clip_forward.25} parent=23 // pred_region
        _
      $region28: #{clip_forward.25} parent=23 // pred_fallthru
        _
    $region24: #{clip_forward.25} parent=5 // pred_fallthru
      _
    %p441 = scmp.le.s32.totalorder 2, %s7
    // Predicated region
    $region29: #{clip_forward.25} parent=5 // pred_check
      %p442 = pneg %p441
    $region30: #{clip_forward.25} parent=5 // pred_check_branch
      %444 = sbr.rel (%p442) target = $region32
    $region31: #{clip_forward.25} parent=5 // pred_region
      %s445 = ssub.s32 %s7, 2
      // Predicated region
      $region33: #{clip_forward.25} parent=31 // pred_check
        %p446 = pneg %p62
      $region34: #{clip_forward.25} parent=31 // pred_check_branch
        %448 = sbr.rel (%p446) target = $region36
      $region35: #{clip_forward.25} parent=31 // pred_region
        %p449 = scmp.lt.s32.totalorder %s13, 1
        %s450 = scalar_select %p449, %s13, 1
        %s451 = smul.addr %s450, 4
        %s452 = scalar_lea.vmem %s1, %s451
      $region36: #{clip_forward.25} parent=31 // pred_fallthru
        _
    $region32: #{clip_forward.25} parent=5 // pred_fallthru
      _
  $region6: #{clip_forward.25} parent=0 // loop_footer
    %s11 = sadd.s32 1, %s7
  $region7: #{clip_forward.25} parent=0 // loop_footer_branch
    %6 = sbr.rel target = $region3
  $region8: #{clip_forward.25} parent=0 // loop_exit
    _

// kernel: clip_forward.24
$region0: #{clip_forward.24}
  #allocation0 [shape = 'u32[]', space=smem, size = 0x4, offset = 0x4, fixed_abs, tag = 'smem constant byte address 0x4 - core index']
  #allocation1 [shape = 'u32[72,128]{1,0:T(1,128)}', space=vmem, size = 0x9000, scoped, tag = 'internal scratch']
  #allocation2 [shape = 'f32[10,96]{1,0:T(8,128)}', space=vmem, size = 0x2000, scoped, tag = 'scratch operand']
  %s0 = inlined_call_operand.vmem [shape: f32[10,32], index: 0, kind: input, shape index: {}]
  %s1 = inlined_call_operand.vmem [shape: bf16[32,96], index: 1, kind: input, shape index: {}]
  %s2 = inlined_call_operand.vmem [shape: f32[1,96], index: 2, kind: input, shape index: {}]
  %s3 = inlined_call_operand.vmem [shape: f32[1,32], index: 3, kind: input, shape index: {}]
  %s4 = inlined_call_operand.vmem [shape: f32[1,32], index: 4, kind: input, shape index: {}]
  %s5 = inlined_call_operand.vmem [shape: bf16[10,96], index: 5, kind: output, shape index: {}]
  %s6 = sld [smem:[#allocation0]]
  $region38: #{clip_forward.24} parent=0
    _
  %s8 = ssub.s32 1, %s6
  %s9 = scalar_select 0, %s8, %s6
  // Predicated region
  $region2: #{clip_forward.24} parent=0 // pred_check
    _
  $region3: #{clip_forward.24} parent=0 // pred_check_branch
    %11 = sbr.rel (0) target = $region5
  $region4: #{clip_forward.24} parent=0 // pred_region
    _
  $region5: #{clip_forward.24} parent=0 // pred_fallthru
    _
  // Predicated region
  $region6: #{clip_forward.24} parent=0 // pred_check
    _
  $region7: #{clip_forward.24} parent=0 // pred_check_branch
    %13 = sbr.rel (0) target = $region9
  $region8: #{clip_forward.24} parent=0 // pred_region
    _
  $region9: #{clip_forward.24} parent=0 // pred_fallthru
    _
  // Predicated region
  $region10: #{clip_forward.24} parent=0 // pred_check
    _
  $region11: #{clip_forward.24} parent=0 // pred_check_branch
    %15 = sbr.rel (0) target = $region13
  $region12: #{clip_forward.24} parent=0 // pred_region
    _
  $region13: #{clip_forward.24} parent=0 // pred_fallthru
    _
  // Predicated region
  $region14: #{clip_forward.24} parent=0 // pred_check
    _
  $region15: #{clip_forward.24} parent=0 // pred_check_branch
    %17 = sbr.rel (0) target = $region17
  $region16: #{clip_forward.24} parent=0 // pred_region
    _
  $region17: #{clip_forward.24} parent=0 // pred_fallthru
    _
  // Predicated region
  $region18: #{clip_forward.24} parent=0 // pred_check
    _
  $region19: #{clip_forward.24} parent=0 // pred_check_branch
    %19 = sbr.rel (0) target = $region21
  $region20: #{clip_forward.24} parent=0 // pred_region
    _
  $region21: #{clip_forward.24} parent=0 // pred_fallthru
    _
  %p21 = scmp.eq.s32.totalorder 0, 0
  // Predicated region
  $region22: #{clip_forward.24} parent=0 // pred_check
    %p22 = pneg %p21
  $region23: #{clip_forward.24} parent=0 // pred_check_branch
    %24 = sbr.rel (%p22) target = $region25
  $region24: #{clip_forward.24} parent=0 // pred_region
    %vm25 = vcmask 785408
    %26 = vst.msk [vmem:[#allocation2] sm:$0xff] %vm25, 0.0
    %vm27 = vcmask 779264
    %28 = vst.msk [vmem:[#allocation2 + $0x8] sm:$0x3] %vm27, 0.0
  $region25: #{clip_forward.24} parent=0 // pred_fallthru
    _
  %v29 = vld [vmem:[%s0] sm:$0xff]
  %v30 = vld [vmem:[%s0 + $0x8] sm:$0x3]
  %vm31 = vcmask 261120
  %v32 = vsel %vm31, %v29, 0.0
  %33 = vadd.xlane.f32.xlu0 %v32
  %v34 = vpop.xlane.xlu0 %33
  %vm35 = vcmask 254976
  %v36 = vsel %vm35, %v30, 0.0
  %37 = vadd.xlane.f32.xlu0 %v36
  %v38 = vpop.xlane.xlu0 %37
  %v39 = vrcp.pop 32.0
  %v40 = vmul.f32 32.0, %v39
  %v41 = vsub.f32 1.0, %v40
  %v42 = vmul.f32 %v39, %v41
  %v43 = vadd.f32 %v39, %v42
  %vm44 = vweird.f32 %v39
  %v45 = vsel %vm44, %v39, %v43
  %v46 = vmul.f32 %v34, %v45
  %v47 = vmul.f32 %v38, %v45
  %v48 = vsub.f32 %v29, %v46
  %v49 = vsub.f32 %v30, %v47
  %v50 = vmul.f32 %v48, %v48
  %v51 = vmul.f32 %v49, %v49
  %v52 = vsel %vm31, %v50, 0.0
  %53 = vadd.xlane.f32.xlu0 %v52
  %v54 = vpop.xlane.xlu0 %53
  %v55 = vsel %vm35, %v51, 0.0
  %56 = vadd.xlane.f32.xlu0 %v55
  %v57 = vpop.xlane.xlu0 %56
  %v58 = vmul.f32 %v54, %v45
  %v59 = vmul.f32 %v57, %v45
  %v60 = vadd.f32 %v58, 1e-05
  %v61 = vadd.f32 %v59, 1e-05
  %v62 = vrsqrt.pop %v60
  %v63 = vmul.f32 %v62, %v60
  %v64 = vmul.f32 %v63, %v62
  %v65 = vmul.f32 0.5, %v64
  %v66 = vsub.f32 1.5, %v65
  %v67 = vmul.f32 %v62, %v66
  %vm68 = vweird.f32 %v60
  %vm69 = vweird.f32 %v62
  %vm70 = vmor %vm68, %vm69
  %v71 = vsel %vm70, %v62, %v67
  %v72 = vrsqrt.pop %v61
  %v73 = vmul.f32 %v72, %v61
  %v74 = vmul.f32 %v73, %v72
  %v75 = vmul.f32 0.5, %v74
  %v76 = vsub.f32 1.5, %v75
  %v77 = vmul.f32 %v72, %v76
  %vm78 = vweird.f32 %v61
  %vm79 = vweird.f32 %v72
  %vm80 = vmor %vm78, %vm79
  %v81 = vsel %vm80, %v72, %v77
  %v82 = vmul.f32 %v48, %v71
  %v83 = vmul.f32 %v49, %v81
  %v84 = vld [vmem:[%s3] sm:$0x1]
  %v86 = vperm.slane %v84, 0
  %v88 = vmul.f32 %v82, %v86
  %v89 = vmul.f32 %v83, %v86
  %v90 = vld [vmem:[%s4] sm:$0x1]
  %v92 = vperm.slane %v90, 0
  %v94 = vadd.f32 %v88, %v92
  %v95 = vadd.f32 %v89, %v92
  %v96 = vpack.c.bf16 %v95, %v94
  %v97 = vld [vmem:[#allocation2] sm:$0xff]
  %v98 = vld [vmem:[#allocation2 + $0x8] sm:$0x3]
  %v99 = vld [vmem:[%s1] sm:$0xf]
  %v100 = vld [vmem:[%s1 + $0x4] sm:$0xf]
  %v101 = vld [vmem:[%s1 + $0x8] sm:$0xf]
  %v102 = vld [vmem:[%s1 + $0xc] sm:$0xf]
  %v107 = vunpack.c.l.b16 %v99
  %v108 = vunpack.c.l.b16 %v100
  %v109 = vunpack.c.l.b16 %v101
  %v110 = vunpack.c.l.b16 %v102
  %v111 = vpack.c.b16 %v108, %v107
  %v112 = vpack.c.b16 %v110, %v109
  %v116 = vsel %vm31, %v96, 0
  %118 = vmatpush.bf16.msra.mxu0 0
  %119 = vmatpush.bf16.msra.mxu0 0
  %120 = vmatpush.bf16.msra.mxu0 0
  %121 = vmatpush.bf16.msra.mxu0 0
  %122 = vmatpush.bf16.msra.mxu0 0
  %123 = vmatpush.bf16.msra.mxu0 0
  %124 = vmatpush.bf16.msra.mxu0 %v112
  %125 = vmatpush.bf16.msra.mxu0 %v111
  %126 = vmatmul.bf16.gmra.mxu0 %v116
  %v127 = vpop.f32.mrf.mxu0
  %v128 = vadd.f32 0.0, %v127
  %v129 = vpop.f32.mrf.mxu0
  %v130 = vadd.f32 0.0, %v129
  %131 = vdwg.mxu0
  %v132 = vadd.f32 %v97, %v128
  %v133 = vadd.f32 %v98, %v130
  %vm134 = vcmask 785408
  %135 = vst.msk [vmem:[#allocation2] sm:$0xff] %vm134, %v132
  %vm136 = vcmask 779264
  %137 = vst.msk [vmem:[#allocation2 + $0x8] sm:$0x3] %vm136, %v133
  // Predicated region
  $region26: #{clip_forward.24} parent=0 // pred_check
    %p138 = pneg %p21
  $region27: #{clip_forward.24} parent=0 // pred_check_branch
    %140 = sbr.rel (%p138) target = $region29
  $region28: #{clip_forward.24} parent=0 // pred_region
    %v141 = vld [vmem:[#allocation2] sm:$0xff]
    %v142 = vld [vmem:[#allocation2 + $0x8] sm:$0x3]
    %v143 = vld [vmem:[%s2] sm:$0x1]
    %v145 = vperm.slane %v143, 0
    %v147 = vadd.f32 %v141, %v145
    %v148 = vadd.f32 %v142, %v145
    %v149 = vpack.c.bf16 %v147, %v147
    %v150 = vpack.c.bf16 %v148, %v148
    %vm151 = vcmask 781312
    %152 = vst.msk [vmem:[%s5] sm:$0xf] %vm151, %v149
    %vm153 = vcmask 778240
    %154 = vst.msk [vmem:[%s5 + $0x4] sm:$0x1] %vm153, %v150
  $region29: #{clip_forward.24} parent=0 // pred_fallthru
    _
  // Predicated region
  $region30: #{clip_forward.24} parent=0 // pred_check
    _
  $region31: #{clip_forward.24} parent=0 // pred_check_branch
    %156 = sbr.rel (0) target = $region33
  $region32: #{clip_forward.24} parent=0 // pred_region
    _
  $region33: #{clip_forward.24} parent=0 // pred_fallthru
    _
  // Predicated region
  $region34: #{clip_forward.24} parent=0 // pred_check
    _
  $region35: #{clip_forward.24} parent=0 // pred_check_branch
    %158 = sbr.rel (0) target = $region37
  $region36: #{clip_forward.24} parent=0 // pred_region
    _
  $region37: #{clip_forward.24} parent=0 // pred_fallthru
    _

// kernel: clip_forward.27
$region0: #{clip_forward.27}
  #allocation0 [shape = 'u32[]', space=smem, size = 0x4, offset = 0x4, fixed_abs, tag = 'smem constant byte address 0x4 - core index']
  #allocation1 [shape = 'u32[72,128]{1,0:T(1,128)}', space=vmem, size = 0x9000, scoped, tag = 'internal scratch']
  #allocation2 [shape = 'f32[10,64]{1,0:T(8,128)}', space=vmem, size = 0x2000, scoped, tag = 'scratch operand']
  %s0 = inlined_call_operand.vmem [shape: f32[10,32], index: 0, kind: input, shape index: {}]
  %s1 = inlined_call_operand.vmem [shape: bf16[32,64], index: 1, kind: input, shape index: {}]
  %s2 = inlined_call_operand.vmem [shape: f32[1,64], index: 2, kind: input, shape index: {}]
  %s3 = inlined_call_operand.vmem [shape: f32[1,32], index: 3, kind: input, shape index: {}]
  %s4 = inlined_call_operand.vmem [shape: f32[1,32], index: 4, kind: input, shape index: {}]
  %s5 = inlined_call_operand.vmem [shape: bf16[10,64], index: 5, kind: output, shape index: {}]
  %s6 = sld [smem:[#allocation0]]
  $region38: #{clip_forward.27} parent=0
    _
  %s8 = ssub.s32 1, %s6
  %s9 = scalar_select 0, %s8, %s6
  // Predicated region
  $region2: #{clip_forward.27} parent=0 // pred_check
    _
  $region3: #{clip_forward.27} parent=0 // pred_check_branch
    %11 = sbr.rel (0) target = $region5
  $region4: #{clip_forward.27} parent=0 // pred_region
    _
  $region5: #{clip_forward.27} parent=0 // pred_fallthru
    _
  // Predicated region
  $region6: #{clip_forward.27} parent=0 // pred_check
    _
  $region7: #{clip_forward.27} parent=0 // pred_check_branch
    %13 = sbr.rel (0) target = $region9
  $region8: #{clip_forward.27} parent=0 // pred_region
    _
  $region9: #{clip_forward.27} parent=0 // pred_fallthru
    _
  // Predicated region
  $region10: #{clip_forward.27} parent=0 // pred_check
    _
  $region11: #{clip_forward.27} parent=0 // pred_check_branch
    %15 = sbr.rel (0) target = $region13
  $region12: #{clip_forward.27} parent=0 // pred_region
    _
  $region13: #{clip_forward.27} parent=0 // pred_fallthru
    _
  // Predicated region
  $region14: #{clip_forward.27} parent=0 // pred_check
    _
  $region15: #{clip_forward.27} parent=0 // pred_check_branch
    %17 = sbr.rel (0) target = $region17
  $region16: #{clip_forward.27} parent=0 // pred_region
    _
  $region17: #{clip_forward.27} parent=0 // pred_fallthru
    _
  // Predicated region
  $region18: #{clip_forward.27} parent=0 // pred_check
    _
  $region19: #{clip_forward.27} parent=0 // pred_check_branch
    %19 = sbr.rel (0) target = $region21
  $region20: #{clip_forward.27} parent=0 // pred_region
    _
  $region21: #{clip_forward.27} parent=0 // pred_fallthru
    _
  %p21 = scmp.eq.s32.totalorder 0, 0
  // Predicated region
  $region22: #{clip_forward.27} parent=0 // pred_check
    %p22 = pneg %p21
  $region23: #{clip_forward.27} parent=0 // pred_check_branch
    %24 = sbr.rel (%p22) target = $region25
  $region24: #{clip_forward.27} parent=0 // pred_region
    %vm25 = vcmask 523264
    %26 = vst.msk [vmem:[#allocation2] sm:$0xff] %vm25, 0.0
    %vm27 = vcmask 517120
    %28 = vst.msk [vmem:[#allocation2 + $0x8] sm:$0x3] %vm27, 0.0
  $region25: #{clip_forward.27} parent=0 // pred_fallthru
    _
  %v29 = vld [vmem:[%s0] sm:$0xff]
  %v30 = vld [vmem:[%s0 + $0x8] sm:$0x3]
  %vm31 = vcmask 261120
  %v32 = vsel %vm31, %v29, 0.0
  %33 = vadd.xlane.f32.xlu0 %v32
  %v34 = vpop.xlane.xlu0 %33
  %vm35 = vcmask 254976
  %v36 = vsel %vm35, %v30, 0.0
  %37 = vadd.xlane.f32.xlu0 %v36
  %v38 = vpop.xlane.xlu0 %37
  %v39 = vrcp.pop 32.0
  %v40 = vmul.f32 32.0, %v39
  %v41 = vsub.f32 1.0, %v40
  %v42 = vmul.f32 %v39, %v41
  %v43 = vadd.f32 %v39, %v42
  %vm44 = vweird.f32 %v39
  %v45 = vsel %vm44, %v39, %v43
  %v46 = vmul.f32 %v34, %v45
  %v47 = vmul.f32 %v38, %v45
  %v48 = vsub.f32 %v29, %v46
  %v49 = vsub.f32 %v30, %v47
  %v50 = vmul.f32 %v48, %v48
  %v51 = vmul.f32 %v49, %v49
  %v52 = vsel %vm31, %v50, 0.0
  %53 = vadd.xlane.f32.xlu0 %v52
  %v54 = vpop.xlane.xlu0 %53
  %v55 = vsel %vm35, %v51, 0.0
  %56 = vadd.xlane.f32.xlu0 %v55
  %v57 = vpop.xlane.xlu0 %56
  %v58 = vmul.f32 %v54, %v45
  %v59 = vmul.f32 %v57, %v45
  %v60 = vadd.f32 %v58, 1e-05
  %v61 = vadd.f32 %v59, 1e-05
  %v62 = vrsqrt.pop %v60
  %v63 = vmul.f32 %v62, %v60
  %v64 = vmul.f32 %v63, %v62
  %v65 = vmul.f32 0.5, %v64
  %v66 = vsub.f32 1.5, %v65
  %v67 = vmul.f32 %v62, %v66
  %vm68 = vweird.f32 %v60
  %vm69 = vweird.f32 %v62
  %vm70 = vmor %vm68, %vm69
  %v71 = vsel %vm70, %v62, %v67
  %v72 = vrsqrt.pop %v61
  %v73 = vmul.f32 %v72, %v61
  %v74 = vmul.f32 %v73, %v72
  %v75 = vmul.f32 0.5, %v74
  %v76 = vsub.f32 1.5, %v75
  %v77 = vmul.f32 %v72, %v76
  %vm78 = vweird.f32 %v61
  %vm79 = vweird.f32 %v72
  %vm80 = vmor %vm78, %vm79
  %v81 = vsel %vm80, %v72, %v77
  %v82 = vmul.f32 %v48, %v71
  %v83 = vmul.f32 %v49, %v81
  %v84 = vld [vmem:[%s3] sm:$0x1]
  %v86 = vperm.slane %v84, 0
  %v88 = vmul.f32 %v82, %v86
  %v89 = vmul.f32 %v83, %v86
  %v90 = vld [vmem:[%s4] sm:$0x1]
  %v92 = vperm.slane %v90, 0
  %v94 = vadd.f32 %v88, %v92
  %v95 = vadd.f32 %v89, %v92
  %v96 = vpack.c.bf16 %v95, %v94
  %v97 = vld [vmem:[#allocation2] sm:$0xff]
  %v98 = vld [vmem:[#allocation2 + $0x8] sm:$0x3]
  %v99 = vld [vmem:[%s1] sm:$0xf]
  %v100 = vld [vmem:[%s1 + $0x4] sm:$0xf]
  %v101 = vld [vmem:[%s1 + $0x8] sm:$0xf]
  %v102 = vld [vmem:[%s1 + $0xc] sm:$0xf]
  %v107 = vunpack.c.l.b16 %v99
  %v108 = vunpack.c.l.b16 %v100
  %v109 = vunpack.c.l.b16 %v101
  %v110 = vunpack.c.l.b16 %v102
  %v111 = vpack.c.b16 %v108, %v107
  %v112 = vpack.c.b16 %v110, %v109
  %v116 = vsel %vm31, %v96, 0
  %118 = vmatpush.bf16.msra.mxu0 0
  %119 = vmatpush.bf16.msra.mxu0 0
  %120 = vmatpush.bf16.msra.mxu0 0
  %121 = vmatpush.bf16.msra.mxu0 0
  %122 = vmatpush.bf16.msra.mxu0 0
  %123 = vmatpush.bf16.msra.mxu0 0
  %124 = vmatpush.bf16.msra.mxu0 %v112
  %125 = vmatpush.bf16.msra.mxu0 %v111
  %126 = vmatmul.bf16.gmra.mxu0 %v116
  %v127 = vpop.f32.mrf.mxu0
  %v128 = vadd.f32 0.0, %v127
  %v129 = vpop.f32.mrf.mxu0
  %v130 = vadd.f32 0.0, %v129
  %131 = vdwg.mxu0
  %v132 = vadd.f32 %v97, %v128
  %v133 = vadd.f32 %v98, %v130
  %vm134 = vcmask 523264
  %135 = vst.msk [vmem:[#allocation2] sm:$0xff] %vm134, %v132
  %vm136 = vcmask 517120
  %137 = vst.msk [vmem:[#allocation2 + $0x8] sm:$0x3] %vm136, %v133
  // Predicated region
  $region26: #{clip_forward.27} parent=0 // pred_check
    %p138 = pneg %p21
  $region27: #{clip_forward.27} parent=0 // pred_check_branch
    %140 = sbr.rel (%p138) target = $region29
  $region28: #{clip_forward.27} parent=0 // pred_region
    %v141 = vld [vmem:[#allocation2] sm:$0xff]
    %v142 = vld [vmem:[#allocation2 + $0x8] sm:$0x3]
    %v143 = vld [vmem:[%s2] sm:$0x1]
    %v145 = vperm.slane %v143, 0
    %v147 = vadd.f32 %v141, %v145
    %v148 = vadd.f32 %v142, %v145
    %v149 = vmul.f32 %v147, %v147
    %v150 = vmul.f32 %v148, %v148
    %v151 = vmul.f32 %v147, %v149
    %v152 = vmul.f32 %v148, %v150
    %v153 = vmul.f32 %v151, 0.044715
    %v154 = vmul.f32 %v152, 0.044715
    %v155 = vadd.f32 %v147, %v153
    %v156 = vadd.f32 %v148, %v154
    %v157 = vmul.f32 %v155, 0.7978846
    %v158 = vmul.f32 %v156, 0.7978846
    %v159 = vtanh.pop %v157
    %v160 = vtanh.pop %v158
    %v161 = vadd.f32 %v159, 1.0
    %v162 = vadd.f32 %v160, 1.0
    %v163 = vmul.f32 %v161, 0.5
    %v164 = vmul.f32 %v162, 0.5
    %v165 = vmul.f32 %v147, %v163
    %v166 = vmul.f32 %v148, %v164
    %v167 = vpack.c.bf16 %v165, %v165
    %v168 = vpack.c.bf16 %v166, %v166
    %vm169 = vcmask 519168
    %170 = vst.msk [vmem:[%s5] sm:$0xf] %vm169, %v167
    %vm171 = vcmask 516096
    %172 = vst.msk [vmem:[%s5 + $0x4] sm:$0x1] %vm171, %v168
  $region29: #{clip_forward.27} parent=0 // pred_fallthru
    _
  // Predicated region
  $region30: #{clip_forward.27} parent=0 // pred_check
    _
  $region31: #{clip_forward.27} parent=0 // pred_check_branch
    %174 = sbr.rel (0) target = $region33
  $region32: #{clip_forward.27} parent=0 // pred_region
    _
  $region33: #{clip_forward.27} parent=0 // pred_fallthru
    _
  // Predicated region
  $region34: #{clip_forward.27} parent=0 // pred_check
    _
  $region35: #{clip_forward.27} parent=0 // pred_check_branch
    %176 = sbr.rel (0) target = $region37
  $region36: #{clip_forward.27} parent=0 // pred_region
    _
  $region37: #{clip_forward.27} parent=0 // pred_fallthru
    _

// kernel: clip_forward.34
$region0: #{clip_forward.34}
  #allocation0 [shape = 'u32[]', space=smem, size = 0x4, offset = 0x4, fixed_abs, tag = 'smem constant byte address 0x4 - core index']
  #allocation1 [shape = 'u32[72,128]{1,0:T(1,128)}', space=vmem, size = 0x9000, scoped, tag = 'internal scratch']
  #allocation2 [shape = 'f32[2,16]{1,0:T(2,128)}', space=vmem, size = 0x400, scoped, tag = 'scratch operand']
  %s0 = inlined_call_operand.vmem [shape: f32[2,32], index: 0, kind: input, shape index: {}]
  %s1 = inlined_call_operand.vmem [shape: bf16[32,16], index: 1, kind: input, shape index: {}]
  %s2 = inlined_call_operand.vmem [shape: f32[1,16], index: 2, kind: input, shape index: {}]
  %s3 = inlined_call_operand.vmem [shape: f32[1,32], index: 3, kind: input, shape index: {}]
  %s4 = inlined_call_operand.vmem [shape: f32[1,32], index: 4, kind: input, shape index: {}]
  %s5 = inlined_call_operand.hbm [shape: f32[2,16], index: 5, kind: output, shape index: {}]
  %s6 = sld [smem:[#allocation0]]
  $region38: #{clip_forward.34} parent=0
    _
  %s8 = ssub.s32 1, %s6
  %s9 = scalar_select 0, %s8, %s6
  $region1: #{clip_forward.34} parent=0
    #allocation3 [shape = 'u8[1024]{0}', space=vmem, size = 0x400, scoped, tag = 'output window, operand 0, single buffered']
    #allocation4 [shape = 's32[1]{0}', space=sflag, size = 0x4, scoped, tag = 'scoped memory for clip_forward.34']
    %10 = vsyncpa [#allocation4], 0
    // Predicated region
    $region2: #{clip_forward.34} parent=1 // pred_check
      _
    $region3: #{clip_forward.34} parent=1 // pred_check_branch
      %12 = sbr.rel (0) target = $region5
    $region4: #{clip_forward.34} parent=1 // pred_region
      _
    $region5: #{clip_forward.34} parent=1 // pred_fallthru
      _
    // Predicated region
    $region6: #{clip_forward.34} parent=1 // pred_check
      _
    $region7: #{clip_forward.34} parent=1 // pred_check_branch
      %14 = sbr.rel (0) target = $region9
    $region8: #{clip_forward.34} parent=1 // pred_region
      _
    $region9: #{clip_forward.34} parent=1 // pred_fallthru
      _
    // Predicated region
    $region10: #{clip_forward.34} parent=1 // pred_check
      _
    $region11: #{clip_forward.34} parent=1 // pred_check_branch
      %16 = sbr.rel (0) target = $region13
    $region12: #{clip_forward.34} parent=1 // pred_region
      _
    $region13: #{clip_forward.34} parent=1 // pred_fallthru
      _
    // Predicated region
    $region14: #{clip_forward.34} parent=1 // pred_check
      _
    $region15: #{clip_forward.34} parent=1 // pred_check_branch
      %18 = sbr.rel (0) target = $region17
    $region16: #{clip_forward.34} parent=1 // pred_region
      _
    $region17: #{clip_forward.34} parent=1 // pred_fallthru
      _
    // Predicated region
    $region18: #{clip_forward.34} parent=1 // pred_check
      _
    $region19: #{clip_forward.34} parent=1 // pred_check_branch
      %20 = sbr.rel (0) target = $region21
    $region20: #{clip_forward.34} parent=1 // pred_region
      _
    $region21: #{clip_forward.34} parent=1 // pred_fallthru
      _
    %p22 = scmp.eq.s32.totalorder 0, 0
    // Predicated region
    $region22: #{clip_forward.34} parent=1 // pred_check
      %p23 = pneg %p22
    $region23: #{clip_forward.34} parent=1 // pred_check_branch
      %25 = sbr.rel (%p23) target = $region25
    $region24: #{clip_forward.34} parent=1 // pred_region
      %vm26 = vcmask 123904
      %27 = vst.msk [vmem:[#allocation2] sm:$0x3] %vm26, 0.0
    $region25: #{clip_forward.34} parent=1 // pred_fallthru
      _
    %v28 = vld [vmem:[%s0] sm:$0x3]
    %vm29 = vcmask 254976
    %v30 = vsel %vm29, %v28, 0.0
    %31 = vadd.xlane.f32.xlu0 %v30
    %v32 = vpop.xlane.xlu0 %31
    %v33 = vrcp.pop 32.0
    %v34 = vmul.f32 32.0, %v33
    %v35 = vsub.f32 1.0, %v34
    %v36 = vmul.f32 %v33, %v35
    %v37 = vadd.f32 %v33, %v36
    %vm38 = vweird.f32 %v33
    %v39 = vsel %vm38, %v33, %v37
    %v40 = vmul.f32 %v32, %v39
    %v41 = vsub.f32 %v28, %v40
    %v42 = vmul.f32 %v41, %v41
    %v43 = vsel %vm29, %v42, 0.0
    %44 = vadd.xlane.f32.xlu0 %v43
    %v45 = vpop.xlane.xlu0 %44
    %v46 = vmul.f32 %v45, %v39
    %v47 = vadd.f32 %v46, 1e-05
    %v48 = vrsqrt.pop %v47
    %v49 = vmul.f32 %v48, %v47
    %v50 = vmul.f32 %v49, %v48
    %v51 = vmul.f32 0.5, %v50
    %v52 = vsub.f32 1.5, %v51
    %v53 = vmul.f32 %v48, %v52
    %vm54 = vweird.f32 %v47
    %vm55 = vweird.f32 %v48
    %vm56 = vmor %vm54, %vm55
    %v57 = vsel %vm56, %v48, %v53
    %v58 = vmul.f32 %v41, %v57
    %v59 = vld [vmem:[%s3] sm:$0x1]
    %v61 = vperm.slane %v59, 0
    %v63 = vmul.f32 %v58, %v61
    %v64 = vld [vmem:[%s4] sm:$0x1]
    %v66 = vperm.slane %v64, 0
    %v68 = vadd.f32 %v63, %v66
    %v69 = vpack.c.bf16 %v68, %v68
    %v70 = vld [vmem:[#allocation2] sm:$0x3]
    %v71 = vld [vmem:[%s1] sm:$0xf]
    %v72 = vld [vmem:[%s1 + $0x4] sm:$0xf]
    %v73 = vld [vmem:[%s1 + $0x8] sm:$0xf]
    %v74 = vld [vmem:[%s1 + $0xc] sm:$0xf]
    %v79 = vunpack.c.l.b16 %v71
    %v80 = vunpack.c.l.b16 %v72
    %v81 = vunpack.c.l.b16 %v73
    %v82 = vunpack.c.l.b16 %v74
    %v83 = vpack.c.b16 %v80, %v79
    %v84 = vpack.c.b16 %v82, %v81
    %vm87 = vcmask 261120
    %v89 = vsel %vm87, %v69, 0
    %91 = vmatpush.bf16.msra.mxu0 0
    %92 = vmatpush.bf16.msra.mxu0 0
    %93 = vmatpush.bf16.msra.mxu0 0
    %94 = vmatpush.bf16.msra.mxu0 0
    %95 = vmatpush.bf16.msra.mxu0 0
    %96 = vmatpush.bf16.msra.mxu0 0
    %97 = vmatpush.bf16.msra.mxu0 %v84
    %98 = vmatpush.bf16.msra.mxu0 %v83
    %99 = vmatmul.bf16.gmra.mxu0 %v89
    %v100 = vpop.f32.mrf.mxu0
    %v101 = vadd.f32 0.0, %v100
    %v102 = vpop.f32.mrf.mxu0
    %103 = vdwg.mxu0
    %v104 = vadd.f32 %v70, %v101
    %vm105 = vcmask 123904
    %106 = vst.msk [vmem:[#allocation2] sm:$0x3] %vm105, %v104
    // Predicated region
    $region26: #{clip_forward.34} parent=1 // pred_check
      %p107 = pneg %p22
    $region27: #{clip_forward.34} parent=1 // pred_check_branch
      %109 = sbr.rel (%p107) target = $region29
    $region28: #{clip_forward.34} parent=1 // pred_region
      %v110 = vld [vmem:[#allocation2] sm:$0x3]
      %v111 = vld [vmem:[%s2] sm:$0x1]
      %v113 = vperm.slane %v111, 0
      %v115 = vadd.f32 %v110, %v113
      %116 = vst.msk [vmem:[#allocation3] sm:$0x3] %vm105, %v115
    $region29: #{clip_forward.34} parent=1 // pred_fallthru
      _
    // Predicated region
    $region30: #{clip_forward.34} parent=1 // pred_check
      _
    $region31: #{clip_forward.34} parent=1 // pred_check_branch
      %118 = sbr.rel (0) target = $region33
    $region32: #{clip_forward.34} parent=1 // pred_region
      %120 = vsyncadd [#allocation4], 0
      %s122 = sshll.u32 [#allocation3], 4
      %s123 = int_to_ptr.vmem [resolvable:$true] %s122
      %s124 = sshll.u32 %s5, 4
      %s125 = int_to_ptr.hbm [resolvable:$true] %s124
      %127 = dma.vmem_to_hbm [thread:$0]  %s123, 32, %s125, [#allocation4]
    $region33: #{clip_forward.34} parent=1 // pred_fallthru
      _
    // Predicated region
    $region34: #{clip_forward.34} parent=1 // pred_check
      _
    $region35: #{clip_forward.34} parent=1 // pred_check_branch
      %129 = sbr.rel (0) target = $region37
    $region36: #{clip_forward.34} parent=1 // pred_region
      %131 = dma.done [#allocation4], 32
    $region37: #{clip_forward.34} parent=1 // pred_fallthru
      _
    %132 = vsyncpa [#allocation4], 1

// kernel: clip_forward.28
$region0: #{clip_forward.28}
  #allocation0 [shape = 'u32[]', space=smem, size = 0x4, offset = 0x4, fixed_abs, tag = 'smem constant byte address 0x4 - core index']
  #allocation1 [shape = 'u32[72,128]{1,0:T(1,128)}', space=vmem, size = 0x9000, scoped, tag = 'internal scratch']
  #allocation2 [shape = 'f32[10,32]{1,0:T(8,128)}', space=vmem, size = 0x2000, scoped, tag = 'scratch operand']
  %s0 = inlined_call_operand.vmem [shape: bf16[10,64], index: 0, kind: input, shape index: {}]
  %s1 = inlined_call_operand.vmem [shape: bf16[64,32], index: 1, kind: input, shape index: {}]
  %s2 = inlined_call_operand.vmem [shape: f32[1,32], index: 2, kind: input, shape index: {}]
  %s3 = inlined_call_operand.vmem [shape: f32[10,32], index: 3, kind: input, shape index: {}]
  %s4 = inlined_call_operand.vmem [shape: f32[10,32], index: 4, kind: output, shape index: {}]
  %s5 = sld [smem:[#allocation0]]
  $region34: #{clip_forward.28} parent=0
    _
  %s7 = ssub.s32 1, %s5
  %s8 = scalar_select 0, %s7, %s5
  // Predicated region
  $region2: #{clip_forward.28} parent=0 // pred_check
    _
  $region3: #{clip_forward.28} parent=0 // pred_check_branch
    %10 = sbr.rel (0) target = $region5
  $region4: #{clip_forward.28} parent=0 // pred_region
    _
  $region5: #{clip_forward.28} parent=0 // pred_fallthru
    _
  // Predicated region
  $region6: #{clip_forward.28} parent=0 // pred_check
    _
  $region7: #{clip_forward.28} parent=0 // pred_check_branch
    %12 = sbr.rel (0) target = $region9
  $region8: #{clip_forward.28} parent=0 // pred_region
    _
  $region9: #{clip_forward.28} parent=0 // pred_fallthru
    _
  // Predicated region
  $region10: #{clip_forward.28} parent=0 // pred_check
    _
  $region11: #{clip_forward.28} parent=0 // pred_check_branch
    %14 = sbr.rel (0) target = $region13
  $region12: #{clip_forward.28} parent=0 // pred_region
    _
  $region13: #{clip_forward.28} parent=0 // pred_fallthru
    _
  // Predicated region
  $region14: #{clip_forward.28} parent=0 // pred_check
    _
  $region15: #{clip_forward.28} parent=0 // pred_check_branch
    %16 = sbr.rel (0) target = $region17
  $region16: #{clip_forward.28} parent=0 // pred_region
    _
  $region17: #{clip_forward.28} parent=0 // pred_fallthru
    _
  %p18 = scmp.eq.s32.totalorder 0, 0
  // Predicated region
  $region18: #{clip_forward.28} parent=0 // pred_check
    %p19 = pneg %p18
  $region19: #{clip_forward.28} parent=0 // pred_check_branch
    %21 = sbr.rel (%p19) target = $region21
  $region20: #{clip_forward.28} parent=0 // pred_region
    %vm22 = vcmask 261120
    %23 = vst.msk [vmem:[#allocation2] sm:$0xff] %vm22, 0.0
    %vm24 = vcmask 254976
    %25 = vst.msk [vmem:[#allocation2 + $0x8] sm:$0x3] %vm24, 0.0
  $region21: #{clip_forward.28} parent=0 // pred_fallthru
    _
  %v26 = vld [vmem:[%s0] sm:$0xf]
  %v27 = vld [vmem:[%s0 + $0x4] sm:$0x1]
  %v28 = vld [vmem:[#allocation2] sm:$0xff]
  %v29 = vld [vmem:[#allocation2 + $0x8] sm:$0x3]
  %v30 = vld [vmem:[%s1] sm:$0xf]
  %v31 = vld [vmem:[%s1 + $0x4] sm:$0xf]
  %v32 = vld [vmem:[%s1 + $0x8] sm:$0xf]
  %v33 = vld [vmem:[%s1 + $0xc] sm:$0xf]
  %v34 = vld [vmem:[%s1 + $0x10] sm:$0xf]
  %v35 = vld [vmem:[%s1 + $0x14] sm:$0xf]
  %v36 = vld [vmem:[%s1 + $0x18] sm:$0xf]
  %v37 = vld [vmem:[%s1 + $0x1c] sm:$0xf]
  %v40 = vunpack.c.l.b16 %v26
  %v41 = vunpack.c.l.b16 %v27
  %v42 = vpack.c.b16 %v41, %v40
  %v51 = vunpack.c.l.b16 %v30
  %v52 = vunpack.c.l.b16 %v31
  %v53 = vunpack.c.l.b16 %v32
  %v54 = vunpack.c.l.b16 %v33
  %v55 = vunpack.c.l.b16 %v34
  %v56 = vunpack.c.l.b16 %v35
  %v57 = vunpack.c.l.b16 %v36
  %v58 = vunpack.c.l.b16 %v37
  %v59 = vpack.c.b16 %v52, %v51
  %v60 = vpack.c.b16 %v54, %v53
  %v61 = vpack.c.b16 %v56, %v55
  %v62 = vpack.c.b16 %v58, %v57
  %vm67 = vcmask 523264
  %v69 = vsel %vm67, %v42, 0
  %71 = vmatpush.bf16.msra.mxu0 0
  %72 = vmatpush.bf16.msra.mxu0 0
  %73 = vmatpush.bf16.msra.mxu0 0
  %74 = vmatpush.bf16.msra.mxu0 0
  %75 = vmatpush.bf16.msra.mxu0 %v62
  %76 = vmatpush.bf16.msra.mxu0 %v61
  %77 = vmatpush.bf16.msra.mxu0 %v60
  %78 = vmatpush.bf16.msra.mxu0 %v59
  %79 = vmatmul.bf16.gmra.mxu0 %v69
  %v80 = vpop.f32.mrf.mxu0
  %v81 = vadd.f32 0.0, %v80
  %v82 = vpop.f32.mrf.mxu0
  %v83 = vadd.f32 0.0, %v82
  %84 = vdwg.mxu0
  %v85 = vadd.f32 %v28, %v81
  %v86 = vadd.f32 %v29, %v83
  %vm87 = vcmask 261120
  %88 = vst.msk [vmem:[#allocation2] sm:$0xff] %vm87, %v85
  %vm89 = vcmask 254976
  %90 = vst.msk [vmem:[#allocation2 + $0x8] sm:$0x3] %vm89, %v86
  // Predicated region
  $region22: #{clip_forward.28} parent=0 // pred_check
    %p91 = pneg %p18
  $region23: #{clip_forward.28} parent=0 // pred_check_branch
    %93 = sbr.rel (%p91) target = $region25
  $region24: #{clip_forward.28} parent=0 // pred_region
    %v94 = vld [vmem:[#allocation2] sm:$0xff]
    %v95 = vld [vmem:[#allocation2 + $0x8] sm:$0x3]
    %v96 = vld [vmem:[%s2] sm:$0x1]
    %v98 = vperm.slane %v96, 0
    %v100 = vadd.f32 %v94, %v98
    %v101 = vadd.f32 %v95, %v98
    %v102 = vld [vmem:[%s3] sm:$0xff]
    %v103 = vld [vmem:[%s3 + $0x8] sm:$0x3]
    %v104 = vadd.f32 %v100, %v102
    %v105 = vadd.f32 %v101, %v103
    %106 = vst.msk [vmem:[%s4] sm:$0xff] %vm87, %v104
    %107 = vst.msk [vmem:[%s4 + $0x8] sm:$0x3] %vm89, %v105
  $region25: #{clip_forward.28} parent=0 // pred_fallthru
    _
  // Predicated region
  $region26: #{clip_forward.28} parent=0 // pred_check
    _
  $region27: #{clip_forward.28} parent=0 // pred_check_branch
    %109 = sbr.rel (0) target = $region29
  $region28: #{clip_forward.28} parent=0 // pred_region
    _
  $region29: #{clip_forward.28} parent=0 // pred_fallthru
    _
  // Predicated region
  $region30: #{clip_forward.28} parent=0 // pred_check
    _
  $region31: #{clip_forward.28} parent=0 // pred_check_branch
    %111 = sbr.rel (0) target = $region33
  $region32: #{clip_forward.28} parent=0 // pred_region
    _
  $region33: #{clip_forward.28} parent=0 // pred_fallthru
    _

// kernel: clip_forward.35
$region0: #{clip_forward.35}
  #allocation0 [shape = 'u32[]', space=smem, size = 0x4, offset = 0x4, fixed_abs, tag = 'smem constant byte address 0x4 - core index']
  #allocation1 [shape = 'u32[72,128]{1,0:T(1,128)}', space=vmem, size = 0x9000, scoped, tag = 'internal scratch']
  #allocation2 [shape = 'f32[16,96]{1,0:T(8,128)}', space=vmem, size = 0x2000, scoped, tag = 'scratch operand']
  %s0 = inlined_call_operand.vmem [shape: f32[16,32], index: 0, kind: input, shape index: {}]
  %s1 = inlined_call_operand.vmem [shape: bf16[32,96], index: 1, kind: input, shape index: {}]
  %s2 = inlined_call_operand.vmem [shape: f32[1,96], index: 2, kind: input, shape index: {}]
  %s3 = inlined_call_operand.vmem [shape: f32[1,32], index: 3, kind: input, shape index: {}]
  %s4 = inlined_call_operand.vmem [shape: f32[1,32], index: 4, kind: input, shape index: {}]
  %s5 = inlined_call_operand.vmem [shape: bf16[16,96], index: 5, kind: output, shape index: {}]
  %s6 = sld [smem:[#allocation0]]
  $region38: #{clip_forward.35} parent=0
    _
  %s8 = ssub.s32 1, %s6
  %s9 = scalar_select 0, %s8, %s6
  // Predicated region
  $region2: #{clip_forward.35} parent=0 // pred_check
    _
  $region3: #{clip_forward.35} parent=0 // pred_check_branch
    %11 = sbr.rel (0) target = $region5
  $region4: #{clip_forward.35} parent=0 // pred_region
    _
  $region5: #{clip_forward.35} parent=0 // pred_fallthru
    _
  // Predicated region
  $region6: #{clip_forward.35} parent=0 // pred_check
    _
  $region7: #{clip_forward.35} parent=0 // pred_check_branch
    %13 = sbr.rel (0) target = $region9
  $region8: #{clip_forward.35} parent=0 // pred_region
    _
  $region9: #{clip_forward.35} parent=0 // pred_fallthru
    _
  // Predicated region
  $region10: #{clip_forward.35} parent=0 // pred_check
    _
  $region11: #{clip_forward.35} parent=0 // pred_check_branch
    %15 = sbr.rel (0) target = $region13
  $region12: #{clip_forward.35} parent=0 // pred_region
    _
  $region13: #{clip_forward.35} parent=0 // pred_fallthru
    _
  // Predicated region
  $region14: #{clip_forward.35} parent=0 // pred_check
    _
  $region15: #{clip_forward.35} parent=0 // pred_check_branch
    %17 = sbr.rel (0) target = $region17
  $region16: #{clip_forward.35} parent=0 // pred_region
    _
  $region17: #{clip_forward.35} parent=0 // pred_fallthru
    _
  // Predicated region
  $region18: #{clip_forward.35} parent=0 // pred_check
    _
  $region19: #{clip_forward.35} parent=0 // pred_check_branch
    %19 = sbr.rel (0) target = $region21
  $region20: #{clip_forward.35} parent=0 // pred_region
    _
  $region21: #{clip_forward.35} parent=0 // pred_fallthru
    _
  %p21 = scmp.eq.s32.totalorder 0, 0
  // Predicated region
  $region22: #{clip_forward.35} parent=0 // pred_check
    %p22 = pneg %p21
  $region23: #{clip_forward.35} parent=0 // pred_check_branch
    %24 = sbr.rel (%p22) target = $region25
  $region24: #{clip_forward.35} parent=0 // pred_region
    %vm25 = vcmask 785408
    %26 = vst.msk [vmem:[#allocation2] sm:$0xff] %vm25, 0.0
    %27 = vst.msk [vmem:[#allocation2 + $0x8] sm:$0xff] %vm25, 0.0
  $region25: #{clip_forward.35} parent=0 // pred_fallthru
    _
  %v28 = vld [vmem:[%s0] sm:$0xff]
  %v29 = vld [vmem:[%s0 + $0x8] sm:$0xff]
  %vm30 = vcmask 261120
  %v31 = vsel %vm30, %v28, 0.0
  %32 = vadd.xlane.f32.xlu0 %v31
  %v33 = vpop.xlane.xlu0 %32
  %v34 = vsel %vm30, %v29, 0.0
  %35 = vadd.xlane.f32.xlu0 %v34
  %v36 = vpop.xlane.xlu0 %35
  %v37 = vrcp.pop 32.0
  %v38 = vmul.f32 32.0, %v37
  %v39 = vsub.f32 1.0, %v38
  %v40 = vmul.f32 %v37, %v39
  %v41 = vadd.f32 %v37, %v40
  %vm42 = vweird.f32 %v37
  %v43 = vsel %vm42, %v37, %v41
  %v44 = vmul.f32 %v33, %v43
  %v45 = vmul.f32 %v36, %v43
  %v46 = vsub.f32 %v28, %v44
  %v47 = vsub.f32 %v29, %v45
  %v48 = vmul.f32 %v46, %v46
  %v49 = vmul.f32 %v47, %v47
  %v50 = vsel %vm30, %v48, 0.0
  %51 = vadd.xlane.f32.xlu0 %v50
  %v52 = vpop.xlane.xlu0 %51
  %v53 = vsel %vm30, %v49, 0.0
  %54 = vadd.xlane.f32.xlu0 %v53
  %v55 = vpop.xlane.xlu0 %54
  %v56 = vmul.f32 %v52, %v43
  %v57 = vmul.f32 %v55, %v43
  %v58 = vadd.f32 %v56, 1e-05
  %v59 = vadd.f32 %v57, 1e-05
  %v60 = vrsqrt.pop %v58
  %v61 = vmul.f32 %v60, %v58
  %v62 = vmul.f32 %v61, %v60
  %v63 = vmul.f32 0.5, %v62
  %v64 = vsub.f32 1.5, %v63
  %v65 = vmul.f32 %v60, %v64
  %vm66 = vweird.f32 %v58
  %vm67 = vweird.f32 %v60
  %vm68 = vmor %vm66, %vm67
  %v69 = vsel %vm68, %v60, %v65
  %v70 = vrsqrt.pop %v59
  %v71 = vmul.f32 %v70, %v59
  %v72 = vmul.f32 %v71, %v70
  %v73 = vmul.f32 0.5, %v72
  %v74 = vsub.f32 1.5, %v73
  %v75 = vmul.f32 %v70, %v74
  %vm76 = vweird.f32 %v59
  %vm77 = vweird.f32 %v70
  %vm78 = vmor %vm76, %vm77
  %v79 = vsel %vm78, %v70, %v75
  %v80 = vmul.f32 %v46, %v69
  %v81 = vmul.f32 %v47, %v79
  %v82 = vld [vmem:[%s3] sm:$0x1]
  %v84 = vperm.slane %v82, 0
  %v86 = vmul.f32 %v80, %v84
  %v87 = vmul.f32 %v81, %v84
  %v88 = vld [vmem:[%s4] sm:$0x1]
  %v90 = vperm.slane %v88, 0
  %v92 = vadd.f32 %v86, %v90
  %v93 = vadd.f32 %v87, %v90
  %v94 = vpack.c.bf16 %v93, %v92
  %v95 = vld [vmem:[#allocation2] sm:$0xff]
  %v96 = vld [vmem:[#allocation2 + $0x8] sm:$0xff]
  %v97 = vld [vmem:[%s1] sm:$0xf]
  %v98 = vld [vmem:[%s1 + $0x4] sm:$0xf]
  %v99 = vld [vmem:[%s1 + $0x8] sm:$0xf]
  %v100 = vld [vmem:[%s1 + $0xc] sm:$0xf]
  %v105 = vunpack.c.l.b16 %v97
  %v106 = vunpack.c.l.b16 %v98
  %v107 = vunpack.c.l.b16 %v99
  %v108 = vunpack.c.l.b16 %v100
  %v109 = vpack.c.b16 %v106, %v105
  %v110 = vpack.c.b16 %v108, %v107
  %v114 = vsel %vm30, %v94, 0
  %116 = vmatpush.bf16.msra.mxu0 0
  %117 = vmatpush.bf16.msra.mxu0 0
  %118 = vmatpush.bf16.msra.mxu0 0
  %119 = vmatpush.bf16.msra.mxu0 0
  %120 = vmatpush.bf16.msra.mxu0 0
  %121 = vmatpush.bf16.msra.mxu0 0
  %122 = vmatpush.bf16.msra.mxu0 %v110
  %123 = vmatpush.bf16.msra.mxu0 %v109
  %124 = vmatmul.bf16.gmra.mxu0 %v114
  %v125 = vpop.f32.mrf.mxu0
  %v126 = vadd.f32 0.0, %v125
  %v127 = vpop.f32.mrf.mxu0
  %v128 = vadd.f32 0.0, %v127
  %129 = vdwg.mxu0
  %v130 = vadd.f32 %v95, %v126
  %v131 = vadd.f32 %v96, %v128
  %vm132 = vcmask 785408
  %133 = vst.msk [vmem:[#allocation2] sm:$0xff] %vm132, %v130
  %134 = vst.msk [vmem:[#allocation2 + $0x8] sm:$0xff] %vm132, %v131
  // Predicated region
  $region26: #{clip_forward.35} parent=0 // pred_check
    %p135 = pneg %p21
  $region27: #{clip_forward.35} parent=0 // pred_check_branch
    %137 = sbr.rel (%p135) target = $region29
  $region28: #{clip_forward.35} parent=0 // pred_region
    %v138 = vld [vmem:[#allocation2] sm:$0xff]
    %v139 = vld [vmem:[#allocation2 + $0x8] sm:$0xff]
    %v140 = vld [vmem:[%s2] sm:$0x1]
    %v142 = vperm.slane %v140, 0
    %v144 = vadd.f32 %v138, %v142
    %v145 = vadd.f32 %v139, %v142
    %v146 = vpack.c.bf16 %v144, %v144
    %v147 = vpack.c.bf16 %v145, %v145
    %vm148 = vcmask 781312
    %149 = vst.msk [vmem:[%s5] sm:$0xf] %vm148, %v146
    %150 = vst.msk [vmem:[%s5 + $0x4] sm:$0xf] %vm148, %v147
  $region29: #{clip_forward.35} parent=0 // pred_fallthru
    _
  // Predicated region
  $region30: #{clip_forward.35} parent=0 // pred_check
    _
  $region31: #{clip_forward.35} parent=0 // pred_check_branch
    %152 = sbr.rel (0) target = $region33
  $region32: #{clip_forward.35} parent=0 // pred_region
    _
  $region33: #{clip_forward.35} parent=0 // pred_fallthru
    _
  // Predicated region
  $region34: #{clip_forward.35} parent=0 // pred_check
    _
  $region35: #{clip_forward.35} parent=0 // pred_check_branch
    %154 = sbr.rel (0) target = $region37
  $region36: #{clip_forward.35} parent=0 // pred_region
    _
  $region37: #{clip_forward.35} parent=0 // pred_fallthru
    _

// kernel: clip_forward.36
$region0: #{clip_forward.36}
  #allocation0 [shape = 'u32[]', space=smem, size = 0x4, offset = 0x4, fixed_abs, tag = 'smem constant byte address 0x4 - core index']
  #allocation1 [shape = 'u32[72,128]{1,0:T(1,128)}', space=vmem, size = 0x9000, scoped, tag = 'internal scratch']
  %s0 = inlined_call_operand.vmem [shape: f32[2,1,8], index: 0, kind: input, shape index: {}]
  %s1 = inlined_call_operand.vmem [shape: bf16[2,8,96], index: 1, kind: input, shape index: {}]
  %s2 = inlined_call_operand.vmem [shape: bf16[2,8,32], index: 2, kind: output, shape index: {}]
  %s3 = sld [smem:[#allocation0]]
  $region41: #{clip_forward.36} parent=0
    _
  %s5 = ssub.s32 1, %s3
  %s6 = scalar_select 0, %s5, %s3
  loop: start=0, step=1, limit=4
  $region2: #{clip_forward.36} parent=0 // loop_pre_header
    _
  $region3: #{clip_forward.36} parent=0 // loop_header
    %s8 = sphi 0, %s12
    %p9 = scmp.ge.s32.totalorder %s8, 4
    %s18 = sphi 0, %s20
    %s21 = sphi 0, %s18
    %s22 = sphi 0, %s21
    %s38 = sphi 0, %s22
    %s44 = sphi 0, %s46
    %s47 = sphi 0, %s44
    %s48 = sphi 0, %s47
    %s64 = sphi 0, %s48
    %s70 = sphi 0, %s72
    %s73 = sphi 0, %s70
    %s74 = sphi 0, %s73
    %s90 = sphi 0, %s74
  $region4: #{clip_forward.36} parent=0 // loop_header_branch
    %11 = sbr.rel (%p9) target = $region8
  $region5: #{clip_forward.36} parent=0 // loop_body
    %s13 = ssub.s32 %s8, 1
    %s14 = ssub.s32 %s8, 2
    %s15 = sadd.s32 %s8, 1
    %s16 = ssub.s32 %s8, %s15
    %p17 = scmp.eq.s32.totalorder %s16, 0
    %s19 = sadd.s32 %s18, 1
    %s20 = scalar_select %p17, %s18, %s19
    %p23 = pneg %p17
    %p24 = scmp.eq.s32.totalorder %s8, 1
    %p25 = por %p23, %p24
    %p26 = scmp.ne.s32.totalorder %s18, %s21
    %p27 = scmp.eq.s32.totalorder %s8, 0
    %p28 = por %p26, %p27
    %p29 = scmp.ne.s32.totalorder %s18, %s21
    %p30 = scmp.eq.s32.totalorder %s13, 1
    %p31 = por %p29, %p30
    %p32 = scmp.ne.s32.totalorder %s21, %s22
    %p33 = scmp.eq.s32.totalorder %s13, 0
    %p34 = por %p32, %p33
    %p35 = scmp.ne.s32.totalorder %s21, %s22
    %p36 = scmp.eq.s32.totalorder %s14, 1
    %p37 = por %p35, %p36
    %p39 = scmp.ne.s32.totalorder %s22, %s38
    %p40 = scmp.eq.s32.totalorder %s14, 0
    %p41 = por %p39, %p40
    %s42 = ssub.s32 %s8, %s15
    %p43 = scmp.eq.s32.totalorder %s42, 0
    %s45 = sadd.s32 %s44, 1
    %s46 = scalar_select %p43, %s44, %s45
    %p49 = pneg %p43
    %p50 = scmp.eq.s32.totalorder %s8, 1
    %p51 = por %p49, %p50
    %p52 = scmp.ne.s32.totalorder %s44, %s47
    %p53 = scmp.eq.s32.totalorder %s8, 0
    %p54 = por %p52, %p53
    %p55 = scmp.ne.s32.totalorder %s44, %s47
    %p56 = scmp.eq.s32.totalorder %s13, 1
    %p57 = por %p55, %p56
    %p58 = scmp.ne.s32.totalorder %s47, %s48
    %p59 = scmp.eq.s32.totalorder %s13, 0
    %p60 = por %p58, %p59
    %p61 = scmp.ne.s32.totalorder %s47, %s48
    %p62 = scmp.eq.s32.totalorder %s14, 1
    %p63 = por %p61, %p62
    %p65 = scmp.ne.s32.totalorder %s48, %s64
    %p66 = scmp.eq.s32.totalorder %s14, 0
    %p67 = por %p65, %p66
    %s68 = ssub.s32 %s8, %s15
    %p69 = scmp.eq.s32.totalorder %s68, 0
    %s71 = sadd.s32 %s70, 1
    %s72 = scalar_select %p69, %s70, %s71
    %p75 = pneg %p69
    %p76 = scmp.eq.s32.totalorder %s8, 1
    %p77 = por %p75, %p76
    %p78 = scmp.ne.s32.totalorder %s70, %s73
    %p79 = scmp.eq.s32.totalorder %s8, 0
    %p80 = por %p78, %p79
    %p81 = scmp.ne.s32.totalorder %s70, %s73
    %p82 = scmp.eq.s32.totalorder %s13, 1
    %p83 = por %p81, %p82
    %p84 = scmp.ne.s32.totalorder %s73, %s74
    %p85 = scmp.eq.s32.totalorder %s13, 0
    %p86 = por %p84, %p85
    %p87 = scmp.ne.s32.totalorder %s73, %s74
    %p88 = scmp.eq.s32.totalorder %s14, 1
    %p89 = por %p87, %p88
    %p91 = scmp.ne.s32.totalorder %s74, %s90
    %p92 = scmp.eq.s32.totalorder %s14, 0
    %p93 = por %p91, %p92
    %p94 = scmp.le.s32.totalorder 1, %s8
    %p95 = scmp.lt.s32.totalorder %s8, 3
    %p96 = pnand %p94, %p95
    %p97 = pneg %p96
    // Predicated region
    $region9: #{clip_forward.36} parent=5 // pred_check
      _
    $region10: #{clip_forward.36} parent=5 // pred_check_branch
      %99 = sbr.rel (%p96) target = $region12
    $region11: #{clip_forward.36} parent=5 // pred_region
      %s100 = ssub.s32 %s8, 1
    $region12: #{clip_forward.36} parent=5 // pred_fallthru
      _
    %p101 = scmp.lt.s32.totalorder %s8, 2
    // Predicated region
    $region13: #{clip_forward.36} parent=5 // pred_check
      %p102 = pneg %p101
    $region14: #{clip_forward.36} parent=5 // pred_check_branch
      %104 = sbr.rel (%p102) target = $region16
    $region15: #{clip_forward.36} parent=5 // pred_region
      // Predicated region
      $region17: #{clip_forward.36} parent=15 // pred_check
        %p105 = pneg %p28
      $region18: #{clip_forward.36} parent=15 // pred_check_branch
        %107 = sbr.rel (%p105) target = $region20
      $region19: #{clip_forward.36} parent=15 // pred_region
        %p108 = scmp.lt.s32.totalorder %s8, 1
        %s109 = scalar_select %p108, %s8, 1
        %s110 = scalar_lea.vmem %s0, %s109
      $region20: #{clip_forward.36} parent=15 // pred_fallthru
        _
      // Predicated region
      $region21: #{clip_forward.36} parent=15 // pred_check
        %p111 = pneg %p54
      $region22: #{clip_forward.36} parent=15 // pred_check_branch
        %113 = sbr.rel (%p111) target = $region24
      $region23: #{clip_forward.36} parent=15 // pred_region
        %p114 = scmp.lt.s32.totalorder %s8, 1
        %s115 = scalar_select %p114, %s8, 1
        %s116 = smul.addr %s115, 4
        %s117 = scalar_lea.vmem %s1, %s116
      $region24: #{clip_forward.36} parent=15 // pred_fallthru
        _
    $region16: #{clip_forward.36} parent=5 // pred_fallthru
      _
    %p118 = scmp.le.s32.totalorder 1, %s8
    %p119 = scmp.lt.s32.totalorder %s8, 3
    %p120 = pnand %p118, %p119
    %p121 = pneg %p120
    // Predicated region
    $region25: #{clip_forward.36} parent=5 // pred_check
      _
    $region26: #{clip_forward.36} parent=5 // pred_check_branch
      %123 = sbr.rel (%p120) target = $region28
    $region27: #{clip_forward.36} parent=5 // pred_region
      %s124 = ssub.s32 %s8, 1
      %p125 = scmp.lt.s32.totalorder %s13, 1
      %s126 = scalar_select %p125, %s13, 1
      %s127 = scalar_lea.vmem %s0, %s126
      %p128 = pneg %p34
      %p129 = pneg %p31
      %p130 = scmp.lt.s32.totalorder %s13, 1
      %s131 = scalar_select %p130, %s13, 1
      %s132 = smul.addr %s131, 4
      %s133 = scalar_lea.vmem %s1, %s132
      %p134 = pneg %p60
      %p135 = pneg %p57
      %p136 = pneg %p86
      %p137 = pneg %p83
      %p138 = scmp.lt.s32.totalorder %s13, 1
      %s139 = scalar_select %p138, %s13, 1
      %s140 = smul.addr %s139, 4
      %s141 = scalar_lea.vmem %s2, %s140
      %p142 = scmp.lt.s32.totalorder %s13, 1
      %s143 = scalar_select %p142, %s13, 1
      %s144 = scalar_lea.vmem %s0, %s143
      %p145 = scmp.lt.s32.totalorder %s13, 1
      %s146 = scalar_select %p145, %s13, 1
      %s147 = smul.addr %s146, 4
      %s148 = scalar_lea.vmem %s1, %s147
      %p149 = scmp.lt.s32.totalorder %s13, 1
      %s150 = scalar_select %p149, %s13, 1
      %s151 = smul.addr %s150, 4
      %s152 = scalar_lea.vmem %s2, %s151
      %v154 = vld [vmem:[%s148] sm:$0xf]
      %156 = vrot.lane.b32.xlu0 %v154, 112
      %v157 = vpop.permute.xlu0 %156
      %v158 = vunpack.c.l.b16 %v154
      %v159 = vunpack.c.l.b16 %v157
      %v160 = vpack.c.b16 %v158, %v158
      %v161 = vpack.c.b16 %v159, %v159
      %162 = vrot.lane.b32.xlu0 %v160, 96
      %v163 = vpop.permute.xlu0 %162
      %164 = vrot.lane.b32.xlu0 %v161, 96
      %v165 = vpop.permute.xlu0 %164
      %168 = vxpose.xlu0.c.b16.start [1/8] %v163, 128
      %169 = vxpose.xlu0.c.b16.cont [2/8] 0, 128
      %170 = vxpose.xlu0.c.b16.cont [3/8] 0, 128
      %171 = vxpose.xlu0.c.b16.cont [4/8] 0, 128
      %172 = vxpose.xlu0.c.b16.cont [5/8] 0, 128
      %173 = vxpose.xlu0.c.b16.cont [6/8] 0, 128
      %174 = vxpose.xlu0.c.b16.cont [7/8] 0, 128
      %175 = vxpose.xlu0.c.b16.end [8/8] 0, 128
      %v176 = vpop.trf.xlu0
      %v177 = vpop.trf.xlu0
      %v178 = vpop.trf.xlu0
      %v179 = vpop.trf.xlu0
      %v180 = vpop.trf.xlu0
      %v181 = vpop.trf.xlu0
      %v182 = vpop.trf.xlu0
      %v183 = vpop.trf.xlu0
      %184 = vxpose.xlu0.c.b16.start [1/8] %v165, 128
      %185 = vxpose.xlu0.c.b16.cont [2/8] 0, 128
      %186 = vxpose.xlu0.c.b16.cont [3/8] 0, 128
      %187 = vxpose.xlu0.c.b16.cont [4/8] 0, 128
      %188 = vxpose.xlu0.c.b16.cont [5/8] 0, 128
      %189 = vxpose.xlu0.c.b16.cont [6/8] 0, 128
      %190 = vxpose.xlu0.c.b16.cont [7/8] 0, 128
      %191 = vxpose.xlu0.c.b16.end [8/8] 0, 128
      %v192 = vpop.trf.xlu0
      %v193 = vpop.trf.xlu0
      %v194 = vpop.trf.xlu0
      %v195 = vpop.trf.xlu0
      %v196 = vpop.trf.xlu0
      %v197 = vpop.trf.xlu0
      %v198 = vpop.trf.xlu0
      %v199 = vpop.trf.xlu0
      %vm200 = vcmask 130048
      %v202 = vsel %vm200, %v154, 0
      %204 = vmatpush.bf16.msra.mxu0 0
      %205 = vmatpush.bf16.msra.mxu0 0
      %206 = vmatpush.bf16.msra.mxu0 0
      %207 = vmatpush.bf16.msra.mxu0 0
      %208 = vmatpush.bf16.msra.mxu0 0
      %209 = vmatpush.bf16.msra.mxu0 0
      %210 = vmatpush.bf16.msra.mxu0 0
      %211 = vmatpush.bf16.msra.mxu0 %v176
      %212 = vmatmul.bf16.gmra.mxu0 %v202
      %v213 = vpop.f32.mrf.mxu0
      %v214 = vadd.f32 0.0, %v213
      %v215 = vpop.f32.mrf.mxu0
      %216 = vdwg.mxu0
      %v218 = vsel %vm200, %v157, 0
      %220 = vmatpush.bf16.msra.mxu0 0
      %221 = vmatpush.bf16.msra.mxu0 0
      %222 = vmatpush.bf16.msra.mxu0 0
      %223 = vmatpush.bf16.msra.mxu0 0
      %224 = vmatpush.bf16.msra.mxu0 0
      %225 = vmatpush.bf16.msra.mxu0 0
      %226 = vmatpush.bf16.msra.mxu0 0
      %227 = vmatpush.bf16.msra.mxu0 %v192
      %228 = vmatmul.bf16.gmra.mxu0 %v218
      %v229 = vpop.f32.mrf.mxu0
      %v230 = vadd.f32 0.0, %v229
      %v231 = vpop.f32.mrf.mxu0
      %232 = vdwg.mxu0
      %v233 = vmul.f32 %v214, 0.25
      %v234 = vmul.f32 %v230, 0.25
      %v235 = vld [vmem:[%s144] sm:$0x1]
      %v237 = vperm.slane %v235, 0
      %v239 = vadd.f32 %v233, %v237
      %v240 = vadd.f32 %v234, %v237
      %vm241 = vcmask 64512
      %v242 = vsel %vm241, %v239, -inf
      %243 = vmax.xlane.f32.xlu0 %v242
      %v244 = vpop.xlane.xlu0 %243
      %v245 = vsel %vm241, %v240, -inf
      %246 = vmax.xlane.f32.xlu0 %v245
      %v247 = vpop.xlane.xlu0 %246
      %v248 = vsub.f32 %v239, %v244
      %v249 = vsub.f32 %v240, %v247
      %v250 = vmul.f32 %v248, 1.442695
      %v251 = vpow.pop %v250
      %v252 = vmul.f32 %v249, 1.442695
      %v253 = vpow.pop %v252
      %v254 = vsel %vm241, %v251, 0.0
      %255 = vadd.xlane.f32.xlu0 %v254
      %v256 = vpop.xlane.xlu0 %255
      %v257 = vsel %vm241, %v253, 0.0
      %258 = vadd.xlane.f32.xlu0 %v257
      %v259 = vpop.xlane.xlu0 %258
      %v260 = vrcp.pop %v256
      %v261 = vrcp.pop %v259
      %v262 = vmul.f32 %v251, %v260
      %v263 = vmul.f32 %v253, %v261
      %v264 = vpack.c.bf16 %v262, %v262
      %v265 = vpack.c.bf16 %v263, %v263
      %266 = vrot.lane.b32.xlu0 %v160, 64
      %v267 = vpop.permute.xlu0 %266
      %268 = vrot.lane.b32.xlu0 %v161, 64
      %v269 = vpop.permute.xlu0 %268
      %272 = vxpose.xlu0.c.b16.start [1/8] %v267, 128
      %273 = vxpose.xlu0.c.b16.cont [2/8] 0, 128
      %274 = vxpose.xlu0.c.b16.cont [3/8] 0, 128
      %275 = vxpose.xlu0.c.b16.cont [4/8] 0, 128
      %276 = vxpose.xlu0.c.b16.cont [5/8] 0, 128
      %277 = vxpose.xlu0.c.b16.cont [6/8] 0, 128
      %278 = vxpose.xlu0.c.b16.cont [7/8] 0, 128
      %279 = vxpose.xlu0.c.b16.end [8/8] 0, 128
      %v280 = vpop.trf.xlu0
      %v281 = vpop.trf.xlu0
      %v282 = vpop.trf.xlu0
      %v283 = vpop.trf.xlu0
      %v284 = vpop.trf.xlu0
      %v285 = vpop.trf.xlu0
      %v286 = vpop.trf.xlu0
      %v287 = vpop.trf.xlu0
      %288 = vxpose.xlu0.c.b16.start [1/8] %v269, 128
      %289 = vxpose.xlu0.c.b16.cont [2/8] 0, 128
      %290 = vxpose.xlu0.c.b16.cont [3/8] 0, 128
      %291 = vxpose.xlu0.c.b16.cont [4/8] 0, 128
      %292 = vxpose.xlu0.c.b16.cont [5/8] 0, 128
      %293 = vxpose.xlu0.c.b16.cont [6/8] 0, 128
      %294 = vxpose.xlu0.c.b16.cont [7/8] 0, 128
      %295 = vxpose.xlu0.c.b16.end [8/8] 0, 128
      %v296 = vpop.trf.xlu0
      %v297 = vpop.trf.xlu0
      %v298 = vpop.trf.xlu0
      %v299 = vpop.trf.xlu0
      %v300 = vpop.trf.xlu0
      %v301 = vpop.trf.xlu0
      %v302 = vpop.trf.xlu0
      %v303 = vpop.trf.xlu0
      %v305 = vsel %vm241, %v280, 0
      %v308 = vsel %vm241, %v264, 0
      %310 = vmatpush.bf16.xpose.msra.mxu0 0
      %311 = vmatpush.bf16.xpose.msra.mxu0 0
      %312 = vmatpush.bf16.xpose.msra.mxu0 0
      %313 = vmatpush.bf16.xpose.msra.mxu0 0
      %314 = vmatpush.bf16.xpose.msra.mxu0 0
      %315 = vmatpush.bf16.xpose.msra.mxu0 0
      %316 = vmatpush.bf16.xpose.msra.mxu0 0
      %317 = vmatpush.bf16.xpose.msra.mxu0 %v308
      %318 = vmatmul.bf16.gmra.mxu0 %v305
      %v319 = vpop.f32.mrf.mxu0
      %v320 = vadd.f32 0.0, %v319
      %v321 = vpop.f32.mrf.mxu0
      %v322 = vadd.f32 0.0, %v321
      %323 = vdwg.mxu0
      %v325 = vsel %vm241, %v296, 0
      %v328 = vsel %vm241, %v265, 0
      %330 = vmatpush.bf16.xpose.msra.mxu0 0
      %331 = vmatpush.bf16.xpose.msra.mxu0 0
      %332 = vmatpush.bf16.xpose.msra.mxu0 0
      %333 = vmatpush.bf16.xpose.msra.mxu0 0
      %334 = vmatpush.bf16.xpose.msra.mxu0 0
      %335 = vmatpush.bf16.xpose.msra.mxu0 0
      %336 = vmatpush.bf16.xpose.msra.mxu0 0
      %337 = vmatpush.bf16.xpose.msra.mxu0 %v328
      %338 = vmatmul.bf16.gmra.mxu0 %v325
      %v339 = vpop.f32.mrf.mxu0
      %v340 = vadd.f32 0.0, %v339
      %v341 = vpop.f32.mrf.mxu0
      %v342 = vadd.f32 0.0, %v341
      %343 = vdwg.mxu0
      %344 = vxpose.xlu0.b32.start [1/16] %v320, 128
      %345 = vxpose.xlu0.b32.cont [2/16] %v322, 128
      %346 = vxpose.xlu0.b32.cont [3/16] 0.0, 128
      %347 = vxpose.xlu0.b32.cont [4/16] 0.0, 128
      %348 = vxpose.xlu0.b32.cont [5/16] 0.0, 128
      %349 = vxpose.xlu0.b32.cont [6/16] 0.0, 128
      %350 = vxpose.xlu0.b32.cont [7/16] 0.0, 128
      %351 = vxpose.xlu0.b32.cont [8/16] 0.0, 128
      %352 = vxpose.xlu0.b32.cont [9/16] 0.0, 128
      %353 = vxpose.xlu0.b32.cont [10/16] 0.0, 128
      %354 = vxpose.xlu0.b32.cont [11/16] 0.0, 128
      %355 = vxpose.xlu0.b32.cont [12/16] 0.0, 128
      %356 = vxpose.xlu0.b32.cont [13/16] 0.0, 128
      %357 = vxpose.xlu0.b32.cont [14/16] 0.0, 128
      %358 = vxpose.xlu0.b32.cont [15/16] 0.0, 128
      %359 = vxpose.xlu0.b32.end [16/16] 0.0, 128
      %v360 = vpop.trf.xlu0
      %v361 = vpop.trf.xlu0
      %v362 = vpop.trf.xlu0
      %v363 = vpop.trf.xlu0
      %v364 = vpop.trf.xlu0
      %v365 = vpop.trf.xlu0
      %v366 = vpop.trf.xlu0
      %v367 = vpop.trf.xlu0
      %v368 = vpop.trf.xlu0
      %v369 = vpop.trf.xlu0
      %v370 = vpop.trf.xlu0
      %v371 = vpop.trf.xlu0
      %v372 = vpop.trf.xlu0
      %v373 = vpop.trf.xlu0
      %v374 = vpop.trf.xlu0
      %v375 = vpop.trf.xlu0
      %376 = vxpose.xlu0.b32.start [1/16] %v340, 128
      %377 = vxpose.xlu0.b32.cont [2/16] %v342, 128
      %378 = vxpose.xlu0.b32.cont [3/16] 0.0, 128
      %379 = vxpose.xlu0.b32.cont [4/16] 0.0, 128
      %380 = vxpose.xlu0.b32.cont [5/16] 0.0, 128
      %381 = vxpose.xlu0.b32.cont [6/16] 0.0, 128
      %382 = vxpose.xlu0.b32.cont [7/16] 0.0, 128
      %383 = vxpose.xlu0.b32.cont [8/16] 0.0, 128
      %384 = vxpose.xlu0.b32.cont [9/16] 0.0, 128
      %385 = vxpose.xlu0.b32.cont [10/16] 0.0, 128
      %386 = vxpose.xlu0.b32.cont [11/16] 0.0, 128
      %387 = vxpose.xlu0.b32.cont [12/16] 0.0, 128
      %388 = vxpose.xlu0.b32.cont [13/16] 0.0, 128
      %389 = vxpose.xlu0.b32.cont [14/16] 0.0, 128
      %390 = vxpose.xlu0.b32.cont [15/16] 0.0, 128
      %391 = vxpose.xlu0.b32.end [16/16] 0.0, 128
      %v392 = vpop.trf.xlu0
      %v393 = vpop.trf.xlu0
      %v394 = vpop.trf.xlu0
      %v395 = vpop.trf.xlu0
      %v396 = vpop.trf.xlu0
      %v397 = vpop.trf.xlu0
      %v398 = vpop.trf.xlu0
      %v399 = vpop.trf.xlu0
      %v400 = vpop.trf.xlu0
      %v401 = vpop.trf.xlu0
      %v402 = vpop.trf.xlu0
      %v403 = vpop.trf.xlu0
      %v404 = vpop.trf.xlu0
      %v405 = vpop.trf.xlu0
      %v406 = vpop.trf.xlu0
      %v407 = vpop.trf.xlu0
      %v408 = vrot.slane %v360, 4
      %vm409 = vcmask 1047556
      %v410 = vsel %vm409, 0.0, %v408
      %v412 = vunpack.c.l.s4 1983009808
      %v413 = vunpack.c.0.s8 %v412
      %v414 = vperm.slane %v360, %v413
      %v416 = vunpack.c.l.s4 1983009808
      %v417 = vunpack.c.0.s8 %v416
      %v418 = vperm.slane %v410, %v417
      %v419 = vrot.slane %v392, 4
      %v420 = vsel %vm409, 0.0, %v419
      %v422 = vunpack.c.l.s4 1983009808
      %v423 = vunpack.c.0.s8 %v422
      %v424 = vperm.slane %v392, %v423
      %v426 = vunpack.c.l.s4 1983009808
      %v427 = vunpack.c.0.s8 %v426
      %v428 = vperm.slane %v420, %v427
      %v429 = vrot.slane %v424, 4
      %v430 = vsel %vm409, %v429, %v414
      %v431 = vrot.slane %v414, 4
      %v432 = vsel %vm409, %v424, %v431
      %v434 = vunpack.c.l.s4 1934713408
      %v435 = vunpack.c.0.s8 %v434
      %v436 = vperm.slane %v430, %v435
      %v438 = vunpack.c.l.s4 1934713408
      %v439 = vunpack.c.0.s8 %v438
      %v440 = vperm.slane %v432, %v439
      %v441 = vrot.slane %v428, 4
      %v442 = vsel %vm409, %v441, %v418
      %v443 = vrot.slane %v418, 4
      %v444 = vsel %vm409, %v428, %v443
      %v446 = vunpack.c.l.s4 1934713408
      %v447 = vunpack.c.0.s8 %v446
      %v448 = vperm.slane %v442, %v447
      %v450 = vunpack.c.l.s4 1934713408
      %v451 = vunpack.c.0.s8 %v450
      %v452 = vperm.slane %v444, %v451
      %v453 = vrot.slane %v436, 4
      %v454 = vsel %vm409, 0.0, %v453
      %v455 = vrot.slane %v440, 4
      %v456 = vsel %vm409, 0.0, %v455
      %v457 = vrot.slane %v448, 4
      %v458 = vsel %vm409, 0.0, %v457
      %v459 = vrot.slane %v452, 4
      %v460 = vsel %vm409, 0.0, %v459
      %v461 = vsel %vm409, %v455, %v436
      %v463 = vunpack.c.l.s4 1983009808
      %v464 = vunpack.c.0.s8 %v463
      %v465 = vperm.slane %v461, %v464
      %v466 = vrot.slane %v456, 4
      %v467 = vsel %vm409, %v466, %v454
      %v469 = vunpack.c.l.s4 1983009808
      %v470 = vunpack.c.0.s8 %v469
      %v471 = vperm.slane %v467, %v470
      %v472 = vsel %vm409, %v459, %v448
      %v474 = vunpack.c.l.s4 1983009808
      %v475 = vunpack.c.0.s8 %v474
      %v476 = vperm.slane %v472, %v475
      %v477 = vrot.slane %v460, 4
      %v478 = vsel %vm409, %v477, %v458
      %v480 = vunpack.c.l.s4 1983009808
      %v481 = vunpack.c.0.s8 %v480
      %v482 = vperm.slane %v478, %v481
      %v483 = vrot.slane %v471, 4
      %v484 = vsel %vm409, %v483, %v465
      %v486 = vunpack.c.l.s4 1934713408
      %v487 = vunpack.c.0.s8 %v486
      %v488 = vperm.slane %v484, %v487
      %v489 = vrot.slane %v482, 4
      %v490 = vsel %vm409, %v489, %v476
      %v492 = vunpack.c.l.s4 1934713408
      %v493 = vunpack.c.0.s8 %v492
      %v494 = vperm.slane %v490, %v493
      %v495 = vrot.slane %v494, 4
      %v496 = vsel %vm409, %v495, %v488
      %v497 = vrot.slane %v488, 4
      %v498 = vsel %vm409, %v494, %v497
      %500 = vrot.lane.b32.xlu0 %v498, 16
      %v501 = vpop.permute.xlu0 %500
      %v503 = vsel %vm200, %v496, %v501
      %v504 = vpack.c.bf16 %v503, %v503
      %vm505 = vcmask 257024
      %506 = vst.msk [vmem:[%s152] sm:$0xf] %vm505, %v504
      %p507 = scmp.lt.s32.totalorder %s13, 1
      %s508 = scalar_select %p507, %s13, 1
      %s509 = smul.addr %s508, 4
      %s510 = scalar_lea.vmem %s2, %s509
      // Predicated region
      $region29: #{clip_forward.36} parent=27 // pred_check
        %p511 = pneg %p83
      $region30: #{clip_forward.36} parent=27 // pred_check_branch
        %513 = sbr.rel (%p511) target = $region32
      $region31: #{clip_forward.36} parent=27 // pred_region
        _
      $region32: #{clip_forward.36} parent=27 // pred_fallthru
        _
    $region28: #{clip_forward.36} parent=5 // pred_fallthru
      _
    %p514 = scmp.le.s32.totalorder 2, %s8
    // Predicated region
    $region33: #{clip_forward.36} parent=5 // pred_check
      %p515 = pneg %p514
    $region34: #{clip_forward.36} parent=5 // pred_check_branch
      %517 = sbr.rel (%p515) target = $region36
    $region35: #{clip_forward.36} parent=5 // pred_region
      %s518 = ssub.s32 %s8, 2
      // Predicated region
      $region37: #{clip_forward.36} parent=35 // pred_check
        %p519 = pneg %p89
      $region38: #{clip_forward.36} parent=35 // pred_check_branch
        %521 = sbr.rel (%p519) target = $region40
      $region39: #{clip_forward.36} parent=35 // pred_region
        %p522 = scmp.lt.s32.totalorder %s14, 1
        %s523 = scalar_select %p522, %s14, 1
        %s524 = smul.addr %s523, 4
        %s525 = scalar_lea.vmem %s2, %s524
      $region40: #{clip_forward.36} parent=35 // pred_fallthru
        _
    $region36: #{clip_forward.36} parent=5 // pred_fallthru
      _
  $region6: #{clip_forward.36} parent=0 // loop_footer
    %s12 = sadd.s32 1, %s8
  $region7: #{clip_forward.36} parent=0 // loop_footer_branch
    %7 = sbr.rel target = $region3
  $region8: #{clip_forward.36} parent=0 // loop_exit
    _

// kernel: clip_forward.37
$region0: #{clip_forward.37}
  #allocation0 [shape = 'u32[]', space=smem, size = 0x4, offset = 0x4, fixed_abs, tag = 'smem constant byte address 0x4 - core index']
  #allocation1 [shape = 'u32[72,128]{1,0:T(1,128)}', space=vmem, size = 0x9000, scoped, tag = 'internal scratch']
  #allocation2 [shape = 'f32[16,32]{1,0:T(8,128)}', space=vmem, size = 0x2000, scoped, tag = 'scratch operand']
  %s0 = inlined_call_operand.vmem [shape: bf16[16,32], index: 0, kind: input, shape index: {}]
  %s1 = inlined_call_operand.vmem [shape: bf16[32,32], index: 1, kind: input, shape index: {}]
  %s2 = inlined_call_operand.vmem [shape: f32[1,32], index: 2, kind: input, shape index: {}]
  %s3 = inlined_call_operand.vmem [shape: f32[16,32], index: 3, kind: input, shape index: {}]
  %s4 = inlined_call_operand.vmem [shape: f32[16,32], index: 4, kind: output, shape index: {}]
  %s5 = sld [smem:[#allocation0]]
  $region34: #{clip_forward.37} parent=0
    _
  %s7 = ssub.s32 1, %s5
  %s8 = scalar_select 0, %s7, %s5
  // Predicated region
  $region2: #{clip_forward.37} parent=0 // pred_check
    _
  $region3: #{clip_forward.37} parent=0 // pred_check_branch
    %10 = sbr.rel (0) target = $region5
  $region4: #{clip_forward.37} parent=0 // pred_region
    _
  $region5: #{clip_forward.37} parent=0 // pred_fallthru
    _
  // Predicated region
  $region6: #{clip_forward.37} parent=0 // pred_check
    _
  $region7: #{clip_forward.37} parent=0 // pred_check_branch
    %12 = sbr.rel (0) target = $region9
  $region8: #{clip_forward.37} parent=0 // pred_region
    _
  $region9: #{clip_forward.37} parent=0 // pred_fallthru
    _
  // Predicated region
  $region10: #{clip_forward.37} parent=0 // pred_check
    _
  $region11: #{clip_forward.37} parent=0 // pred_check_branch
    %14 = sbr.rel (0) target = $region13
  $region12: #{clip_forward.37} parent=0 // pred_region
    _
  $region13: #{clip_forward.37} parent=0 // pred_fallthru
    _
  // Predicated region
  $region14: #{clip_forward.37} parent=0 // pred_check
    _
  $region15: #{clip_forward.37} parent=0 // pred_check_branch
    %16 = sbr.rel (0) target = $region17
  $region16: #{clip_forward.37} parent=0 // pred_region
    _
  $region17: #{clip_forward.37} parent=0 // pred_fallthru
    _
  %p18 = scmp.eq.s32.totalorder 0, 0
  // Predicated region
  $region18: #{clip_forward.37} parent=0 // pred_check
    %p19 = pneg %p18
  $region19: #{clip_forward.37} parent=0 // pred_check_branch
    %21 = sbr.rel (%p19) target = $region21
  $region20: #{clip_forward.37} parent=0 // pred_region
    %vm22 = vcmask 261120
    %23 = vst.msk [vmem:[#allocation2] sm:$0xff] %vm22, 0.0
    %24 = vst.msk [vmem:[#allocation2 + $0x8] sm:$0xff] %vm22, 0.0
  $region21: #{clip_forward.37} parent=0 // pred_fallthru
    _
  %v25 = vld [vmem:[%s0] sm:$0xf]
  %v26 = vld [vmem:[%s0 + $0x4] sm:$0xf]
  %v27 = vld [vmem:[#allocation2] sm:$0xff]
  %v28 = vld [vmem:[#allocation2 + $0x8] sm:$0xff]
  %v29 = vld [vmem:[%s1] sm:$0xf]
  %v30 = vld [vmem:[%s1 + $0x4] sm:$0xf]
  %v31 = vld [vmem:[%s1 + $0x8] sm:$0xf]
  %v32 = vld [vmem:[%s1 + $0xc] sm:$0xf]
  %v35 = vunpack.c.l.b16 %v25
  %v36 = vunpack.c.l.b16 %v26
  %v37 = vpack.c.b16 %v36, %v35
  %v42 = vunpack.c.l.b16 %v29
  %v43 = vunpack.c.l.b16 %v30
  %v44 = vunpack.c.l.b16 %v31
  %v45 = vunpack.c.l.b16 %v32
  %v46 = vpack.c.b16 %v43, %v42
  %v47 = vpack.c.b16 %v45, %v44
  %vm50 = vcmask 261120
  %v52 = vsel %vm50, %v37, 0
  %54 = vmatpush.bf16.msra.mxu0 0
  %55 = vmatpush.bf16.msra.mxu0 0
  %56 = vmatpush.bf16.msra.mxu0 0
  %57 = vmatpush.bf16.msra.mxu0 0
  %58 = vmatpush.bf16.msra.mxu0 0
  %59 = vmatpush.bf16.msra.mxu0 0
  %60 = vmatpush.bf16.msra.mxu0 %v47
  %61 = vmatpush.bf16.msra.mxu0 %v46
  %62 = vmatmul.bf16.gmra.mxu0 %v52
  %v63 = vpop.f32.mrf.mxu0
  %v64 = vadd.f32 0.0, %v63
  %v65 = vpop.f32.mrf.mxu0
  %v66 = vadd.f32 0.0, %v65
  %67 = vdwg.mxu0
  %v68 = vadd.f32 %v27, %v64
  %v69 = vadd.f32 %v28, %v66
  %70 = vst.msk [vmem:[#allocation2] sm:$0xff] %vm50, %v68
  %71 = vst.msk [vmem:[#allocation2 + $0x8] sm:$0xff] %vm50, %v69
  // Predicated region
  $region22: #{clip_forward.37} parent=0 // pred_check
    %p72 = pneg %p18
  $region23: #{clip_forward.37} parent=0 // pred_check_branch
    %74 = sbr.rel (%p72) target = $region25
  $region24: #{clip_forward.37} parent=0 // pred_region
    %v75 = vld [vmem:[#allocation2] sm:$0xff]
    %v76 = vld [vmem:[#allocation2 + $0x8] sm:$0xff]
    %v77 = vld [vmem:[%s2] sm:$0x1]
    %v79 = vperm.slane %v77, 0
    %v81 = vadd.f32 %v75, %v79
    %v82 = vadd.f32 %v76, %v79
    %v83 = vld [vmem:[%s3] sm:$0xff]
    %v84 = vld [vmem:[%s3 + $0x8] sm:$0xff]
    %v85 = vadd.f32 %v81, %v83
    %v86 = vadd.f32 %v82, %v84
    %87 = vst.msk [vmem:[%s4] sm:$0xff] %vm50, %v85
    %88 = vst.msk [vmem:[%s4 + $0x8] sm:$0xff] %vm50, %v86
  $region25: #{clip_forward.37} parent=0 // pred_fallthru
    _
  // Predicated region
  $region26: #{clip_forward.37} parent=0 // pred_check
    _
  $region27: #{clip_forward.37} parent=0 // pred_check_branch
    %90 = sbr.rel (0) target = $region29
  $region28: #{clip_forward.37} parent=0 // pred_region
    _
  $region29: #{clip_forward.37} parent=0 // pred_fallthru
    _
  // Predicated region
  $region30: #{clip_forward.37} parent=0 // pred_check
    _
  $region31: #{clip_forward.37} parent=0 // pred_check_branch
    %92 = sbr.rel (0) target = $region33
  $region32: #{clip_forward.37} parent=0 // pred_region
    _
  $region33: #{clip_forward.37} parent=0 // pred_fallthru
    _

// kernel: clip_forward.38
$region0: #{clip_forward.38}
  #allocation0 [shape = 'u32[]', space=smem, size = 0x4, offset = 0x4, fixed_abs, tag = 'smem constant byte address 0x4 - core index']
  #allocation1 [shape = 'u32[72,128]{1,0:T(1,128)}', space=vmem, size = 0x9000, scoped, tag = 'internal scratch']
  #allocation2 [shape = 'f32[16,64]{1,0:T(8,128)}', space=vmem, size = 0x2000, scoped, tag = 'scratch operand']
  %s0 = inlined_call_operand.vmem [shape: f32[16,32], index: 0, kind: input, shape index: {}]
  %s1 = inlined_call_operand.vmem [shape: bf16[32,64], index: 1, kind: input, shape index: {}]
  %s2 = inlined_call_operand.vmem [shape: f32[1,64], index: 2, kind: input, shape index: {}]
  %s3 = inlined_call_operand.vmem [shape: f32[1,32], index: 3, kind: input, shape index: {}]
  %s4 = inlined_call_operand.vmem [shape: f32[1,32], index: 4, kind: input, shape index: {}]
  %s5 = inlined_call_operand.vmem [shape: bf16[16,64], index: 5, kind: output, shape index: {}]
  %s6 = sld [smem:[#allocation0]]
  $region38: #{clip_forward.38} parent=0
    _
  %s8 = ssub.s32 1, %s6
  %s9 = scalar_select 0, %s8, %s6
  // Predicated region
  $region2: #{clip_forward.38} parent=0 // pred_check
    _
  $region3: #{clip_forward.38} parent=0 // pred_check_branch
    %11 = sbr.rel (0) target = $region5
  $region4: #{clip_forward.38} parent=0 // pred_region
    _
  $region5: #{clip_forward.38} parent=0 // pred_fallthru
    _
  // Predicated region
  $region6: #{clip_forward.38} parent=0 // pred_check
    _
  $region7: #{clip_forward.38} parent=0 // pred_check_branch
    %13 = sbr.rel (0) target = $region9
  $region8: #{clip_forward.38} parent=0 // pred_region
    _
  $region9: #{clip_forward.38} parent=0 // pred_fallthru
    _
  // Predicated region
  $region10: #{clip_forward.38} parent=0 // pred_check
    _
  $region11: #{clip_forward.38} parent=0 // pred_check_branch
    %15 = sbr.rel (0) target = $region13
  $region12: #{clip_forward.38} parent=0 // pred_region
    _
  $region13: #{clip_forward.38} parent=0 // pred_fallthru
    _
  // Predicated region
  $region14: #{clip_forward.38} parent=0 // pred_check
    _
  $region15: #{clip_forward.38} parent=0 // pred_check_branch
    %17 = sbr.rel (0) target = $region17
  $region16: #{clip_forward.38} parent=0 // pred_region
    _
  $region17: #{clip_forward.38} parent=0 // pred_fallthru
    _
  // Predicated region
  $region18: #{clip_forward.38} parent=0 // pred_check
    _
  $region19: #{clip_forward.38} parent=0 // pred_check_branch
    %19 = sbr.rel (0) target = $region21
  $region20: #{clip_forward.38} parent=0 // pred_region
    _
  $region21: #{clip_forward.38} parent=0 // pred_fallthru
    _
  %p21 = scmp.eq.s32.totalorder 0, 0
  // Predicated region
  $region22: #{clip_forward.38} parent=0 // pred_check
    %p22 = pneg %p21
  $region23: #{clip_forward.38} parent=0 // pred_check_branch
    %24 = sbr.rel (%p22) target = $region25
  $region24: #{clip_forward.38} parent=0 // pred_region
    %vm25 = vcmask 523264
    %26 = vst.msk [vmem:[#allocation2] sm:$0xff] %vm25, 0.0
    %27 = vst.msk [vmem:[#allocation2 + $0x8] sm:$0xff] %vm25, 0.0
  $region25: #{clip_forward.38} parent=0 // pred_fallthru
    _
  %v28 = vld [vmem:[%s0] sm:$0xff]
  %v29 = vld [vmem:[%s0 + $0x8] sm:$0xff]
  %vm30 = vcmask 261120
  %v31 = vsel %vm30, %v28, 0.0
  %32 = vadd.xlane.f32.xlu0 %v31
  %v33 = vpop.xlane.xlu0 %32
  %v34 = vsel %vm30, %v29, 0.0
  %35 = vadd.xlane.f32.xlu0 %v34
  %v36 = vpop.xlane.xlu0 %35
  %v37 = vrcp.pop 32.0
  %v38 = vmul.f32 32.0, %v37
  %v39 = vsub.f32 1.0, %v38
  %v40 = vmul.f32 %v37, %v39
  %v41 = vadd.f32 %v37, %v40
  %vm42 = vweird.f32 %v37
  %v43 = vsel %vm42, %v37, %v41
  %v44 = vmul.f32 %v33, %v43
  %v45 = vmul.f32 %v36, %v43
  %v46 = vsub.f32 %v28, %v44
  %v47 = vsub.f32 %v29, %v45
  %v48 = vmul.f32 %v46, %v46
  %v49 = vmul.f32 %v47, %v47
  %v50 = vsel %vm30, %v48, 0.0
  %51 = vadd.xlane.f32.xlu0 %v50
  %v52 = vpop.xlane.xlu0 %51
  %v53 = vsel %vm30, %v49, 0.0
  %54 = vadd.xlane.f32.xlu0 %v53
  %v55 = vpop.xlane.xlu0 %54
  %v56 = vmul.f32 %v52, %v43
  %v57 = vmul.f32 %v55, %v43
  %v58 = vadd.f32 %v56, 1e-05
  %v59 = vadd.f32 %v57, 1e-05
  %v60 = vrsqrt.pop %v58
  %v61 = vmul.f32 %v60, %v58
  %v62 = vmul.f32 %v61, %v60
  %v63 = vmul.f32 0.5, %v62
  %v64 = vsub.f32 1.5, %v63
  %v65 = vmul.f32 %v60, %v64
  %vm66 = vweird.f32 %v58
  %vm67 = vweird.f32 %v60
  %vm68 = vmor %vm66, %vm67
  %v69 = vsel %vm68, %v60, %v65
  %v70 = vrsqrt.pop %v59
  %v71 = vmul.f32 %v70, %v59
  %v72 = vmul.f32 %v71, %v70
  %v73 = vmul.f32 0.5, %v72
  %v74 = vsub.f32 1.5, %v73
  %v75 = vmul.f32 %v70, %v74
  %vm76 = vweird.f32 %v59
  %vm77 = vweird.f32 %v70
  %vm78 = vmor %vm76, %vm77
  %v79 = vsel %vm78, %v70, %v75
  %v80 = vmul.f32 %v46, %v69
  %v81 = vmul.f32 %v47, %v79
  %v82 = vld [vmem:[%s3] sm:$0x1]
  %v84 = vperm.slane %v82, 0
  %v86 = vmul.f32 %v80, %v84
  %v87 = vmul.f32 %v81, %v84
  %v88 = vld [vmem:[%s4] sm:$0x1]
  %v90 = vperm.slane %v88, 0
  %v92 = vadd.f32 %v86, %v90
  %v93 = vadd.f32 %v87, %v90
  %v94 = vpack.c.bf16 %v93, %v92
  %v95 = vld [vmem:[#allocation2] sm:$0xff]
  %v96 = vld [vmem:[#allocation2 + $0x8] sm:$0xff]
  %v97 = vld [vmem:[%s1] sm:$0xf]
  %v98 = vld [vmem:[%s1 + $0x4] sm:$0xf]
  %v99 = vld [vmem:[%s1 + $0x8] sm:$0xf]
  %v100 = vld [vmem:[%s1 + $0xc] sm:$0xf]
  %v105 = vunpack.c.l.b16 %v97
  %v106 = vunpack.c.l.b16 %v98
  %v107 = vunpack.c.l.b16 %v99
  %v108 = vunpack.c.l.b16 %v100
  %v109 = vpack.c.b16 %v106, %v105
  %v110 = vpack.c.b16 %v108, %v107
  %v114 = vsel %vm30, %v94, 0
  %116 = vmatpush.bf16.msra.mxu0 0
  %117 = vmatpush.bf16.msra.mxu0 0
  %118 = vmatpush.bf16.msra.mxu0 0
  %119 = vmatpush.bf16.msra.mxu0 0
  %120 = vmatpush.bf16.msra.mxu0 0
  %121 = vmatpush.bf16.msra.mxu0 0
  %122 = vmatpush.bf16.msra.mxu0 %v110
  %123 = vmatpush.bf16.msra.mxu0 %v109
  %124 = vmatmul.bf16.gmra.mxu0 %v114
  %v125 = vpop.f32.mrf.mxu0
  %v126 = vadd.f32 0.0, %v125
  %v127 = vpop.f32.mrf.mxu0
  %v128 = vadd.f32 0.0, %v127
  %129 = vdwg.mxu0
  %v130 = vadd.f32 %v95, %v126
  %v131 = vadd.f32 %v96, %v128
  %vm132 = vcmask 523264
  %133 = vst.msk [vmem:[#allocation2] sm:$0xff] %vm132, %v130
  %134 = vst.msk [vmem:[#allocation2 + $0x8] sm:$0xff] %vm132, %v131
  // Predicated region
  $region26: #{clip_forward.38} parent=0 // pred_check
    %p135 = pneg %p21
  $region27: #{clip_forward.38} parent=0 // pred_check_branch
    %137 = sbr.rel (%p135) target = $region29
  $region28: #{clip_forward.38} parent=0 // pred_region
    %v138 = vld [vmem:[#allocation2] sm:$0xff]
    %v139 = vld [vmem:[#allocation2 + $0x8] sm:$0xff]
    %v140 = vld [vmem:[%s2] sm:$0x1]
    %v142 = vperm.slane %v140, 0
    %v144 = vadd.f32 %v138, %v142
    %v145 = vadd.f32 %v139, %v142
    %v146 = vmul.f32 %v144, %v144
    %v147 = vmul.f32 %v145, %v145
    %v148 = vmul.f32 %v144, %v146
    %v149 = vmul.f32 %v145, %v147
    %v150 = vmul.f32 %v148, 0.044715
    %v151 = vmul.f32 %v149, 0.044715
    %v152 = vadd.f32 %v144, %v150
    %v153 = vadd.f32 %v145, %v151
    %v154 = vmul.f32 %v152, 0.7978846
    %v155 = vmul.f32 %v153, 0.7978846
    %v156 = vtanh.pop %v154
    %v157 = vtanh.pop %v155
    %v158 = vadd.f32 %v156, 1.0
    %v159 = vadd.f32 %v157, 1.0
    %v160 = vmul.f32 %v158, 0.5
    %v161 = vmul.f32 %v159, 0.5
    %v162 = vmul.f32 %v144, %v160
    %v163 = vmul.f32 %v145, %v161
    %v164 = vpack.c.bf16 %v162, %v162
    %v165 = vpack.c.bf16 %v163, %v163
    %vm166 = vcmask 519168
    %167 = vst.msk [vmem:[%s5] sm:$0xf] %vm166, %v164
    %168 = vst.msk [vmem:[%s5 + $0x4] sm:$0xf] %vm166, %v165
  $region29: #{clip_forward.38} parent=0 // pred_fallthru
    _
  // Predicated region
  $region30: #{clip_forward.38} parent=0 // pred_check
    _
  $region31: #{clip_forward.38} parent=0 // pred_check_branch
    %170 = sbr.rel (0) target = $region33
  $region32: #{clip_forward.38} parent=0 // pred_region
    _
  $region33: #{clip_forward.38} parent=0 // pred_fallthru
    _
  // Predicated region
  $region34: #{clip_forward.38} parent=0 // pred_check
    _
  $region35: #{clip_forward.38} parent=0 // pred_check_branch
    %172 = sbr.rel (0) target = $region37
  $region36: #{clip_forward.38} parent=0 // pred_region
    _
  $region37: #{clip_forward.38} parent=0 // pred_fallthru
    _

// kernel: clip_forward.39
$region0: #{clip_forward.39}
  #allocation0 [shape = 'u32[]', space=smem, size = 0x4, offset = 0x4, fixed_abs, tag = 'smem constant byte address 0x4 - core index']
  #allocation1 [shape = 'u32[72,128]{1,0:T(1,128)}', space=vmem, size = 0x9000, scoped, tag = 'internal scratch']
  #allocation2 [shape = 'f32[16,32]{1,0:T(8,128)}', space=vmem, size = 0x2000, scoped, tag = 'scratch operand']
  %s0 = inlined_call_operand.vmem [shape: bf16[16,64], index: 0, kind: input, shape index: {}]
  %s1 = inlined_call_operand.vmem [shape: bf16[64,32], index: 1, kind: input, shape index: {}]
  %s2 = inlined_call_operand.vmem [shape: f32[1,32], index: 2, kind: input, shape index: {}]
  %s3 = inlined_call_operand.vmem [shape: f32[16,32], index: 3, kind: input, shape index: {}]
  %s4 = inlined_call_operand.vmem [shape: f32[16,32], index: 4, kind: output, shape index: {}]
  %s5 = sld [smem:[#allocation0]]
  $region34: #{clip_forward.39} parent=0
    _
  %s7 = ssub.s32 1, %s5
  %s8 = scalar_select 0, %s7, %s5
  // Predicated region
  $region2: #{clip_forward.39} parent=0 // pred_check
    _
  $region3: #{clip_forward.39} parent=0 // pred_check_branch
    %10 = sbr.rel (0) target = $region5
  $region4: #{clip_forward.39} parent=0 // pred_region
    _
  $region5: #{clip_forward.39} parent=0 // pred_fallthru
    _
  // Predicated region
  $region6: #{clip_forward.39} parent=0 // pred_check
    _
  $region7: #{clip_forward.39} parent=0 // pred_check_branch
    %12 = sbr.rel (0) target = $region9
  $region8: #{clip_forward.39} parent=0 // pred_region
    _
  $region9: #{clip_forward.39} parent=0 // pred_fallthru
    _
  // Predicated region
  $region10: #{clip_forward.39} parent=0 // pred_check
    _
  $region11: #{clip_forward.39} parent=0 // pred_check_branch
    %14 = sbr.rel (0) target = $region13
  $region12: #{clip_forward.39} parent=0 // pred_region
    _
  $region13: #{clip_forward.39} parent=0 // pred_fallthru
    _
  // Predicated region
  $region14: #{clip_forward.39} parent=0 // pred_check
    _
  $region15: #{clip_forward.39} parent=0 // pred_check_branch
    %16 = sbr.rel (0) target = $region17
  $region16: #{clip_forward.39} parent=0 // pred_region
    _
  $region17: #{clip_forward.39} parent=0 // pred_fallthru
    _
  %p18 = scmp.eq.s32.totalorder 0, 0
  // Predicated region
  $region18: #{clip_forward.39} parent=0 // pred_check
    %p19 = pneg %p18
  $region19: #{clip_forward.39} parent=0 // pred_check_branch
    %21 = sbr.rel (%p19) target = $region21
  $region20: #{clip_forward.39} parent=0 // pred_region
    %vm22 = vcmask 261120
    %23 = vst.msk [vmem:[#allocation2] sm:$0xff] %vm22, 0.0
    %24 = vst.msk [vmem:[#allocation2 + $0x8] sm:$0xff] %vm22, 0.0
  $region21: #{clip_forward.39} parent=0 // pred_fallthru
    _
  %v25 = vld [vmem:[%s0] sm:$0xf]
  %v26 = vld [vmem:[%s0 + $0x4] sm:$0xf]
  %v27 = vld [vmem:[#allocation2] sm:$0xff]
  %v28 = vld [vmem:[#allocation2 + $0x8] sm:$0xff]
  %v29 = vld [vmem:[%s1] sm:$0xf]
  %v30 = vld [vmem:[%s1 + $0x4] sm:$0xf]
  %v31 = vld [vmem:[%s1 + $0x8] sm:$0xf]
  %v32 = vld [vmem:[%s1 + $0xc] sm:$0xf]
  %v33 = vld [vmem:[%s1 + $0x10] sm:$0xf]
  %v34 = vld [vmem:[%s1 + $0x14] sm:$0xf]
  %v35 = vld [vmem:[%s1 + $0x18] sm:$0xf]
  %v36 = vld [vmem:[%s1 + $0x1c] sm:$0xf]
  %v39 = vunpack.c.l.b16 %v25
  %v40 = vunpack.c.l.b16 %v26
  %v41 = vpack.c.b16 %v40, %v39
  %v50 = vunpack.c.l.b16 %v29
  %v51 = vunpack.c.l.b16 %v30
  %v52 = vunpack.c.l.b16 %v31
  %v53 = vunpack.c.l.b16 %v32
  %v54 = vunpack.c.l.b16 %v33
  %v55 = vunpack.c.l.b16 %v34
  %v56 = vunpack.c.l.b16 %v35
  %v57 = vunpack.c.l.b16 %v36
  %v58 = vpack.c.b16 %v51, %v50
  %v59 = vpack.c.b16 %v53, %v52
  %v60 = vpack.c.b16 %v55, %v54
  %v61 = vpack.c.b16 %v57, %v56
  %vm66 = vcmask 523264
  %v68 = vsel %vm66, %v41, 0
  %70 = vmatpush.bf16.msra.mxu0 0
  %71 = vmatpush.bf16.msra.mxu0 0
  %72 = vmatpush.bf16.msra.mxu0 0
  %73 = vmatpush.bf16.msra.mxu0 0
  %74 = vmatpush.bf16.msra.mxu0 %v61
  %75 = vmatpush.bf16.msra.mxu0 %v60
  %76 = vmatpush.bf16.msra.mxu0 %v59
  %77 = vmatpush.bf16.msra.mxu0 %v58
  %78 = vmatmul.bf16.gmra.mxu0 %v68
  %v79 = vpop.f32.mrf.mxu0
  %v80 = vadd.f32 0.0, %v79
  %v81 = vpop.f32.mrf.mxu0
  %v82 = vadd.f32 0.0, %v81
  %83 = vdwg.mxu0
  %v84 = vadd.f32 %v27, %v80
  %v85 = vadd.f32 %v28, %v82
  %vm86 = vcmask 261120
  %87 = vst.msk [vmem:[#allocation2] sm:$0xff] %vm86, %v84
  %88 = vst.msk [vmem:[#allocation2 + $0x8] sm:$0xff] %vm86, %v85
  // Predicated region
  $region22: #{clip_forward.39} parent=0 // pred_check
    %p89 = pneg %p18
  $region23: #{clip_forward.39} parent=0 // pred_check_branch
    %91 = sbr.rel (%p89) target = $region25
  $region24: #{clip_forward.39} parent=0 // pred_region
    %v92 = vld [vmem:[#allocation2] sm:$0xff]
    %v93 = vld [vmem:[#allocation2 + $0x8] sm:$0xff]
    %v94 = vld [vmem:[%s2] sm:$0x1]
    %v96 = vperm.slane %v94, 0
    %v98 = vadd.f32 %v92, %v96
    %v99 = vadd.f32 %v93, %v96
    %v100 = vld [vmem:[%s3] sm:$0xff]
    %v101 = vld [vmem:[%s3 + $0x8] sm:$0xff]
    %v102 = vadd.f32 %v98, %v100
    %v103 = vadd.f32 %v99, %v101
    %104 = vst.msk [vmem:[%s4] sm:$0xff] %vm86, %v102
    %105 = vst.msk [vmem:[%s4 + $0x8] sm:$0xff] %vm86, %v103
  $region25: #{clip_forward.39} parent=0 // pred_fallthru
    _
  // Predicated region
  $region26: #{clip_forward.39} parent=0 // pred_check
    _
  $region27: #{clip_forward.39} parent=0 // pred_check_branch
    %107 = sbr.rel (0) target = $region29
  $region28: #{clip_forward.39} parent=0 // pred_region
    _
  $region29: #{clip_forward.39} parent=0 // pred_fallthru
    _
  // Predicated region
  $region30: #{clip_forward.39} parent=0 // pred_check
    _
  $region31: #{clip_forward.39} parent=0 // pred_check_branch
    %109 = sbr.rel (0) target = $region33
  $region32: #{clip_forward.39} parent=0 // pred_region
    _
  $region33: #{clip_forward.39} parent=0 // pred_fallthru
    _

</llo_original>
